<compile_context>
chip_gen: v7x
topology: tpu7x:2x2x1
jax: 0.10.0
libtpu: 0.0.40
codegen_flags: <defaults>
</compile_context>

<pallas_src>
import functools
import math

import numpy as np

import jax
import jax.numpy as jnp
from jax.experimental import pallas as pl
from jax.experimental.pallas import tpu as pltpu

# ----------------------------- config (small) -------------------------------
VOCAB = 256
HIDDEN = 32
N_LAYERS = 2
N_HEADS = 4
HEAD_DIM = HIDDEN // N_HEADS          # 8
INTERMEDIATE = 64
ROPE_THETA = 10000.0
ROPE_SCALING = 1.0
RMS_EPS = 1e-6
INIT_STD = 0.02
NEG_INF = -1e30


# ------------------------------ kernel helpers ------------------------------
def _rms_norm(x, w, eps=RMS_EPS):
    # x: (rows, H), w: (1, H)
    var = jnp.mean(x * x, axis=-1, keepdims=True)
    return x * jax.lax.rsqrt(var + eps) * w


# --------------------------- fully fused forward ----------------------------
def fused_forward_kernel(ids_ref, embed_ref, cos2_ref, sin2_ref, mask_ref,
                         ln1_ref, wattn_ref, wo_ref,
                         ln2_ref, wmlp_ref, wd_ref,
                         lnf_ref, lm_ref,
                         out_ref, ctx_ref):
    rows = ids_ref.shape[0]

    # ---- embedding gather fused as one-hot @ embed (MXU otherwise idle) ----
    ids = ids_ref[...]                                        # (rows, 1) int32
    vocab_iota = jax.lax.broadcasted_iota(jnp.int32, (rows, VOCAB), 1)
    onehot = jnp.where(vocab_iota == ids, 1.0, 0.0)           # (rows, VOCAB)
    x = jnp.dot(onehot, embed_ref[...],
                preferred_element_type=jnp.float32)           # (rows, H)

    # ---- constants hoisted once, reused by every layer ---------------------
    cos2 = cos2_ref[...]                                      # (rows, 2H)
    sin2 = sin2_ref[...]                                      # (rows, 2H)
    mask_bias = mask_ref[...]                                 # (rows, rows) block-diag causal

    for layer in range(N_LAYERS):                             # static unroll
        # ----------------- attention block -----------------
        h1 = _rms_norm(x, ln1_ref[layer])
        # one wide matmul: [q*scale | k | rot(q)*scale | rot(k) | v]  (rows, 5H)
        y = jnp.dot(h1, wattn_ref[layer], preferred_element_type=jnp.float32)
        qk = y[:, :2 * HIDDEN]
        qk_rot = y[:, 2 * HIDDEN:4 * HIDDEN]
        v = y[:, 4 * HIDDEN:]
        qkr = qk * cos2 + qk_rot * sin2                       # RoPE on q and k at once
        qr = qkr[:, :HIDDEN]
        kr = qkr[:, HIDDEN:]

        # per-head causal softmax attention; 1/sqrt(d) already folded into Wq
        for hd in range(N_HEADS):
            sl = slice(hd * HEAD_DIM, (hd + 1) * HEAD_DIM)
            s_h = jnp.dot(qr[:, sl], kr[:, sl].T,
                          preferred_element_type=jnp.float32)
            s_h = s_h + mask_bias
            s_h = s_h - jnp.max(s_h, axis=-1, keepdims=True)
            p = jnp.exp(s_h)
            p = p * pl.reciprocal(jnp.sum(p, axis=-1, keepdims=True), approx=True)
            ctx_ref[:, sl] = jnp.dot(p, v[:, sl],
                                     preferred_element_type=jnp.float32)

        # single full-width output projection + residual
        x = x + jnp.dot(ctx_ref[...], wo_ref[layer],
                        preferred_element_type=jnp.float32)

        # ----------------- SwiGLU MLP block -----------------
        h2 = _rms_norm(x, ln2_ref[layer])
        y2 = jnp.dot(h2, wmlp_ref[layer],
                     preferred_element_type=jnp.float32)      # (rows, 2I) = 128 lanes
        g = y2[:, :INTERMEDIATE]
        u = y2[:, INTERMEDIATE:]
        act = g * jax.nn.sigmoid(g) * u
        x = x + jnp.dot(act, wd_ref[layer],
                        preferred_element_type=jnp.float32)

    # ---- final RMSNorm + lm_head (lane-dense (rows, 256) store) ------------
    hf = _rms_norm(x, lnf_ref[...])
    out_ref[...] = jnp.dot(hf, lm_ref[...], preferred_element_type=jnp.float32)


# ------------------------------- host glue ----------------------------------
def rope_tables(seq_len):
    inv_freq = 1.0 / (ROPE_THETA ** (jnp.arange(0, HEAD_DIM, 2, dtype=jnp.float32)
                                     / HEAD_DIM))
    pos = jnp.arange(seq_len, dtype=jnp.float32) / ROPE_SCALING
    freqs = pos[:, None] * inv_freq[None, :]                  # (S, HEAD_DIM//2)
    emb = jnp.concatenate([freqs, freqs], axis=-1)            # (S, HEAD_DIM)
    return jnp.cos(emb), jnp.sin(emb)


def _rotate_half_cols(wT):
    # Exact column permutation + negation so that  x @ result == rotate_half_per_head(x @ wT)
    half = HEAD_DIM // 2
    parts = []
    for h in range(N_HEADS):
        base = h * HEAD_DIM
        w1 = wT[:, base:base + half]
        w2 = wT[:, base + half:base + HEAD_DIM]
        parts.append(jnp.concatenate([-w2, w1], axis=1))
    return jnp.concatenate(parts, axis=1)


def _block_causal_mask(n_batches, seq_len):
    rows = n_batches * seq_len
    r = np.arange(rows)[:, None]
    c = np.arange(rows)[None, :]
    ok = (r // seq_len == c // seq_len) & (r % seq_len >= c % seq_len)
    return jnp.asarray(np.where(ok, 0.0, NEG_INF).astype(np.float32))


def _full_spec(arr):
    nd = arr.ndim
    return pl.BlockSpec(arr.shape, lambda g, _nd=nd: (0,) * _nd)


def _num_grid_blocks(batch):
    """2-way 'parallel' grid on 2-TensorCore chips (v7x); single fused block otherwise."""
    try:
        kind = jax.devices()[0].device_kind.lower()
    except Exception:
        kind = ""
    if (("v7" in kind) or ("7x" in kind)) and batch % 2 == 0:
        return 2
    return 1


@functools.partial(jax.jit, static_argnames=("n_blocks",))
def ava_forward(input_ids, params, n_blocks=1):
    """AvaForCausalLM.forward (labels=None, no cache). Returns logits [B, S, V]."""
    B, S = input_ids.shape
    assert B % n_blocks == 0
    bb = B // n_blocks                 # batches per grid block (folded into rows)
    rows_blk = bb * S

    cos_h, sin_h = rope_tables(S)                              # (S, HEAD_DIM)
    cos2 = jnp.tile(cos_h, (B, 2 * N_HEADS))                   # (B*S, 2*HIDDEN) for [q|k]
    sin2 = jnp.tile(sin_h, (B, 2 * N_HEADS))
    mask = _block_causal_mask(bb, S)                           # (rows_blk, rows_blk)

    scale = 1.0 / math.sqrt(HEAD_DIM)
    layers = params['layers']
    wattn, wmlp, wo, wd, ln1, ln2 = [], [], [], [], [], []
    for l in layers:
        wqTs = l['wq'].T * scale                               # scale folded into Wq
        wkT = l['wk'].T
        wattn.append(jnp.concatenate(
            [wqTs, wkT, _rotate_half_cols(wqTs), _rotate_half_cols(wkT), l['wv'].T],
            axis=1))                                           # (H, 5H)
        wmlp.append(jnp.concatenate([l['wg'].T, l['wu'].T], axis=1))   # (H, 2I)
        wo.append(l['wo'].T)
        wd.append(l['wd'].T)
        ln1.append(l['ln1'].reshape(1, HIDDEN))
        ln2.append(l['ln2'].reshape(1, HIDDEN))
    wattn = jnp.stack(wattn)          # (L, H, 5H)
    wmlp = jnp.stack(wmlp)            # (L, H, 2I)
    wo = jnp.stack(wo)                # (L, H, H)
    wd = jnp.stack(wd)                # (L, I, H)
    ln1 = jnp.stack(ln1)              # (L, 1, H)
    ln2 = jnp.stack(ln2)              # (L, 1, H)
    lnf = params['final_ln'].reshape(1, HIDDEN)
    lmT = params['lm_head'].T         # (H, V)   tie_word_embeddings=False

    ids2 = input_ids.astype(jnp.int32).reshape(B * S, 1)

    operands = (ids2, params['embed'], cos2, sin2, mask,
                ln1, wattn, wo, ln2, wmlp, wd, lnf, lmT)

    in_specs = [
        pl.BlockSpec((rows_blk, 1), lambda g: (g, 0)),
        _full_spec(params['embed']),
        pl.BlockSpec((rows_blk, 2 * HIDDEN), lambda g: (g, 0)),
        pl.BlockSpec((rows_blk, 2 * HIDDEN), lambda g: (g, 0)),
        _full_spec(mask),
        _full_spec(ln1), _full_spec(wattn), _full_spec(wo),
        _full_spec(ln2), _full_spec(wmlp), _full_spec(wd),
        _full_spec(lnf), _full_spec(lmT),
    ]

    logits_2d = pl.pallas_call(
        fused_forward_kernel,
        out_shape=jax.ShapeDtypeStruct((B * S, VOCAB), jnp.float32),
        grid=(n_blocks,),
        in_specs=in_specs,
        out_specs=pl.BlockSpec((rows_blk, VOCAB), lambda g: (g, 0)),
        scratch_shapes=[pltpu.VMEM((rows_blk, HIDDEN), jnp.float32)],
        compiler_params=pltpu.CompilerParams(
            dimension_semantics=("parallel",)),
    )(*operands)
    return logits_2d.reshape(B, S, VOCAB)


# ---------------------------- parameter init --------------------------------
def init_params(key):
    n_keys = 2 + N_LAYERS * 7
    keys = iter(jax.random.split(key, n_keys))

    def lin(k, out_f, in_f):
        return (INIT_STD * jax.random.normal(k, (out_f, in_f))).astype(jnp.float32)

    params = {
        'embed': (INIT_STD * jax.random.normal(next(keys), (VOCAB, HIDDEN))
                  ).astype(jnp.float32),
        'final_ln': jnp.ones((HIDDEN,), jnp.float32),
        'lm_head': lin(next(keys), VOCAB, HIDDEN),
        'layers': [],
    }
    for _ in range(N_LAYERS):
        params['layers'].append({
            'ln1': jnp.ones((HIDDEN,), jnp.float32),
            'ln2': jnp.ones((HIDDEN,), jnp.float32),
            'wq': lin(next(keys), HIDDEN, HIDDEN),
            'wk': lin(next(keys), HIDDEN, HIDDEN),
            'wv': lin(next(keys), HIDDEN, HIDDEN),
            'wo': lin(next(keys), HIDDEN, HIDDEN),
            'wg': lin(next(keys), INTERMEDIATE, HIDDEN),
            'wu': lin(next(keys), INTERMEDIATE, HIDDEN),
            'wd': lin(next(keys), HIDDEN, INTERMEDIATE),
        })
    return params


if __name__ == "__main__":
    key = jax.random.PRNGKey(0)
    pkey, dkey = jax.random.split(key)
    params = init_params(pkey)

    B, S = 2, 8
    input_ids = jax.random.randint(dkey, (B, S), 0, VOCAB, dtype=jnp.int32)

    n_blocks = _num_grid_blocks(B)   # 2 on v7x (2 TCs/chip), 1 on v5e/v6e
    logits = ava_forward(input_ids, params, n_blocks=n_blocks)
    logits = jax.block_until_ready(logits)
    assert logits.shape == (B, S, VOCAB) and logits.dtype == jnp.float32
    assert bool(jnp.all(jnp.isfinite(logits)))
    print("KERNEL_OK")
</pallas_src>

<mosaic_0001>
module attributes {stable_mosaic.version = 11 : i64} {
  func.func @fused_forward_kernel(%arg0: i32, %arg1: memref<16x1xi32, #tpu.memory_space<vmem>>, %arg2: memref<256x32xf32, #tpu.memory_space<vmem>>, %arg3: memref<16x64xf32, #tpu.memory_space<vmem>>, %arg4: memref<16x64xf32, #tpu.memory_space<vmem>>, %arg5: memref<16x16xf32, #tpu.memory_space<vmem>>, %arg6: memref<2x1x32xf32, #tpu.memory_space<vmem>>, %arg7: memref<2x32x160xf32, #tpu.memory_space<vmem>>, %arg8: memref<2x32x32xf32, #tpu.memory_space<vmem>>, %arg9: memref<2x1x32xf32, #tpu.memory_space<vmem>>, %arg10: memref<2x32x128xf32, #tpu.memory_space<vmem>>, %arg11: memref<2x64x32xf32, #tpu.memory_space<vmem>>, %arg12: memref<1x32xf32, #tpu.memory_space<vmem>>, %arg13: memref<32x256xf32, #tpu.memory_space<vmem>>, %arg14: memref<16x256xf32, #tpu.memory_space<vmem>>, %arg15: memref<16x32xf32, #tpu.memory_space<vmem>>) attributes {dimension_semantics = [#tpu.dimension_semantics<parallel>], iteration_bounds = array<i64: 1>, scalar_prefetch = 0 : i64, scratch_operands = 1 : i64, tpu.core_type = #tpu.core_type<tc>, window_params = [{transform_indices = @transform_0, window_bounds = array<i64: 16, 1>}, {pipeline_mode = #tpu.pipeline_mode<synchronous>, transform_indices = @transform_1, window_bounds = array<i64: 256, 32>}, {transform_indices = @transform_2, window_bounds = array<i64: 16, 64>}, {transform_indices = @transform_3, window_bounds = array<i64: 16, 64>}, {pipeline_mode = #tpu.pipeline_mode<synchronous>, transform_indices = @transform_4, window_bounds = array<i64: 16, 16>}, {pipeline_mode = #tpu.pipeline_mode<synchronous>, transform_indices = @transform_5, window_bounds = array<i64: 2, 1, 32>}, {pipeline_mode = #tpu.pipeline_mode<synchronous>, transform_indices = @transform_6, window_bounds = array<i64: 2, 32, 160>}, {pipeline_mode = #tpu.pipeline_mode<synchronous>, transform_indices = @transform_7, window_bounds = array<i64: 2, 32, 32>}, {pipeline_mode = #tpu.pipeline_mode<synchronous>, transform_indices = @transform_8, window_bounds = array<i64: 2, 1, 32>}, {pipeline_mode = #tpu.pipeline_mode<synchronous>, transform_indices = @transform_9, window_bounds = array<i64: 2, 32, 128>}, {pipeline_mode = #tpu.pipeline_mode<synchronous>, transform_indices = @transform_10, window_bounds = array<i64: 2, 64, 32>}, {pipeline_mode = #tpu.pipeline_mode<synchronous>, transform_indices = @transform_11, window_bounds = array<i64: 1, 32>}, {pipeline_mode = #tpu.pipeline_mode<synchronous>, transform_indices = @transform_12, window_bounds = array<i64: 32, 256>}, {transform_indices = @transform_13, window_bounds = array<i64: 16, 256>}]} {
    %c0 = arith.constant 0 : index
    %c0_0 = arith.constant 0 : index
    %0 = vector.load %arg1[%c0, %c0_0] : memref<16x1xi32, #tpu.memory_space<vmem>>, vector<16x1xi32>
    %1 = tpu.iota {dimensions = array<i32: 1>} : vector<16x256xi32>
    %2 = vector.broadcast %0 : vector<16x1xi32> to vector<16x256xi32>
    %3 = arith.cmpi eq, %1, %2 : vector<16x256xi32>
    %cst = arith.constant 1.000000e+00 : f32
    %cst_1 = arith.constant 0.000000e+00 : f32
    %4 = vector.broadcast %cst : f32 to vector<16x256xf32>
    %5 = vector.broadcast %cst_1 : f32 to vector<16x256xf32>
    %6 = arith.select %3, %4, %5 : vector<16x256xi1>, vector<16x256xf32>
    %c0_2 = arith.constant 0 : index
    %c0_3 = arith.constant 0 : index
    %7 = vector.load %arg2[%c0_2, %c0_3] : memref<256x32xf32, #tpu.memory_space<vmem>>, vector<256x32xf32>
    %cst_4 = arith.constant dense<0.000000e+00> : vector<16x32xf32>
    %8 = tpu.matmul %6, %7, %cst_4 {dimension_numbers = #tpu.dot_dimension_numbers<[1], [0], [0], [1], [0, 0, 1, 1], [], []>} : vector<16x256xf32>, vector<256x32xf32>, vector<16x32xf32> -> vector<16x32xf32>
    %c0_5 = arith.constant 0 : index
    %c0_6 = arith.constant 0 : index
    %9 = vector.load %arg3[%c0_5, %c0_6] : memref<16x64xf32, #tpu.memory_space<vmem>>, vector<16x64xf32>
    %c0_7 = arith.constant 0 : index
    %c0_8 = arith.constant 0 : index
    %10 = vector.load %arg4[%c0_7, %c0_8] : memref<16x64xf32, #tpu.memory_space<vmem>>, vector<16x64xf32>
    %c0_9 = arith.constant 0 : index
    %c0_10 = arith.constant 0 : index
    %11 = vector.load %arg5[%c0_9, %c0_10] : memref<16x16xf32, #tpu.memory_space<vmem>>, vector<16x16xf32>
    %c0_11 = arith.constant 0 : index
    %c0_12 = arith.constant 0 : index
    %c0_13 = arith.constant 0 : index
    %12 = vector.load %arg6[%c0_11, %c0_12, %c0_13] : memref<2x1x32xf32, #tpu.memory_space<vmem>>, vector<1x1x32xf32>
    %13 = vector.shape_cast %12 : vector<1x1x32xf32> to vector<1x32xf32>
    %14 = arith.mulf %8, %8 : vector<16x32xf32>
    %cst_14 = arith.constant dense<0.000000e+00> : vector<16xf32>
    %15 = vector.multi_reduction <add>, %14, %cst_14 [1] : vector<16x32xf32> to vector<16xf32>
    %16 = vector.shape_cast %15 : vector<16xf32> to vector<16x1xf32>
    %cst_15 = arith.constant 3.200000e+01 : f32
    %17 = vector.broadcast %cst_15 : f32 to vector<16x1xf32>
    %18 = arith.divf %16, %17 : vector<16x1xf32>
    %cst_16 = arith.constant 9.99999997E-7 : f32
    %19 = vector.broadcast %cst_16 : f32 to vector<16x1xf32>
    %20 = arith.addf %18, %19 : vector<16x1xf32>
    %21 = math.rsqrt %20 : vector<16x1xf32>
    %22 = vector.broadcast %21 : vector<16x1xf32> to vector<16x32xf32>
    %23 = arith.mulf %8, %22 : vector<16x32xf32>
    %24 = vector.broadcast %13 : vector<1x32xf32> to vector<16x32xf32>
    %25 = arith.mulf %23, %24 : vector<16x32xf32>
    %c0_17 = arith.constant 0 : index
    %c0_18 = arith.constant 0 : index
    %c0_19 = arith.constant 0 : index
    %26 = vector.load %arg7[%c0_17, %c0_18, %c0_19] : memref<2x32x160xf32, #tpu.memory_space<vmem>>, vector<1x32x160xf32>
    %27 = vector.shape_cast %26 : vector<1x32x160xf32> to vector<32x160xf32>
    %cst_20 = arith.constant dense<0.000000e+00> : vector<16x160xf32>
    %28 = tpu.matmul %25, %27, %cst_20 {dimension_numbers = #tpu.dot_dimension_numbers<[1], [0], [0], [1], [0, 0, 1, 1], [], []>} : vector<16x32xf32>, vector<32x160xf32>, vector<16x160xf32> -> vector<16x160xf32>
    %29 = vector.extract_strided_slice %28 {offsets = [0, 0], sizes = [16, 64], strides = [1, 1]} : vector<16x160xf32> to vector<16x64xf32>
    %30 = vector.extract_strided_slice %28 {offsets = [0, 64], sizes = [16, 64], strides = [1, 1]} : vector<16x160xf32> to vector<16x64xf32>
    %31 = vector.extract_strided_slice %28 {offsets = [0, 128], sizes = [16, 32], strides = [1, 1]} : vector<16x160xf32> to vector<16x32xf32>
    %32 = arith.mulf %29, %9 : vector<16x64xf32>
    %33 = arith.mulf %30, %10 : vector<16x64xf32>
    %34 = arith.addf %32, %33 : vector<16x64xf32>
    %35 = vector.extract_strided_slice %34 {offsets = [0, 0], sizes = [16, 32], strides = [1, 1]} : vector<16x64xf32> to vector<16x32xf32>
    %36 = vector.extract_strided_slice %34 {offsets = [0, 32], sizes = [16, 32], strides = [1, 1]} : vector<16x64xf32> to vector<16x32xf32>
    %37 = vector.extract_strided_slice %35 {offsets = [0, 0], sizes = [16, 8], strides = [1, 1]} : vector<16x32xf32> to vector<16x8xf32>
    %38 = vector.extract_strided_slice %36 {offsets = [0, 0], sizes = [16, 8], strides = [1, 1]} : vector<16x32xf32> to vector<16x8xf32>
    %39 = tpu.transpose %38, [1, 0] : vector<16x8xf32> -> vector<8x16xf32>
    %cst_21 = arith.constant dense<0.000000e+00> : vector<16x16xf32>
    %40 = tpu.matmul %37, %39, %cst_21 {dimension_numbers = #tpu.dot_dimension_numbers<[1], [0], [0], [1], [0, 0, 1, 1], [], []>} : vector<16x8xf32>, vector<8x16xf32>, vector<16x16xf32> -> vector<16x16xf32>
    %41 = arith.addf %40, %11 : vector<16x16xf32>
    %cst_22 = arith.constant dense<0xFF800000> : vector<16xf32>
    %42 = vector.multi_reduction <maximumf>, %41, %cst_22 [1] : vector<16x16xf32> to vector<16xf32>
    %43 = vector.shape_cast %42 : vector<16xf32> to vector<16x1xf32>
    %44 = vector.broadcast %43 : vector<16x1xf32> to vector<16x16xf32>
    %45 = arith.subf %41, %44 : vector<16x16xf32>
    %46 = math.exp %45 : vector<16x16xf32>
    %cst_23 = arith.constant dense<0.000000e+00> : vector<16xf32>
    %47 = vector.multi_reduction <add>, %46, %cst_23 [1] : vector<16x16xf32> to vector<16xf32>
    %48 = vector.shape_cast %47 : vector<16xf32> to vector<16x1xf32>
    %49 = tpu.reciprocal %48 {approx = true} : vector<16x1xf32> -> vector<16x1xf32>
    %50 = vector.broadcast %49 : vector<16x1xf32> to vector<16x16xf32>
    %51 = arith.mulf %46, %50 : vector<16x16xf32>
    %52 = vector.extract_strided_slice %31 {offsets = [0, 0], sizes = [16, 8], strides = [1, 1]} : vector<16x32xf32> to vector<16x8xf32>
    %cst_24 = arith.constant dense<0.000000e+00> : vector<16x8xf32>
    %53 = tpu.matmul %51, %52, %cst_24 {dimension_numbers = #tpu.dot_dimension_numbers<[1], [0], [0], [1], [0, 0, 1, 1], [], []>} : vector<16x16xf32>, vector<16x8xf32>, vector<16x8xf32> -> vector<16x8xf32>
    %c0_25 = arith.constant 0 : index
    %c0_26 = arith.constant 0 : index
    %54 = vector.load %arg15[%c0_25, %c0_26] : memref<16x32xf32, #tpu.memory_space<vmem>>, vector<16x8xf32>
    tpu.vector_store %arg15[%c0_25, %c0_26], %53 {strides = array<i32>} : memref<16x32xf32, #tpu.memory_space<vmem>>, vector<16x8xf32>,
    %55 = vector.extract_strided_slice %35 {offsets = [0, 8], sizes = [16, 8], strides = [1, 1]} : vector<16x32xf32> to vector<16x8xf32>
    %56 = vector.extract_strided_slice %36 {offsets = [0, 8], sizes = [16, 8], strides = [1, 1]} : vector<16x32xf32> to vector<16x8xf32>
    %57 = tpu.transpose %56, [1, 0] : vector<16x8xf32> -> vector<8x16xf32>
    %cst_27 = arith.constant dense<0.000000e+00> : vector<16x16xf32>
    %58 = tpu.matmul %55, %57, %cst_27 {dimension_numbers = #tpu.dot_dimension_numbers<[1], [0], [0], [1], [0, 0, 1, 1], [], []>} : vector<16x8xf32>, vector<8x16xf32>, vector<16x16xf32> -> vector<16x16xf32>
    %59 = arith.addf %58, %11 : vector<16x16xf32>
    %cst_28 = arith.constant dense<0xFF800000> : vector<16xf32>
    %60 = vector.multi_reduction <maximumf>, %59, %cst_28 [1] : vector<16x16xf32> to vector<16xf32>
    %61 = vector.shape_cast %60 : vector<16xf32> to vector<16x1xf32>
    %62 = vector.broadcast %61 : vector<16x1xf32> to vector<16x16xf32>
    %63 = arith.subf %59, %62 : vector<16x16xf32>
    %64 = math.exp %63 : vector<16x16xf32>
    %cst_29 = arith.constant dense<0.000000e+00> : vector<16xf32>
    %65 = vector.multi_reduction <add>, %64, %cst_29 [1] : vector<16x16xf32> to vector<16xf32>
    %66 = vector.shape_cast %65 : vector<16xf32> to vector<16x1xf32>
    %67 = tpu.reciprocal %66 {approx = true} : vector<16x1xf32> -> vector<16x1xf32>
    %68 = vector.broadcast %67 : vector<16x1xf32> to vector<16x16xf32>
    %69 = arith.mulf %64, %68 : vector<16x16xf32>
    %70 = vector.extract_strided_slice %31 {offsets = [0, 8], sizes = [16, 8], strides = [1, 1]} : vector<16x32xf32> to vector<16x8xf32>
    %cst_30 = arith.constant dense<0.000000e+00> : vector<16x8xf32>
    %71 = tpu.matmul %69, %70, %cst_30 {dimension_numbers = #tpu.dot_dimension_numbers<[1], [0], [0], [1], [0, 0, 1, 1], [], []>} : vector<16x16xf32>, vector<16x8xf32>, vector<16x8xf32> -> vector<16x8xf32>
    %c0_31 = arith.constant 0 : index
    %c8 = arith.constant 8 : index
    %72 = vector.load %arg15[%c0_31, %c8] : memref<16x32xf32, #tpu.memory_space<vmem>>, vector<16x8xf32>
    tpu.vector_store %arg15[%c0_31, %c8], %71 {strides = array<i32>} : memref<16x32xf32, #tpu.memory_space<vmem>>, vector<16x8xf32>,
    %73 = vector.extract_strided_slice %35 {offsets = [0, 16], sizes = [16, 8], strides = [1, 1]} : vector<16x32xf32> to vector<16x8xf32>
    %74 = vector.extract_strided_slice %36 {offsets = [0, 16], sizes = [16, 8], strides = [1, 1]} : vector<16x32xf32> to vector<16x8xf32>
    %75 = tpu.transpose %74, [1, 0] : vector<16x8xf32> -> vector<8x16xf32>
    %cst_32 = arith.constant dense<0.000000e+00> : vector<16x16xf32>
    %76 = tpu.matmul %73, %75, %cst_32 {dimension_numbers = #tpu.dot_dimension_numbers<[1], [0], [0], [1], [0, 0, 1, 1], [], []>} : vector<16x8xf32>, vector<8x16xf32>, vector<16x16xf32> -> vector<16x16xf32>
    %77 = arith.addf %76, %11 : vector<16x16xf32>
    %cst_33 = arith.constant dense<0xFF800000> : vector<16xf32>
    %78 = vector.multi_reduction <maximumf>, %77, %cst_33 [1] : vector<16x16xf32> to vector<16xf32>
    %79 = vector.shape_cast %78 : vector<16xf32> to vector<16x1xf32>
    %80 = vector.broadcast %79 : vector<16x1xf32> to vector<16x16xf32>
    %81 = arith.subf %77, %80 : vector<16x16xf32>
    %82 = math.exp %81 : vector<16x16xf32>
    %cst_34 = arith.constant dense<0.000000e+00> : vector<16xf32>
    %83 = vector.multi_reduction <add>, %82, %cst_34 [1] : vector<16x16xf32> to vector<16xf32>
    %84 = vector.shape_cast %83 : vector<16xf32> to vector<16x1xf32>
    %85 = tpu.reciprocal %84 {approx = true} : vector<16x1xf32> -> vector<16x1xf32>
    %86 = vector.broadcast %85 : vector<16x1xf32> to vector<16x16xf32>
    %87 = arith.mulf %82, %86 : vector<16x16xf32>
    %88 = vector.extract_strided_slice %31 {offsets = [0, 16], sizes = [16, 8], strides = [1, 1]} : vector<16x32xf32> to vector<16x8xf32>
    %cst_35 = arith.constant dense<0.000000e+00> : vector<16x8xf32>
    %89 = tpu.matmul %87, %88, %cst_35 {dimension_numbers = #tpu.dot_dimension_numbers<[1], [0], [0], [1], [0, 0, 1, 1], [], []>} : vector<16x16xf32>, vector<16x8xf32>, vector<16x8xf32> -> vector<16x8xf32>
    %c0_36 = arith.constant 0 : index
    %c16 = arith.constant 16 : index
    %90 = vector.load %arg15[%c0_36, %c16] : memref<16x32xf32, #tpu.memory_space<vmem>>, vector<16x8xf32>
    tpu.vector_store %arg15[%c0_36, %c16], %89 {strides = array<i32>} : memref<16x32xf32, #tpu.memory_space<vmem>>, vector<16x8xf32>,
    %91 = vector.extract_strided_slice %35 {offsets = [0, 24], sizes = [16, 8], strides = [1, 1]} : vector<16x32xf32> to vector<16x8xf32>
    %92 = vector.extract_strided_slice %36 {offsets = [0, 24], sizes = [16, 8], strides = [1, 1]} : vector<16x32xf32> to vector<16x8xf32>
    %93 = tpu.transpose %92, [1, 0] : vector<16x8xf32> -> vector<8x16xf32>
    %cst_37 = arith.constant dense<0.000000e+00> : vector<16x16xf32>
    %94 = tpu.matmul %91, %93, %cst_37 {dimension_numbers = #tpu.dot_dimension_numbers<[1], [0], [0], [1], [0, 0, 1, 1], [], []>} : vector<16x8xf32>, vector<8x16xf32>, vector<16x16xf32> -> vector<16x16xf32>
    %95 = arith.addf %94, %11 : vector<16x16xf32>
    %cst_38 = arith.constant dense<0xFF800000> : vector<16xf32>
    %96 = vector.multi_reduction <maximumf>, %95, %cst_38 [1] : vector<16x16xf32> to vector<16xf32>
    %97 = vector.shape_cast %96 : vector<16xf32> to vector<16x1xf32>
    %98 = vector.broadcast %97 : vector<16x1xf32> to vector<16x16xf32>
    %99 = arith.subf %95, %98 : vector<16x16xf32>
    %100 = math.exp %99 : vector<16x16xf32>
    %cst_39 = arith.constant dense<0.000000e+00> : vector<16xf32>
    %101 = vector.multi_reduction <add>, %100, %cst_39 [1] : vector<16x16xf32> to vector<16xf32>
    %102 = vector.shape_cast %101 : vector<16xf32> to vector<16x1xf32>
    %103 = tpu.reciprocal %102 {approx = true} : vector<16x1xf32> -> vector<16x1xf32>
    %104 = vector.broadcast %103 : vector<16x1xf32> to vector<16x16xf32>
    %105 = arith.mulf %100, %104 : vector<16x16xf32>
    %106 = vector.extract_strided_slice %31 {offsets = [0, 24], sizes = [16, 8], strides = [1, 1]} : vector<16x32xf32> to vector<16x8xf32>
    %cst_40 = arith.constant dense<0.000000e+00> : vector<16x8xf32>
    %107 = tpu.matmul %105, %106, %cst_40 {dimension_numbers = #tpu.dot_dimension_numbers<[1], [0], [0], [1], [0, 0, 1, 1], [], []>} : vector<16x16xf32>, vector<16x8xf32>, vector<16x8xf32> -> vector<16x8xf32>
    %c0_41 = arith.constant 0 : index
    %c24 = arith.constant 24 : index
    %108 = vector.load %arg15[%c0_41, %c24] : memref<16x32xf32, #tpu.memory_space<vmem>>, vector<16x8xf32>
    tpu.vector_store %arg15[%c0_41, %c24], %107 {strides = array<i32>} : memref<16x32xf32, #tpu.memory_space<vmem>>, vector<16x8xf32>,
    %c0_42 = arith.constant 0 : index
    %c0_43 = arith.constant 0 : index
    %109 = vector.load %arg15[%c0_42, %c0_43] : memref<16x32xf32, #tpu.memory_space<vmem>>, vector<16x32xf32>
    %c0_44 = arith.constant 0 : index
    %c0_45 = arith.constant 0 : index
    %c0_46 = arith.constant 0 : index
    %110 = vector.load %arg8[%c0_44, %c0_45, %c0_46] : memref<2x32x32xf32, #tpu.memory_space<vmem>>, vector<1x32x32xf32>
    %111 = vector.shape_cast %110 : vector<1x32x32xf32> to vector<32x32xf32>
    %cst_47 = arith.constant dense<0.000000e+00> : vector<16x32xf32>
    %112 = tpu.matmul %109, %111, %cst_47 {dimension_numbers = #tpu.dot_dimension_numbers<[1], [0], [0], [1], [0, 0, 1, 1], [], []>} : vector<16x32xf32>, vector<32x32xf32>, vector<16x32xf32> -> vector<16x32xf32>
    %113 = arith.addf %8, %112 : vector<16x32xf32>
    %c0_48 = arith.constant 0 : index
    %c0_49 = arith.constant 0 : index
    %c0_50 = arith.constant 0 : index
    %114 = vector.load %arg9[%c0_48, %c0_49, %c0_50] : memref<2x1x32xf32, #tpu.memory_space<vmem>>, vector<1x1x32xf32>
    %115 = vector.shape_cast %114 : vector<1x1x32xf32> to vector<1x32xf32>
    %116 = arith.mulf %113, %113 : vector<16x32xf32>
    %cst_51 = arith.constant dense<0.000000e+00> : vector<16xf32>
    %117 = vector.multi_reduction <add>, %116, %cst_51 [1] : vector<16x32xf32> to vector<16xf32>
    %118 = vector.shape_cast %117 : vector<16xf32> to vector<16x1xf32>
    %cst_52 = arith.constant 3.200000e+01 : f32
    %119 = vector.broadcast %cst_52 : f32 to vector<16x1xf32>
    %120 = arith.divf %118, %119 : vector<16x1xf32>
    %cst_53 = arith.constant 9.99999997E-7 : f32
    %121 = vector.broadcast %cst_53 : f32 to vector<16x1xf32>
    %122 = arith.addf %120, %121 : vector<16x1xf32>
    %123 = math.rsqrt %122 : vector<16x1xf32>
    %124 = vector.broadcast %123 : vector<16x1xf32> to vector<16x32xf32>
    %125 = arith.mulf %113, %124 : vector<16x32xf32>
    %126 = vector.broadcast %115 : vector<1x32xf32> to vector<16x32xf32>
    %127 = arith.mulf %125, %126 : vector<16x32xf32>
    %c0_54 = arith.constant 0 : index
    %c0_55 = arith.constant 0 : index
    %c0_56 = arith.constant 0 : index
    %128 = vector.load %arg10[%c0_54, %c0_55, %c0_56] : memref<2x32x128xf32, #tpu.memory_space<vmem>>, vector<1x32x128xf32>
    %129 = vector.shape_cast %128 : vector<1x32x128xf32> to vector<32x128xf32>
    %cst_57 = arith.constant dense<0.000000e+00> : vector<16x128xf32>
    %130 = tpu.matmul %127, %129, %cst_57 {dimension_numbers = #tpu.dot_dimension_numbers<[1], [0], [0], [1], [0, 0, 1, 1], [], []>} : vector<16x32xf32>, vector<32x128xf32>, vector<16x128xf32> -> vector<16x128xf32>
    %131 = vector.extract_strided_slice %130 {offsets = [0, 0], sizes = [16, 64], strides = [1, 1]} : vector<16x128xf32> to vector<16x64xf32>
    %132 = vector.extract_strided_slice %130 {offsets = [0, 64], sizes = [16, 64], strides = [1, 1]} : vector<16x128xf32> to vector<16x64xf32>
    %133 = arith.negf %131 : vector<16x64xf32>
    %134 = math.exp %133 : vector<16x64xf32>
    %cst_58 = arith.constant 1.000000e+00 : f32
    %135 = vector.broadcast %cst_58 : f32 to vector<16x64xf32>
    %136 = arith.addf %135, %134 : vector<16x64xf32>
    %137 = arith.divf %135, %136 : vector<16x64xf32>
    %138 = arith.mulf %131, %137 : vector<16x64xf32>
    %139 = arith.mulf %138, %132 : vector<16x64xf32>
    %c0_59 = arith.constant 0 : index
    %c0_60 = arith.constant 0 : index
    %c0_61 = arith.constant 0 : index
    %140 = vector.load %arg11[%c0_59, %c0_60, %c0_61] : memref<2x64x32xf32, #tpu.memory_space<vmem>>, vector<1x64x32xf32>
    %141 = vector.shape_cast %140 : vector<1x64x32xf32> to vector<64x32xf32>
    %cst_62 = arith.constant dense<0.000000e+00> : vector<16x32xf32>
    %142 = tpu.matmul %139, %141, %cst_62 {dimension_numbers = #tpu.dot_dimension_numbers<[1], [0], [0], [1], [0, 0, 1, 1], [], []>} : vector<16x64xf32>, vector<64x32xf32>, vector<16x32xf32> -> vector<16x32xf32>
    %143 = arith.addf %113, %142 : vector<16x32xf32>
    %c1 = arith.constant 1 : index
    %c0_63 = arith.constant 0 : index
    %c0_64 = arith.constant 0 : index
    %144 = vector.load %arg6[%c1, %c0_63, %c0_64] : memref<2x1x32xf32, #tpu.memory_space<vmem>>, vector<1x1x32xf32>
    %145 = vector.shape_cast %144 : vector<1x1x32xf32> to vector<1x32xf32>
    %146 = arith.mulf %143, %143 : vector<16x32xf32>
    %cst_65 = arith.constant dense<0.000000e+00> : vector<16xf32>
    %147 = vector.multi_reduction <add>, %146, %cst_65 [1] : vector<16x32xf32> to vector<16xf32>
    %148 = vector.shape_cast %147 : vector<16xf32> to vector<16x1xf32>
    %cst_66 = arith.constant 3.200000e+01 : f32
    %149 = vector.broadcast %cst_66 : f32 to vector<16x1xf32>
    %150 = arith.divf %148, %149 : vector<16x1xf32>
    %cst_67 = arith.constant 9.99999997E-7 : f32
    %151 = vector.broadcast %cst_67 : f32 to vector<16x1xf32>
    %152 = arith.addf %150, %151 : vector<16x1xf32>
    %153 = math.rsqrt %152 : vector<16x1xf32>
    %154 = vector.broadcast %153 : vector<16x1xf32> to vector<16x32xf32>
    %155 = arith.mulf %143, %154 : vector<16x32xf32>
    %156 = vector.broadcast %145 : vector<1x32xf32> to vector<16x32xf32>
    %157 = arith.mulf %155, %156 : vector<16x32xf32>
    %c1_68 = arith.constant 1 : index
    %c0_69 = arith.constant 0 : index
    %c0_70 = arith.constant 0 : index
    %158 = vector.load %arg7[%c1_68, %c0_69, %c0_70] : memref<2x32x160xf32, #tpu.memory_space<vmem>>, vector<1x32x160xf32>
    %159 = vector.shape_cast %158 : vector<1x32x160xf32> to vector<32x160xf32>
    %cst_71 = arith.constant dense<0.000000e+00> : vector<16x160xf32>
    %160 = tpu.matmul %157, %159, %cst_71 {dimension_numbers = #tpu.dot_dimension_numbers<[1], [0], [0], [1], [0, 0, 1, 1], [], []>} : vector<16x32xf32>, vector<32x160xf32>, vector<16x160xf32> -> vector<16x160xf32>
    %161 = vector.extract_strided_slice %160 {offsets = [0, 0], sizes = [16, 64], strides = [1, 1]} : vector<16x160xf32> to vector<16x64xf32>
    %162 = vector.extract_strided_slice %160 {offsets = [0, 64], sizes = [16, 64], strides = [1, 1]} : vector<16x160xf32> to vector<16x64xf32>
    %163 = vector.extract_strided_slice %160 {offsets = [0, 128], sizes = [16, 32], strides = [1, 1]} : vector<16x160xf32> to vector<16x32xf32>
    %164 = arith.mulf %161, %9 : vector<16x64xf32>
    %165 = arith.mulf %162, %10 : vector<16x64xf32>
    %166 = arith.addf %164, %165 : vector<16x64xf32>
    %167 = vector.extract_strided_slice %166 {offsets = [0, 0], sizes = [16, 32], strides = [1, 1]} : vector<16x64xf32> to vector<16x32xf32>
    %168 = vector.extract_strided_slice %166 {offsets = [0, 32], sizes = [16, 32], strides = [1, 1]} : vector<16x64xf32> to vector<16x32xf32>
    %169 = vector.extract_strided_slice %167 {offsets = [0, 0], sizes = [16, 8], strides = [1, 1]} : vector<16x32xf32> to vector<16x8xf32>
    %170 = vector.extract_strided_slice %168 {offsets = [0, 0], sizes = [16, 8], strides = [1, 1]} : vector<16x32xf32> to vector<16x8xf32>
    %171 = tpu.transpose %170, [1, 0] : vector<16x8xf32> -> vector<8x16xf32>
    %cst_72 = arith.constant dense<0.000000e+00> : vector<16x16xf32>
    %172 = tpu.matmul %169, %171, %cst_72 {dimension_numbers = #tpu.dot_dimension_numbers<[1], [0], [0], [1], [0, 0, 1, 1], [], []>} : vector<16x8xf32>, vector<8x16xf32>, vector<16x16xf32> -> vector<16x16xf32>
    %173 = arith.addf %172, %11 : vector<16x16xf32>
    %cst_73 = arith.constant dense<0xFF800000> : vector<16xf32>
    %174 = vector.multi_reduction <maximumf>, %173, %cst_73 [1] : vector<16x16xf32> to vector<16xf32>
    %175 = vector.shape_cast %174 : vector<16xf32> to vector<16x1xf32>
    %176 = vector.broadcast %175 : vector<16x1xf32> to vector<16x16xf32>
    %177 = arith.subf %173, %176 : vector<16x16xf32>
    %178 = math.exp %177 : vector<16x16xf32>
    %cst_74 = arith.constant dense<0.000000e+00> : vector<16xf32>
    %179 = vector.multi_reduction <add>, %178, %cst_74 [1] : vector<16x16xf32> to vector<16xf32>
    %180 = vector.shape_cast %179 : vector<16xf32> to vector<16x1xf32>
    %181 = tpu.reciprocal %180 {approx = true} : vector<16x1xf32> -> vector<16x1xf32>
    %182 = vector.broadcast %181 : vector<16x1xf32> to vector<16x16xf32>
    %183 = arith.mulf %178, %182 : vector<16x16xf32>
    %184 = vector.extract_strided_slice %163 {offsets = [0, 0], sizes = [16, 8], strides = [1, 1]} : vector<16x32xf32> to vector<16x8xf32>
    %cst_75 = arith.constant dense<0.000000e+00> : vector<16x8xf32>
    %185 = tpu.matmul %183, %184, %cst_75 {dimension_numbers = #tpu.dot_dimension_numbers<[1], [0], [0], [1], [0, 0, 1, 1], [], []>} : vector<16x16xf32>, vector<16x8xf32>, vector<16x8xf32> -> vector<16x8xf32>
    %c0_76 = arith.constant 0 : index
    %c0_77 = arith.constant 0 : index
    %186 = vector.load %arg15[%c0_76, %c0_77] : memref<16x32xf32, #tpu.memory_space<vmem>>, vector<16x8xf32>
    tpu.vector_store %arg15[%c0_76, %c0_77], %185 {strides = array<i32>} : memref<16x32xf32, #tpu.memory_space<vmem>>, vector<16x8xf32>,
    %187 = vector.extract_strided_slice %167 {offsets = [0, 8], sizes = [16, 8], strides = [1, 1]} : vector<16x32xf32> to vector<16x8xf32>
    %188 = vector.extract_strided_slice %168 {offsets = [0, 8], sizes = [16, 8], strides = [1, 1]} : vector<16x32xf32> to vector<16x8xf32>
    %189 = tpu.transpose %188, [1, 0] : vector<16x8xf32> -> vector<8x16xf32>
    %cst_78 = arith.constant dense<0.000000e+00> : vector<16x16xf32>
    %190 = tpu.matmul %187, %189, %cst_78 {dimension_numbers = #tpu.dot_dimension_numbers<[1], [0], [0], [1], [0, 0, 1, 1], [], []>} : vector<16x8xf32>, vector<8x16xf32>, vector<16x16xf32> -> vector<16x16xf32>
    %191 = arith.addf %190, %11 : vector<16x16xf32>
    %cst_79 = arith.constant dense<0xFF800000> : vector<16xf32>
    %192 = vector.multi_reduction <maximumf>, %191, %cst_79 [1] : vector<16x16xf32> to vector<16xf32>
    %193 = vector.shape_cast %192 : vector<16xf32> to vector<16x1xf32>
    %194 = vector.broadcast %193 : vector<16x1xf32> to vector<16x16xf32>
    %195 = arith.subf %191, %194 : vector<16x16xf32>
    %196 = math.exp %195 : vector<16x16xf32>
    %cst_80 = arith.constant dense<0.000000e+00> : vector<16xf32>
    %197 = vector.multi_reduction <add>, %196, %cst_80 [1] : vector<16x16xf32> to vector<16xf32>
    %198 = vector.shape_cast %197 : vector<16xf32> to vector<16x1xf32>
    %199 = tpu.reciprocal %198 {approx = true} : vector<16x1xf32> -> vector<16x1xf32>
    %200 = vector.broadcast %199 : vector<16x1xf32> to vector<16x16xf32>
    %201 = arith.mulf %196, %200 : vector<16x16xf32>
    %202 = vector.extract_strided_slice %163 {offsets = [0, 8], sizes = [16, 8], strides = [1, 1]} : vector<16x32xf32> to vector<16x8xf32>
    %cst_81 = arith.constant dense<0.000000e+00> : vector<16x8xf32>
    %203 = tpu.matmul %201, %202, %cst_81 {dimension_numbers = #tpu.dot_dimension_numbers<[1], [0], [0], [1], [0, 0, 1, 1], [], []>} : vector<16x16xf32>, vector<16x8xf32>, vector<16x8xf32> -> vector<16x8xf32>
    %c0_82 = arith.constant 0 : index
    %c8_83 = arith.constant 8 : index
    %204 = vector.load %arg15[%c0_82, %c8_83] : memref<16x32xf32, #tpu.memory_space<vmem>>, vector<16x8xf32>
    tpu.vector_store %arg15[%c0_82, %c8_83], %203 {strides = array<i32>} : memref<16x32xf32, #tpu.memory_space<vmem>>, vector<16x8xf32>,
    %205 = vector.extract_strided_slice %167 {offsets = [0, 16], sizes = [16, 8], strides = [1, 1]} : vector<16x32xf32> to vector<16x8xf32>
    %206 = vector.extract_strided_slice %168 {offsets = [0, 16], sizes = [16, 8], strides = [1, 1]} : vector<16x32xf32> to vector<16x8xf32>
    %207 = tpu.transpose %206, [1, 0] : vector<16x8xf32> -> vector<8x16xf32>
    %cst_84 = arith.constant dense<0.000000e+00> : vector<16x16xf32>
    %208 = tpu.matmul %205, %207, %cst_84 {dimension_numbers = #tpu.dot_dimension_numbers<[1], [0], [0], [1], [0, 0, 1, 1], [], []>} : vector<16x8xf32>, vector<8x16xf32>, vector<16x16xf32> -> vector<16x16xf32>
    %209 = arith.addf %208, %11 : vector<16x16xf32>
    %cst_85 = arith.constant dense<0xFF800000> : vector<16xf32>
    %210 = vector.multi_reduction <maximumf>, %209, %cst_85 [1] : vector<16x16xf32> to vector<16xf32>
    %211 = vector.shape_cast %210 : vector<16xf32> to vector<16x1xf32>
    %212 = vector.broadcast %211 : vector<16x1xf32> to vector<16x16xf32>
    %213 = arith.subf %209, %212 : vector<16x16xf32>
    %214 = math.exp %213 : vector<16x16xf32>
    %cst_86 = arith.constant dense<0.000000e+00> : vector<16xf32>
    %215 = vector.multi_reduction <add>, %214, %cst_86 [1] : vector<16x16xf32> to vector<16xf32>
    %216 = vector.shape_cast %215 : vector<16xf32> to vector<16x1xf32>
    %217 = tpu.reciprocal %216 {approx = true} : vector<16x1xf32> -> vector<16x1xf32>
    %218 = vector.broadcast %217 : vector<16x1xf32> to vector<16x16xf32>
    %219 = arith.mulf %214, %218 : vector<16x16xf32>
    %220 = vector.extract_strided_slice %163 {offsets = [0, 16], sizes = [16, 8], strides = [1, 1]} : vector<16x32xf32> to vector<16x8xf32>
    %cst_87 = arith.constant dense<0.000000e+00> : vector<16x8xf32>
    %221 = tpu.matmul %219, %220, %cst_87 {dimension_numbers = #tpu.dot_dimension_numbers<[1], [0], [0], [1], [0, 0, 1, 1], [], []>} : vector<16x16xf32>, vector<16x8xf32>, vector<16x8xf32> -> vector<16x8xf32>
    %c0_88 = arith.constant 0 : index
    %c16_89 = arith.constant 16 : index
    %222 = vector.load %arg15[%c0_88, %c16_89] : memref<16x32xf32, #tpu.memory_space<vmem>>, vector<16x8xf32>
    tpu.vector_store %arg15[%c0_88, %c16_89], %221 {strides = array<i32>} : memref<16x32xf32, #tpu.memory_space<vmem>>, vector<16x8xf32>,
    %223 = vector.extract_strided_slice %167 {offsets = [0, 24], sizes = [16, 8], strides = [1, 1]} : vector<16x32xf32> to vector<16x8xf32>
    %224 = vector.extract_strided_slice %168 {offsets = [0, 24], sizes = [16, 8], strides = [1, 1]} : vector<16x32xf32> to vector<16x8xf32>
    %225 = tpu.transpose %224, [1, 0] : vector<16x8xf32> -> vector<8x16xf32>
    %cst_90 = arith.constant dense<0.000000e+00> : vector<16x16xf32>
    %226 = tpu.matmul %223, %225, %cst_90 {dimension_numbers = #tpu.dot_dimension_numbers<[1], [0], [0], [1], [0, 0, 1, 1], [], []>} : vector<16x8xf32>, vector<8x16xf32>, vector<16x16xf32> -> vector<16x16xf32>
    %227 = arith.addf %226, %11 : vector<16x16xf32>
    %cst_91 = arith.constant dense<0xFF800000> : vector<16xf32>
    %228 = vector.multi_reduction <maximumf>, %227, %cst_91 [1] : vector<16x16xf32> to vector<16xf32>
    %229 = vector.shape_cast %228 : vector<16xf32> to vector<16x1xf32>
    %230 = vector.broadcast %229 : vector<16x1xf32> to vector<16x16xf32>
    %231 = arith.subf %227, %230 : vector<16x16xf32>
    %232 = math.exp %231 : vector<16x16xf32>
    %cst_92 = arith.constant dense<0.000000e+00> : vector<16xf32>
    %233 = vector.multi_reduction <add>, %232, %cst_92 [1] : vector<16x16xf32> to vector<16xf32>
    %234 = vector.shape_cast %233 : vector<16xf32> to vector<16x1xf32>
    %235 = tpu.reciprocal %234 {approx = true} : vector<16x1xf32> -> vector<16x1xf32>
    %236 = vector.broadcast %235 : vector<16x1xf32> to vector<16x16xf32>
    %237 = arith.mulf %232, %236 : vector<16x16xf32>
    %238 = vector.extract_strided_slice %163 {offsets = [0, 24], sizes = [16, 8], strides = [1, 1]} : vector<16x32xf32> to vector<16x8xf32>
    %cst_93 = arith.constant dense<0.000000e+00> : vector<16x8xf32>
    %239 = tpu.matmul %237, %238, %cst_93 {dimension_numbers = #tpu.dot_dimension_numbers<[1], [0], [0], [1], [0, 0, 1, 1], [], []>} : vector<16x16xf32>, vector<16x8xf32>, vector<16x8xf32> -> vector<16x8xf32>
    %c0_94 = arith.constant 0 : index
    %c24_95 = arith.constant 24 : index
    %240 = vector.load %arg15[%c0_94, %c24_95] : memref<16x32xf32, #tpu.memory_space<vmem>>, vector<16x8xf32>
    tpu.vector_store %arg15[%c0_94, %c24_95], %239 {strides = array<i32>} : memref<16x32xf32, #tpu.memory_space<vmem>>, vector<16x8xf32>,
    %c0_96 = arith.constant 0 : index
    %c0_97 = arith.constant 0 : index
    %241 = vector.load %arg15[%c0_96, %c0_97] : memref<16x32xf32, #tpu.memory_space<vmem>>, vector<16x32xf32>
    %c1_98 = arith.constant 1 : index
    %c0_99 = arith.constant 0 : index
    %c0_100 = arith.constant 0 : index
    %242 = vector.load %arg8[%c1_98, %c0_99, %c0_100] : memref<2x32x32xf32, #tpu.memory_space<vmem>>, vector<1x32x32xf32>
    %243 = vector.shape_cast %242 : vector<1x32x32xf32> to vector<32x32xf32>
    %cst_101 = arith.constant dense<0.000000e+00> : vector<16x32xf32>
    %244 = tpu.matmul %241, %243, %cst_101 {dimension_numbers = #tpu.dot_dimension_numbers<[1], [0], [0], [1], [0, 0, 1, 1], [], []>} : vector<16x32xf32>, vector<32x32xf32>, vector<16x32xf32> -> vector<16x32xf32>
    %245 = arith.addf %143, %244 : vector<16x32xf32>
    %c1_102 = arith.constant 1 : index
    %c0_103 = arith.constant 0 : index
    %c0_104 = arith.constant 0 : index
    %246 = vector.load %arg9[%c1_102, %c0_103, %c0_104] : memref<2x1x32xf32, #tpu.memory_space<vmem>>, vector<1x1x32xf32>
    %247 = vector.shape_cast %246 : vector<1x1x32xf32> to vector<1x32xf32>
    %248 = arith.mulf %245, %245 : vector<16x32xf32>
    %cst_105 = arith.constant dense<0.000000e+00> : vector<16xf32>
    %249 = vector.multi_reduction <add>, %248, %cst_105 [1] : vector<16x32xf32> to vector<16xf32>
    %250 = vector.shape_cast %249 : vector<16xf32> to vector<16x1xf32>
    %cst_106 = arith.constant 3.200000e+01 : f32
    %251 = vector.broadcast %cst_106 : f32 to vector<16x1xf32>
    %252 = arith.divf %250, %251 : vector<16x1xf32>
    %cst_107 = arith.constant 9.99999997E-7 : f32
    %253 = vector.broadcast %cst_107 : f32 to vector<16x1xf32>
    %254 = arith.addf %252, %253 : vector<16x1xf32>
    %255 = math.rsqrt %254 : vector<16x1xf32>
    %256 = vector.broadcast %255 : vector<16x1xf32> to vector<16x32xf32>
    %257 = arith.mulf %245, %256 : vector<16x32xf32>
    %258 = vector.broadcast %247 : vector<1x32xf32> to vector<16x32xf32>
    %259 = arith.mulf %257, %258 : vector<16x32xf32>
    %c1_108 = arith.constant 1 : index
    %c0_109 = arith.constant 0 : index
    %c0_110 = arith.constant 0 : index
    %260 = vector.load %arg10[%c1_108, %c0_109, %c0_110] : memref<2x32x128xf32, #tpu.memory_space<vmem>>, vector<1x32x128xf32>
    %261 = vector.shape_cast %260 : vector<1x32x128xf32> to vector<32x128xf32>
    %cst_111 = arith.constant dense<0.000000e+00> : vector<16x128xf32>
    %262 = tpu.matmul %259, %261, %cst_111 {dimension_numbers = #tpu.dot_dimension_numbers<[1], [0], [0], [1], [0, 0, 1, 1], [], []>} : vector<16x32xf32>, vector<32x128xf32>, vector<16x128xf32> -> vector<16x128xf32>
    %263 = vector.extract_strided_slice %262 {offsets = [0, 0], sizes = [16, 64], strides = [1, 1]} : vector<16x128xf32> to vector<16x64xf32>
    %264 = vector.extract_strided_slice %262 {offsets = [0, 64], sizes = [16, 64], strides = [1, 1]} : vector<16x128xf32> to vector<16x64xf32>
    %265 = arith.negf %263 : vector<16x64xf32>
    %266 = math.exp %265 : vector<16x64xf32>
    %cst_112 = arith.constant 1.000000e+00 : f32
    %267 = vector.broadcast %cst_112 : f32 to vector<16x64xf32>
    %268 = arith.addf %267, %266 : vector<16x64xf32>
    %269 = arith.divf %267, %268 : vector<16x64xf32>
    %270 = arith.mulf %263, %269 : vector<16x64xf32>
    %271 = arith.mulf %270, %264 : vector<16x64xf32>
    %c1_113 = arith.constant 1 : index
    %c0_114 = arith.constant 0 : index
    %c0_115 = arith.constant 0 : index
    %272 = vector.load %arg11[%c1_113, %c0_114, %c0_115] : memref<2x64x32xf32, #tpu.memory_space<vmem>>, vector<1x64x32xf32>
    %273 = vector.shape_cast %272 : vector<1x64x32xf32> to vector<64x32xf32>
    %cst_116 = arith.constant dense<0.000000e+00> : vector<16x32xf32>
    %274 = tpu.matmul %271, %273, %cst_116 {dimension_numbers = #tpu.dot_dimension_numbers<[1], [0], [0], [1], [0, 0, 1, 1], [], []>} : vector<16x64xf32>, vector<64x32xf32>, vector<16x32xf32> -> vector<16x32xf32>
    %275 = arith.addf %245, %274 : vector<16x32xf32>
    %c0_117 = arith.constant 0 : index
    %c0_118 = arith.constant 0 : index
    %276 = vector.load %arg12[%c0_117, %c0_118] : memref<1x32xf32, #tpu.memory_space<vmem>>, vector<1x32xf32>
    %277 = arith.mulf %275, %275 : vector<16x32xf32>
    %cst_119 = arith.constant dense<0.000000e+00> : vector<16xf32>
    %278 = vector.multi_reduction <add>, %277, %cst_119 [1] : vector<16x32xf32> to vector<16xf32>
    %279 = vector.shape_cast %278 : vector<16xf32> to vector<16x1xf32>
    %cst_120 = arith.constant 3.200000e+01 : f32
    %280 = vector.broadcast %cst_120 : f32 to vector<16x1xf32>
    %281 = arith.divf %279, %280 : vector<16x1xf32>
    %cst_121 = arith.constant 9.99999997E-7 : f32
    %282 = vector.broadcast %cst_121 : f32 to vector<16x1xf32>
    %283 = arith.addf %281, %282 : vector<16x1xf32>
    %284 = math.rsqrt %283 : vector<16x1xf32>
    %285 = vector.broadcast %284 : vector<16x1xf32> to vector<16x32xf32>
    %286 = arith.mulf %275, %285 : vector<16x32xf32>
    %287 = vector.broadcast %276 : vector<1x32xf32> to vector<16x32xf32>
    %288 = arith.mulf %286, %287 : vector<16x32xf32>
    %c0_122 = arith.constant 0 : index
    %c0_123 = arith.constant 0 : index
    %289 = vector.load %arg13[%c0_122, %c0_123] : memref<32x256xf32, #tpu.memory_space<vmem>>, vector<32x256xf32>
    %cst_124 = arith.constant dense<0.000000e+00> : vector<16x256xf32>
    %290 = tpu.matmul %288, %289, %cst_124 {dimension_numbers = #tpu.dot_dimension_numbers<[1], [0], [0], [1], [0, 0, 1, 1], [], []>} : vector<16x32xf32>, vector<32x256xf32>, vector<16x256xf32> -> vector<16x256xf32>
    %c0_125 = arith.constant 0 : index
    %c0_126 = arith.constant 0 : index
    %291 = vector.load %arg14[%c0_125, %c0_126] : memref<16x256xf32, #tpu.memory_space<vmem>>, vector<16x256xf32>
    tpu.vector_store %arg14[%c0_125, %c0_126], %290 {strides = array<i32>} : memref<16x256xf32, #tpu.memory_space<vmem>>, vector<16x256xf32>,
    return
  }
  func.func @transform_0(%arg0: i32) -> (i32, i32) {
    %c0_i32 = arith.constant 0 : i32
    %c0_i32_0 = arith.constant 0 : i32
    return %arg0, %c0_i32 : i32, i32
  }
  func.func @transform_1(%arg0: i32) -> (i32, i32) {
    %c0_i32 = arith.constant 0 : i32
    %c0_i32_0 = arith.constant 0 : i32
    %c0_i32_1 = arith.constant 0 : i32
    return %c0_i32, %c0_i32_0 : i32, i32
  }
  func.func @transform_2(%arg0: i32) -> (i32, i32) {
    %c0_i32 = arith.constant 0 : i32
    %c0_i32_0 = arith.constant 0 : i32
    return %arg0, %c0_i32 : i32, i32
  }
  func.func @transform_3(%arg0: i32) -> (i32, i32) {
    %c0_i32 = arith.constant 0 : i32
    %c0_i32_0 = arith.constant 0 : i32
    return %arg0, %c0_i32 : i32, i32
  }
  func.func @transform_4(%arg0: i32) -> (i32, i32) {
    %c0_i32 = arith.constant 0 : i32
    %c0_i32_0 = arith.constant 0 : i32
    %c0_i32_1 = arith.constant 0 : i32
    return %c0_i32, %c0_i32_0 : i32, i32
  }
  func.func @transform_5(%arg0: i32) -> (i32, i32, i32) {
    %c0_i32 = arith.constant 0 : i32
    %c0_i32_0 = arith.constant 0 : i32
    %c0_i32_1 = arith.constant 0 : i32
    %c0_i32_2 = arith.constant 0 : i32
    return %c0_i32, %c0_i32_0, %c0_i32_1 : i32, i32, i32
  }
  func.func @transform_6(%arg0: i32) -> (i32, i32, i32) {
    %c0_i32 = arith.constant 0 : i32
    %c0_i32_0 = arith.constant 0 : i32
    %c0_i32_1 = arith.constant 0 : i32
    %c0_i32_2 = arith.constant 0 : i32
    return %c0_i32, %c0_i32_0, %c0_i32_1 : i32, i32, i32
  }
  func.func @transform_7(%arg0: i32) -> (i32, i32, i32) {
    %c0_i32 = arith.constant 0 : i32
    %c0_i32_0 = arith.constant 0 : i32
    %c0_i32_1 = arith.constant 0 : i32
    %c0_i32_2 = arith.constant 0 : i32
    return %c0_i32, %c0_i32_0, %c0_i32_1 : i32, i32, i32
  }
  func.func @transform_8(%arg0: i32) -> (i32, i32, i32) {
    %c0_i32 = arith.constant 0 : i32
    %c0_i32_0 = arith.constant 0 : i32
    %c0_i32_1 = arith.constant 0 : i32
    %c0_i32_2 = arith.constant 0 : i32
    return %c0_i32, %c0_i32_0, %c0_i32_1 : i32, i32, i32
  }
  func.func @transform_9(%arg0: i32) -> (i32, i32, i32) {
    %c0_i32 = arith.constant 0 : i32
    %c0_i32_0 = arith.constant 0 : i32
    %c0_i32_1 = arith.constant 0 : i32
    %c0_i32_2 = arith.constant 0 : i32
    return %c0_i32, %c0_i32_0, %c0_i32_1 : i32, i32, i32
  }
  func.func @transform_10(%arg0: i32) -> (i32, i32, i32) {
    %c0_i32 = arith.constant 0 : i32
    %c0_i32_0 = arith.constant 0 : i32
    %c0_i32_1 = arith.constant 0 : i32
    %c0_i32_2 = arith.constant 0 : i32
    return %c0_i32, %c0_i32_0, %c0_i32_1 : i32, i32, i32
  }
  func.func @transform_11(%arg0: i32) -> (i32, i32) {
    %c0_i32 = arith.constant 0 : i32
    %c0_i32_0 = arith.constant 0 : i32
    %c0_i32_1 = arith.constant 0 : i32
    return %c0_i32, %c0_i32_0 : i32, i32
  }
  func.func @transform_12(%arg0: i32) -> (i32, i32) {
    %c0_i32 = arith.constant 0 : i32
    %c0_i32_0 = arith.constant 0 : i32
    %c0_i32_1 = arith.constant 0 : i32
    return %c0_i32, %c0_i32_0 : i32, i32
  }
  func.func @transform_13(%arg0: i32) -> (i32, i32) {
    %c0_i32 = arith.constant 0 : i32
    %c0_i32_0 = arith.constant 0 : i32
    return %arg0, %c0_i32 : i32, i32
  }
}

</mosaic_0001>

<llo_original>
// kernel: tile.13
$region0: #{tile.13}
  #allocation0 [shape = 's32[1]{0}', space=sflag, size = 0x4, scoped, tag = 'scoped memory for tile.13']
  %s0 = inlined_call_operand.vmem [shape: f32[8,8], index: 0, kind: input, shape index: {}]
  %s1 = inlined_call_operand.vmem [shape: f32[2,8,8,8], index: 1, kind: output, shape index: {}]
  // Predicated region
  $region2: #{tile.13} parent=0 // pred_check
    _
  $region3: #{tile.13} parent=0 // pred_check_branch
    %3 = sbr.rel (0) target = $region5
  $region4: #{tile.13} parent=0 // pred_region
    _
  $region5: #{tile.13} parent=0 // pred_fallthru
    _
  %v4 = vld [vmem:[%s0] ss:$0 sm:$0xff]
  %5 = vst [vmem:[%s1] sm:$0xff] %v4
  %s6 = scalar_lea.vmem %s1, 64
  %7 = vst [vmem:[%s6] sm:$0xff] %v4
  %s8 = scalar_lea.vmem %s0, 1
  %v9 = vld [vmem:[%s8] ss:$0 sm:$0xff]
  %s10 = scalar_lea.vmem %s1, 8
  %11 = vst [vmem:[%s10] sm:$0xff] %v9
  %s12 = scalar_lea.vmem %s1, 72
  %13 = vst [vmem:[%s12] sm:$0xff] %v9
  %s14 = scalar_lea.vmem %s0, 2
  %v15 = vld [vmem:[%s14] ss:$0 sm:$0xff]
  %s16 = scalar_lea.vmem %s1, 16
  %17 = vst [vmem:[%s16] sm:$0xff] %v15
  %s18 = scalar_lea.vmem %s1, 80
  %19 = vst [vmem:[%s18] sm:$0xff] %v15
  %s20 = scalar_lea.vmem %s0, 3
  %v21 = vld [vmem:[%s20] ss:$0 sm:$0xff]
  %s22 = scalar_lea.vmem %s1, 24
  %23 = vst [vmem:[%s22] sm:$0xff] %v21
  %s24 = scalar_lea.vmem %s1, 88
  %25 = vst [vmem:[%s24] sm:$0xff] %v21
  %s26 = scalar_lea.vmem %s0, 4
  %v27 = vld [vmem:[%s26] ss:$0 sm:$0xff]
  %s28 = scalar_lea.vmem %s1, 32
  %29 = vst [vmem:[%s28] sm:$0xff] %v27
  %s30 = scalar_lea.vmem %s1, 96
  %31 = vst [vmem:[%s30] sm:$0xff] %v27
  %s32 = scalar_lea.vmem %s0, 5
  %v33 = vld [vmem:[%s32] ss:$0 sm:$0xff]
  %s34 = scalar_lea.vmem %s1, 40
  %35 = vst [vmem:[%s34] sm:$0xff] %v33
  %s36 = scalar_lea.vmem %s1, 104
  %37 = vst [vmem:[%s36] sm:$0xff] %v33
  %s38 = scalar_lea.vmem %s0, 6
  %v39 = vld [vmem:[%s38] ss:$0 sm:$0xff]
  %s40 = scalar_lea.vmem %s1, 48
  %41 = vst [vmem:[%s40] sm:$0xff] %v39
  %s42 = scalar_lea.vmem %s1, 112
  %43 = vst [vmem:[%s42] sm:$0xff] %v39
  %s44 = scalar_lea.vmem %s0, 7
  %v45 = vld [vmem:[%s44] ss:$0 sm:$0xff]
  %s46 = scalar_lea.vmem %s1, 56
  %47 = vst [vmem:[%s46] sm:$0xff] %v45
  %s48 = scalar_lea.vmem %s1, 120
  %49 = vst [vmem:[%s48] sm:$0xff] %v45

// kernel: tile.14
$region0: #{tile.14}
  %s0 = inlined_call_operand.vmem [shape: f32[2,8,8,8], index: 0, kind: input, shape index: {}]
  %s1 = inlined_call_operand.vmem [shape: f32[16,64], index: 1, kind: output, shape index: {}]
  %v2 = vld [vmem:[%s0] ss:$8 sm:$0xf]
  %v3 = vld [vmem:[%s0] ss:$8 sm:$0xf0]
  %vm4 = vcmask 1047556
  %v5 = vsel %vm4, %v3, %v2
  %vm6 = vcmask 64512
  %7 = vst.msk [vmem:[%s1] sm:$0xff] %vm6, %v5
  %s8 = scalar_lea.vmem %s0, 64
  %v9 = vld [vmem:[%s8] ss:$8 sm:$0xf]
  %s10 = scalar_lea.vmem %s0, 64
  %v11 = vld [vmem:[%s10] ss:$8 sm:$0xf0]
  %vm12 = vcmask 1047556
  %v13 = vsel %vm12, %v11, %v9
  %vm14 = vcmask 64512
  %s15 = scalar_lea.vmem %s1, 8
  %16 = vst.msk [vmem:[%s15] sm:$0xff] %vm14, %v13
  %s17 = scalar_lea.vmem %s0, 7
  %v18 = vld [vmem:[%s17] ss:$8 sm:$0xf]
  %s19 = scalar_lea.vmem %s0, 7
  %v20 = vld [vmem:[%s19] ss:$8 sm:$0xf0]
  %vm21 = vcmask 1047556
  %v22 = vsel %vm21, %v20, %v18
  %23 = vrot.lane.b32.xlu0 %v22, 56
  %v24 = vpop.permute.xlu0 %23
  %vm25 = vcmask 523712
  %26 = vst.msk [vmem:[%s1] sm:$0xff] %vm25, %v24
  %s27 = scalar_lea.vmem %s0, 71
  %v28 = vld [vmem:[%s27] ss:$8 sm:$0xf]
  %s29 = scalar_lea.vmem %s0, 71
  %v30 = vld [vmem:[%s29] ss:$8 sm:$0xf0]
  %vm31 = vcmask 1047556
  %v32 = vsel %vm31, %v30, %v28
  %33 = vrot.lane.b32.xlu0 %v32, 56
  %v34 = vpop.permute.xlu0 %33
  %vm35 = vcmask 523712
  %s36 = scalar_lea.vmem %s1, 8
  %37 = vst.msk [vmem:[%s36] sm:$0xff] %vm35, %v34
  %s38 = scalar_lea.vmem %s0, 6
  %v39 = vld [vmem:[%s38] ss:$8 sm:$0xf]
  %s40 = scalar_lea.vmem %s0, 6
  %v41 = vld [vmem:[%s40] ss:$8 sm:$0xf0]
  %vm42 = vcmask 1047556
  %v43 = vsel %vm42, %v41, %v39
  %44 = vrot.lane.b32.xlu0 %v43, 48
  %v45 = vpop.permute.xlu0 %44
  %vm46 = vcmask 458112
  %47 = vst.msk [vmem:[%s1] sm:$0xff] %vm46, %v45
  %s48 = scalar_lea.vmem %s0, 70
  %v49 = vld [vmem:[%s48] ss:$8 sm:$0xf]
  %s50 = scalar_lea.vmem %s0, 70
  %v51 = vld [vmem:[%s50] ss:$8 sm:$0xf0]
  %vm52 = vcmask 1047556
  %v53 = vsel %vm52, %v51, %v49
  %54 = vrot.lane.b32.xlu0 %v53, 48
  %v55 = vpop.permute.xlu0 %54
  %vm56 = vcmask 458112
  %s57 = scalar_lea.vmem %s1, 8
  %58 = vst.msk [vmem:[%s57] sm:$0xff] %vm56, %v55
  %s59 = scalar_lea.vmem %s0, 5
  %v60 = vld [vmem:[%s59] ss:$8 sm:$0xf]
  %s61 = scalar_lea.vmem %s0, 5
  %v62 = vld [vmem:[%s61] ss:$8 sm:$0xf0]
  %vm63 = vcmask 1047556
  %v64 = vsel %vm63, %v62, %v60
  %65 = vrot.lane.b32.xlu0 %v64, 40
  %v66 = vpop.permute.xlu0 %65
  %vm67 = vcmask 392512
  %68 = vst.msk [vmem:[%s1] sm:$0xff] %vm67, %v66
  %s69 = scalar_lea.vmem %s0, 69
  %v70 = vld [vmem:[%s69] ss:$8 sm:$0xf]
  %s71 = scalar_lea.vmem %s0, 69
  %v72 = vld [vmem:[%s71] ss:$8 sm:$0xf0]
  %vm73 = vcmask 1047556
  %v74 = vsel %vm73, %v72, %v70
  %75 = vrot.lane.b32.xlu0 %v74, 40
  %v76 = vpop.permute.xlu0 %75
  %vm77 = vcmask 392512
  %s78 = scalar_lea.vmem %s1, 8
  %79 = vst.msk [vmem:[%s78] sm:$0xff] %vm77, %v76
  %s80 = scalar_lea.vmem %s0, 4
  %v81 = vld [vmem:[%s80] ss:$8 sm:$0xf]
  %s82 = scalar_lea.vmem %s0, 4
  %v83 = vld [vmem:[%s82] ss:$8 sm:$0xf0]
  %vm84 = vcmask 1047556
  %v85 = vsel %vm84, %v83, %v81
  %86 = vrot.lane.b32.xlu0 %v85, 32
  %v87 = vpop.permute.xlu0 %86
  %vm88 = vcmask 326912
  %89 = vst.msk [vmem:[%s1] sm:$0xff] %vm88, %v87
  %s90 = scalar_lea.vmem %s0, 68
  %v91 = vld [vmem:[%s90] ss:$8 sm:$0xf]
  %s92 = scalar_lea.vmem %s0, 68
  %v93 = vld [vmem:[%s92] ss:$8 sm:$0xf0]
  %vm94 = vcmask 1047556
  %v95 = vsel %vm94, %v93, %v91
  %96 = vrot.lane.b32.xlu0 %v95, 32
  %v97 = vpop.permute.xlu0 %96
  %vm98 = vcmask 326912
  %s99 = scalar_lea.vmem %s1, 8
  %100 = vst.msk [vmem:[%s99] sm:$0xff] %vm98, %v97
  %s101 = scalar_lea.vmem %s0, 3
  %v102 = vld [vmem:[%s101] ss:$8 sm:$0xf]
  %s103 = scalar_lea.vmem %s0, 3
  %v104 = vld [vmem:[%s103] ss:$8 sm:$0xf0]
  %vm105 = vcmask 1047556
  %v106 = vsel %vm105, %v104, %v102
  %107 = vrot.lane.b32.xlu0 %v106, 24
  %v108 = vpop.permute.xlu0 %107
  %vm109 = vcmask 261312
  %110 = vst.msk [vmem:[%s1] sm:$0xff] %vm109, %v108
  %s111 = scalar_lea.vmem %s0, 67
  %v112 = vld [vmem:[%s111] ss:$8 sm:$0xf]
  %s113 = scalar_lea.vmem %s0, 67
  %v114 = vld [vmem:[%s113] ss:$8 sm:$0xf0]
  %vm115 = vcmask 1047556
  %v116 = vsel %vm115, %v114, %v112
  %117 = vrot.lane.b32.xlu0 %v116, 24
  %v118 = vpop.permute.xlu0 %117
  %vm119 = vcmask 261312
  %s120 = scalar_lea.vmem %s1, 8
  %121 = vst.msk [vmem:[%s120] sm:$0xff] %vm119, %v118
  %s122 = scalar_lea.vmem %s0, 2
  %v123 = vld [vmem:[%s122] ss:$8 sm:$0xf]
  %s124 = scalar_lea.vmem %s0, 2
  %v125 = vld [vmem:[%s124] ss:$8 sm:$0xf0]
  %vm126 = vcmask 1047556
  %v127 = vsel %vm126, %v125, %v123
  %128 = vrot.lane.b32.xlu0 %v127, 16
  %v129 = vpop.permute.xlu0 %128
  %vm130 = vcmask 195712
  %131 = vst.msk [vmem:[%s1] sm:$0xff] %vm130, %v129
  %s132 = scalar_lea.vmem %s0, 66
  %v133 = vld [vmem:[%s132] ss:$8 sm:$0xf]
  %s134 = scalar_lea.vmem %s0, 66
  %v135 = vld [vmem:[%s134] ss:$8 sm:$0xf0]
  %vm136 = vcmask 1047556
  %v137 = vsel %vm136, %v135, %v133
  %138 = vrot.lane.b32.xlu0 %v137, 16
  %v139 = vpop.permute.xlu0 %138
  %vm140 = vcmask 195712
  %s141 = scalar_lea.vmem %s1, 8
  %142 = vst.msk [vmem:[%s141] sm:$0xff] %vm140, %v139
  %s143 = scalar_lea.vmem %s0, 1
  %v144 = vld [vmem:[%s143] ss:$8 sm:$0xf]
  %s145 = scalar_lea.vmem %s0, 1
  %v146 = vld [vmem:[%s145] ss:$8 sm:$0xf0]
  %vm147 = vcmask 1047556
  %v148 = vsel %vm147, %v146, %v144
  %149 = vrot.lane.b32.xlu0 %v148, 8
  %v150 = vpop.permute.xlu0 %149
  %vm151 = vcmask 130112
  %152 = vst.msk [vmem:[%s1] sm:$0xff] %vm151, %v150
  %s153 = scalar_lea.vmem %s0, 65
  %v154 = vld [vmem:[%s153] ss:$8 sm:$0xf]
  %s155 = scalar_lea.vmem %s0, 65
  %v156 = vld [vmem:[%s155] ss:$8 sm:$0xf0]
  %vm157 = vcmask 1047556
  %v158 = vsel %vm157, %v156, %v154
  %159 = vrot.lane.b32.xlu0 %v158, 8
  %v160 = vpop.permute.xlu0 %159
  %vm161 = vcmask 130112
  %s162 = scalar_lea.vmem %s1, 8
  %163 = vst.msk [vmem:[%s162] sm:$0xff] %vm161, %v160

// kernel: ava_forward.1
$region0: #{ava_forward.1}
  #allocation0 [shape = 'u32[]', space=smem, size = 0x4, offset = 0x4, fixed_abs, tag = 'smem constant byte address 0x4 - core index']
  #allocation1 [shape = 'u32[144,128]{1,0:T(1,128)}', space=vmem, size = 0x12000, scoped, tag = 'internal scratch']
  #allocation2 [shape = 'f32[16,32]{1,0:T(8,128)}', space=vmem, size = 0x2000, scoped, tag = 'scratch operand']
  %s0 = inlined_call_operand.vmem [shape: s32[16,1], index: 0, kind: input, shape index: {}]
  %s1 = inlined_call_operand.vmem [shape: f32[256,32], index: 1, kind: input, shape index: {}]
  %s2 = inlined_call_operand.vmem [shape: f32[16,64], index: 2, kind: input, shape index: {}]
  %s3 = inlined_call_operand.vmem [shape: f32[16,64], index: 3, kind: input, shape index: {}]
  %s4 = inlined_call_operand.vmem [shape: f32[16,16], index: 4, kind: input, shape index: {}]
  %s5 = inlined_call_operand.vmem [shape: f32[2,1,32], index: 5, kind: input, shape index: {}]
  %s6 = inlined_call_operand.vmem [shape: f32[2,32,160], index: 6, kind: input, shape index: {}]
  %s7 = inlined_call_operand.vmem [shape: f32[2,32,32], index: 7, kind: input, shape index: {}]
  %s8 = inlined_call_operand.vmem [shape: f32[2,1,32], index: 8, kind: input, shape index: {}]
  %s9 = inlined_call_operand.vmem [shape: f32[2,32,128], index: 9, kind: input, shape index: {}]
  %s10 = inlined_call_operand.vmem [shape: f32[2,64,32], index: 10, kind: input, shape index: {}]
  %s11 = inlined_call_operand.vmem [shape: f32[1,32], index: 11, kind: input, shape index: {}]
  %s12 = inlined_call_operand.vmem [shape: f32[32,256], index: 12, kind: input, shape index: {}]
  %s13 = inlined_call_operand.hbm [shape: f32[16,256], index: 13, kind: output, shape index: {}]
  %s14 = sld [smem:[#allocation0]]
  $region62: #{ava_forward.1} parent=0
    _
  %s16 = ssub.s32 1, %s14
  %s17 = scalar_select 0, %s16, %s14
  $region1: #{ava_forward.1} parent=0
    #allocation3 [shape = 'u8[16384]{0}', space=vmem, size = 0x4000, scoped, tag = 'output window, operand 0, single buffered']
    #allocation4 [shape = 's32[1]{0}', space=sflag, size = 0x4, scoped, tag = 'scoped memory for ava_forward.1']
    %18 = vsyncpa [#allocation4], 0
    // Predicated region
    $region2: #{ava_forward.1} parent=1 // pred_check
      _
    $region3: #{ava_forward.1} parent=1 // pred_check_branch
      %20 = sbr.rel (0) target = $region5
    $region4: #{ava_forward.1} parent=1 // pred_region
      _
    $region5: #{ava_forward.1} parent=1 // pred_fallthru
      _
    // Predicated region
    $region6: #{ava_forward.1} parent=1 // pred_check
      _
    $region7: #{ava_forward.1} parent=1 // pred_check_branch
      %22 = sbr.rel (0) target = $region9
    $region8: #{ava_forward.1} parent=1 // pred_region
      _
    $region9: #{ava_forward.1} parent=1 // pred_fallthru
      _
    // Predicated region
    $region10: #{ava_forward.1} parent=1 // pred_check
      _
    $region11: #{ava_forward.1} parent=1 // pred_check_branch
      %24 = sbr.rel (0) target = $region13
    $region12: #{ava_forward.1} parent=1 // pred_region
      _
    $region13: #{ava_forward.1} parent=1 // pred_fallthru
      _
    // Predicated region
    $region14: #{ava_forward.1} parent=1 // pred_check
      _
    $region15: #{ava_forward.1} parent=1 // pred_check_branch
      %26 = sbr.rel (0) target = $region17
    $region16: #{ava_forward.1} parent=1 // pred_region
      _
    $region17: #{ava_forward.1} parent=1 // pred_fallthru
      _
    // Predicated region
    $region18: #{ava_forward.1} parent=1 // pred_check
      _
    $region19: #{ava_forward.1} parent=1 // pred_check_branch
      %28 = sbr.rel (0) target = $region21
    $region20: #{ava_forward.1} parent=1 // pred_region
      _
    $region21: #{ava_forward.1} parent=1 // pred_fallthru
      _
    // Predicated region
    $region22: #{ava_forward.1} parent=1 // pred_check
      _
    $region23: #{ava_forward.1} parent=1 // pred_check_branch
      %30 = sbr.rel (0) target = $region25
    $region24: #{ava_forward.1} parent=1 // pred_region
      _
    $region25: #{ava_forward.1} parent=1 // pred_fallthru
      _
    // Predicated region
    $region26: #{ava_forward.1} parent=1 // pred_check
      _
    $region27: #{ava_forward.1} parent=1 // pred_check_branch
      %32 = sbr.rel (0) target = $region29
    $region28: #{ava_forward.1} parent=1 // pred_region
      _
    $region29: #{ava_forward.1} parent=1 // pred_fallthru
      _
    // Predicated region
    $region30: #{ava_forward.1} parent=1 // pred_check
      _
    $region31: #{ava_forward.1} parent=1 // pred_check_branch
      %34 = sbr.rel (0) target = $region33
    $region32: #{ava_forward.1} parent=1 // pred_region
      _
    $region33: #{ava_forward.1} parent=1 // pred_fallthru
      _
    // Predicated region
    $region34: #{ava_forward.1} parent=1 // pred_check
      _
    $region35: #{ava_forward.1} parent=1 // pred_check_branch
      %36 = sbr.rel (0) target = $region37
    $region36: #{ava_forward.1} parent=1 // pred_region
      _
    $region37: #{ava_forward.1} parent=1 // pred_fallthru
      _
    // Predicated region
    $region38: #{ava_forward.1} parent=1 // pred_check
      _
    $region39: #{ava_forward.1} parent=1 // pred_check_branch
      %38 = sbr.rel (0) target = $region41
    $region40: #{ava_forward.1} parent=1 // pred_region
      _
    $region41: #{ava_forward.1} parent=1 // pred_fallthru
      _
    // Predicated region
    $region42: #{ava_forward.1} parent=1 // pred_check
      _
    $region43: #{ava_forward.1} parent=1 // pred_check_branch
      %40 = sbr.rel (0) target = $region45
    $region44: #{ava_forward.1} parent=1 // pred_region
      _
    $region45: #{ava_forward.1} parent=1 // pred_fallthru
      _
    // Predicated region
    $region46: #{ava_forward.1} parent=1 // pred_check
      _
    $region47: #{ava_forward.1} parent=1 // pred_check_branch
      %42 = sbr.rel (0) target = $region49
    $region48: #{ava_forward.1} parent=1 // pred_region
      _
    $region49: #{ava_forward.1} parent=1 // pred_fallthru
      _
    // Predicated region
    $region50: #{ava_forward.1} parent=1 // pred_check
      _
    $region51: #{ava_forward.1} parent=1 // pred_check_branch
      %44 = sbr.rel (0) target = $region53
    $region52: #{ava_forward.1} parent=1 // pred_region
      _
    $region53: #{ava_forward.1} parent=1 // pred_fallthru
      _
    %v45 = vld [vmem:[%s0] sm:$0xff]
    %v46 = vld [vmem:[%s0 + $0x8] sm:$0xff]
    %v47 = vlaneseq
    %v48 = vand.u32 %v47, 127
    %v49 = vadd.s32 %v48, 128
    %50 = vset.pattern.permute.xlu0 0
    %51 = vperm.xlu0 %50, %v45
    %v52 = vpop.permute.xlu0 %51
    %53 = vset.pattern.permute.xlu0 0
    %54 = vperm.xlu0 %53, %v46
    %v55 = vpop.permute.xlu0 %54
    %vm56 = vcmp.eq.s32.totalorder %v48, %v52
    %vm57 = vcmp.eq.s32.totalorder %v49, %v52
    %vm58 = vcmp.eq.s32.totalorder %v48, %v55
    %vm59 = vcmp.eq.s32.totalorder %v49, %v55
    %v60 = vsel %vm56, 1.0, 0.0
    %v61 = vsel %vm57, 1.0, 0.0
    %v62 = vsel %vm58, 1.0, 0.0
    %v63 = vsel %vm59, 1.0, 0.0
    %v64 = vld [vmem:[%s1] sm:$0xff]
    %v65 = vld [vmem:[%s1 + $0x8] sm:$0xff]
    %v66 = vld [vmem:[%s1 + $0x10] sm:$0xff]
    %v67 = vld [vmem:[%s1 + $0x18] sm:$0xff]
    %v68 = vld [vmem:[%s1 + $0x20] sm:$0xff]
    %v69 = vld [vmem:[%s1 + $0x28] sm:$0xff]
    %v70 = vld [vmem:[%s1 + $0x30] sm:$0xff]
    %v71 = vld [vmem:[%s1 + $0x38] sm:$0xff]
    %v72 = vld [vmem:[%s1 + $0x40] sm:$0xff]
    %v73 = vld [vmem:[%s1 + $0x48] sm:$0xff]
    %v74 = vld [vmem:[%s1 + $0x50] sm:$0xff]
    %v75 = vld [vmem:[%s1 + $0x58] sm:$0xff]
    %v76 = vld [vmem:[%s1 + $0x60] sm:$0xff]
    %v77 = vld [vmem:[%s1 + $0x68] sm:$0xff]
    %v78 = vld [vmem:[%s1 + $0x70] sm:$0xff]
    %v79 = vld [vmem:[%s1 + $0x78] sm:$0xff]
    %v80 = vld [vmem:[%s1 + $0x80] sm:$0xff]
    %v81 = vld [vmem:[%s1 + $0x88] sm:$0xff]
    %v82 = vld [vmem:[%s1 + $0x90] sm:$0xff]
    %v83 = vld [vmem:[%s1 + $0x98] sm:$0xff]
    %v84 = vld [vmem:[%s1 + $0xa0] sm:$0xff]
    %v85 = vld [vmem:[%s1 + $0xa8] sm:$0xff]
    %v86 = vld [vmem:[%s1 + $0xb0] sm:$0xff]
    %v87 = vld [vmem:[%s1 + $0xb8] sm:$0xff]
    %v88 = vld [vmem:[%s1 + $0xc0] sm:$0xff]
    %v89 = vld [vmem:[%s1 + $0xc8] sm:$0xff]
    %v90 = vld [vmem:[%s1 + $0xd0] sm:$0xff]
    %v91 = vld [vmem:[%s1 + $0xd8] sm:$0xff]
    %v92 = vld [vmem:[%s1 + $0xe0] sm:$0xff]
    %v93 = vld [vmem:[%s1 + $0xe8] sm:$0xff]
    %v94 = vld [vmem:[%s1 + $0xf0] sm:$0xff]
    %v95 = vld [vmem:[%s1 + $0xf8] sm:$0xff]
    %96 = vmatprep.subr.mxu0 0.0
    %97 = vmatpush1.msra.mxu0 %v64
    %98 = vmatprep.subr.mxu0 0.0
    %99 = vmatpush1.msra.mxu0 %v65
    %100 = vmatprep.subr.mxu0 0.0
    %101 = vmatpush1.msra.mxu0 %v66
    %102 = vmatprep.subr.mxu0 0.0
    %103 = vmatpush1.msra.mxu0 %v67
    %104 = vmatprep.subr.mxu0 0.0
    %105 = vmatpush1.msra.mxu0 %v68
    %106 = vmatprep.subr.mxu0 0.0
    %107 = vmatpush1.msra.mxu0 %v69
    %108 = vmatprep.subr.mxu0 0.0
    %109 = vmatpush1.msra.mxu0 %v70
    %110 = vmatprep.subr.mxu0 0.0
    %111 = vmatpush1.msra.mxu0 %v71
    %112 = vmatprep.subr.mxu0 0.0
    %113 = vmatpush1.msra.mxu0 %v72
    %114 = vmatprep.subr.mxu0 0.0
    %115 = vmatpush1.msra.mxu0 %v73
    %116 = vmatprep.subr.mxu0 0.0
    %117 = vmatpush1.msra.mxu0 %v74
    %118 = vmatprep.subr.mxu0 0.0
    %119 = vmatpush1.msra.mxu0 %v75
    %120 = vmatprep.subr.mxu0 0.0
    %121 = vmatpush1.msra.mxu0 %v76
    %122 = vmatprep.subr.mxu0 0.0
    %123 = vmatpush1.msra.mxu0 %v77
    %124 = vmatprep.subr.mxu0 0.0
    %125 = vmatpush1.msra.mxu0 %v78
    %126 = vmatprep.subr.mxu0 0.0
    %127 = vmatpush1.msra.mxu0 %v79
    %128 = vmatprep.subr.mxu0 0.0
    %129 = vmatpush1.msra.mxu0 %v80
    %130 = vmatprep.subr.mxu0 0.0
    %131 = vmatpush1.msra.mxu0 %v81
    %132 = vmatprep.subr.mxu0 0.0
    %133 = vmatpush1.msra.mxu0 %v82
    %134 = vmatprep.subr.mxu0 0.0
    %135 = vmatpush1.msra.mxu0 %v83
    %136 = vmatprep.subr.mxu0 0.0
    %137 = vmatpush1.msra.mxu0 %v84
    %138 = vmatprep.subr.mxu0 0.0
    %139 = vmatpush1.msra.mxu0 %v85
    %140 = vmatprep.subr.mxu0 0.0
    %141 = vmatpush1.msra.mxu0 %v86
    %142 = vmatprep.subr.mxu0 0.0
    %143 = vmatpush1.msra.mxu0 %v87
    %144 = vmatprep.subr.mxu0 0.0
    %145 = vmatpush1.msra.mxu0 %v88
    %146 = vmatprep.subr.mxu0 0.0
    %147 = vmatpush1.msra.mxu0 %v89
    %148 = vmatprep.subr.mxu0 0.0
    %149 = vmatpush1.msra.mxu0 %v90
    %150 = vmatprep.subr.mxu0 0.0
    %151 = vmatpush1.msra.mxu0 %v91
    %152 = vmatprep.subr.mxu0 0.0
    %153 = vmatpush1.msra.mxu0 %v92
    %154 = vmatprep.subr.mxu0 0.0
    %155 = vmatpush1.msra.mxu0 %v93
    %156 = vmatprep.subr.mxu0 0.0
    %157 = vmatpush1.msra.mxu0 %v94
    %158 = vmatprep.subr.mxu0 0.0
    %159 = vmatpush1.msra.mxu0 %v95
    %160 = vmatprep.mubr.f32.mxu0 %v61
    %161 = vmatmul.mubr.f32.gmra.mrb[0].mxu0 %v60
    %v162 = vpop.f32.mrb[0].mxu0
    %v163 = vadd.f32 0.0, %v162
    %v164 = vpop.f32.mrb[0].mxu0
    %165 = vmatprep.mubr.f32.mxu0 %v63
    %166 = vmatmul.mubr.f32.gmra.mrb[0].mxu0 %v62
    %v167 = vpop.f32.mrb[0].mxu0
    %v168 = vadd.f32 0.0, %v167
    %v169 = vpop.f32.mrb[0].mxu0
    %170 = vdwg.mxu0
    %v171 = vld [vmem:[%s2] sm:$0xff]
    %v172 = vld [vmem:[%s2 + $0x8] sm:$0xff]
    %v173 = vld [vmem:[%s3] sm:$0xff]
    %v174 = vld [vmem:[%s3 + $0x8] sm:$0xff]
    %v175 = vld [vmem:[%s4] sm:$0xff]
    %v176 = vld [vmem:[%s4 + $0x8] sm:$0xff]
    %v177 = vld [vmem:[%s5] sm:$0x1]
    %v178 = vmul.f32 %v163, %v163
    %v179 = vmul.f32 %v168, %v168
    %vm180 = vcmask 261120
    %v181 = vsel %vm180, %v178, 0.0
    %182 = vadd.xlane.f32.xlu0 %v181
    %v183 = vpop.xlane.xlu0 %182
    %v184 = vsel %vm180, %v179, 0.0
    %185 = vadd.xlane.f32.xlu0 %v184
    %v186 = vpop.xlane.xlu0 %185
    %v187 = vrcp.pop 32.0
    %v188 = vmul.f32 %v183, %v187
    %v189 = vmul.f32 %v186, %v187
    %v190 = vadd.f32 %v188, 1e-06
    %v191 = vadd.f32 %v189, 1e-06
    %v192 = vrsqrt.pop %v190
    %v193 = vrsqrt.pop %v191
    %v194 = vmul.f32 %v163, %v192
    %v195 = vmul.f32 %v168, %v193
    %v197 = vlaneseq
    %v198 = vshrl.u32 %v197, 7
    %v199 = vsub.s32 0, %v198
    %v200 = vrot.slane %v177, %v199
    %v202 = vmul.f32 %v194, %v200
    %v203 = vmul.f32 %v195, %v200
    %v204 = vld [vmem:[%s6] sm:$0xff]
    %v205 = vld [vmem:[%s6 + $0x8] sm:$0xff]
    %v206 = vld [vmem:[%s6 + $0x10] sm:$0xff]
    %v207 = vld [vmem:[%s6 + $0x18] sm:$0xff]
    %v208 = vld [vmem:[%s6 + $0x20] sm:$0xff]
    %v209 = vld [vmem:[%s6 + $0x28] sm:$0xff]
    %v210 = vld [vmem:[%s6 + $0x30] sm:$0xff]
    %v211 = vld [vmem:[%s6 + $0x38] sm:$0xff]
    %v213 = vsel %vm180, %v202, 0
    %v216 = vsel %vm180, %v203, 0
    %218 = vmatprep.subr.mxu0 %v205
    %219 = vmatpush1.msra.mxu0 %v204
    %220 = vmatprep.subr.mxu0 %v207
    %221 = vmatpush1.msra.mxu0 %v206
    %222 = vmatprep.subr.mxu0 %v209
    %223 = vmatpush1.msra.mxu0 %v208
    %224 = vmatprep.subr.mxu0 %v211
    %225 = vmatpush1.msra.mxu0 %v210
    %226 = vmatprep.subr.mxu0 0.0
    %227 = vmatpush1.msra.mxu0 0.0
    %228 = vmatprep.subr.mxu0 0.0
    %229 = vmatpush1.msra.mxu0 0.0
    %230 = vmatprep.subr.mxu0 0.0
    %231 = vmatpush1.msra.mxu0 0.0
    %232 = vmatprep.subr.mxu0 0.0
    %233 = vmatpush1.msra.mxu0 0.0
    %234 = vmatprep.subr.mxu0 0.0
    %235 = vmatpush1.msra.mxu0 0.0
    %236 = vmatprep.subr.mxu0 0.0
    %237 = vmatpush1.msra.mxu0 0.0
    %238 = vmatprep.subr.mxu0 0.0
    %239 = vmatpush1.msra.mxu0 0.0
    %240 = vmatprep.subr.mxu0 0.0
    %241 = vmatpush1.msra.mxu0 0.0
    %242 = vmatprep.subr.mxu0 0.0
    %243 = vmatpush1.msra.mxu0 0.0
    %244 = vmatprep.subr.mxu0 0.0
    %245 = vmatpush1.msra.mxu0 0.0
    %246 = vmatprep.subr.mxu0 0.0
    %247 = vmatpush1.msra.mxu0 0.0
    %248 = vmatprep.subr.mxu0 0.0
    %249 = vmatpush1.msra.mxu0 0.0
    %250 = vmatprep.subr.mxu0 0.0
    %251 = vmatpush1.msra.mxu0 0.0
    %252 = vmatprep.subr.mxu0 0.0
    %253 = vmatpush1.msra.mxu0 0.0
    %254 = vmatprep.subr.mxu0 0.0
    %255 = vmatpush1.msra.mxu0 0.0
    %256 = vmatprep.subr.mxu0 0.0
    %257 = vmatpush1.msra.mxu0 0.0
    %258 = vmatprep.subr.mxu0 0.0
    %259 = vmatpush1.msra.mxu0 0.0
    %260 = vmatprep.subr.mxu0 0.0
    %261 = vmatpush1.msra.mxu0 0.0
    %262 = vmatprep.subr.mxu0 0.0
    %263 = vmatpush1.msra.mxu0 0.0
    %264 = vmatprep.subr.mxu0 0.0
    %265 = vmatpush1.msra.mxu0 0.0
    %266 = vmatprep.subr.mxu0 0.0
    %267 = vmatpush1.msra.mxu0 0.0
    %268 = vmatprep.subr.mxu0 0.0
    %269 = vmatpush1.msra.mxu0 0.0
    %270 = vmatprep.subr.mxu0 0.0
    %271 = vmatpush1.msra.mxu0 0.0
    %272 = vmatprep.subr.mxu0 0.0
    %273 = vmatpush1.msra.mxu0 0.0
    %274 = vmatprep.subr.mxu0 0.0
    %275 = vmatpush1.msra.mxu0 0.0
    %276 = vmatprep.subr.mxu0 0.0
    %277 = vmatpush1.msra.mxu0 0.0
    %278 = vmatprep.subr.mxu0 0.0
    %279 = vmatpush1.msra.mxu0 0.0
    %280 = vmatprep.subr.mxu0 0.0
    %281 = vmatpush1.msra.mxu0 0.0
    %282 = vmatprep.mubr.f32.mxu0 0.0
    %283 = vmatmul.mubr.f32.gmra.mrb[0].mxu0 %v213
    %v284 = vpop.f32.mrb[0].mxu0
    %v285 = vadd.f32 0.0, %v284
    %v286 = vpop.f32.mrb[0].mxu0
    %v287 = vadd.f32 0.0, %v286
    %288 = vmatprep.mubr.f32.mxu0 0.0
    %289 = vmatmul.mubr.f32.gmra.mrb[0].mxu0 %v216
    %v290 = vpop.f32.mrb[0].mxu0
    %v291 = vadd.f32 0.0, %v290
    %v292 = vpop.f32.mrb[0].mxu0
    %v293 = vadd.f32 0.0, %v292
    %294 = vdwg.mxu0
    %v295 = vmul.f32 %v285, %v171
    %v296 = vmul.f32 %v291, %v172
    %299 = vrot.lane.b32.xlu0 %v173, 64
    %v300 = vpop.permute.xlu0 %299
    %301 = vrot.lane.b32.xlu0 %v174, 64
    %v302 = vpop.permute.xlu0 %301
    %v305 = vmul.f32 %v285, %v300
    %v306 = vmul.f32 %v291, %v302
    %309 = vrot.lane.b32.xlu0 %v305, 64
    %v310 = vpop.permute.xlu0 %309
    %311 = vrot.lane.b32.xlu0 %v306, 64
    %v312 = vpop.permute.xlu0 %311
    %v315 = vadd.f32 %v295, %v310
    %v316 = vadd.f32 %v296, %v312
    %319 = vrot.lane.b32.xlu0 %v315, 96
    %v320 = vpop.permute.xlu0 %319
    %321 = vrot.lane.b32.xlu0 %v316, 96
    %v322 = vpop.permute.xlu0 %321
    %vm323 = vcmask 64512
    %v324 = vsel %vm323, %v315, 0
    %v326 = vsel %vm323, %v316, 0
    %v328 = vsel %vm323, %v320, 0
    %v330 = vsel %vm323, %v322, 0
    %332 = vmatprep.subr.mxu0 0.0
    %333 = vmatpush1.xpose.msra.mxu0 %v328
    %334 = vmatprep.subr.mxu0 0.0
    %335 = vmatpush1.xpose.msra.mxu0 %v330
    %336 = vmatprep.subr.mxu0 0.0
    %337 = vmatpush1.xpose.msra.mxu0 0.0
    %338 = vmatprep.subr.mxu0 0.0
    %339 = vmatpush1.xpose.msra.mxu0 0.0
    %340 = vmatprep.subr.mxu0 0.0
    %341 = vmatpush1.xpose.msra.mxu0 0.0
    %342 = vmatprep.subr.mxu0 0.0
    %343 = vmatpush1.xpose.msra.mxu0 0.0
    %344 = vmatprep.subr.mxu0 0.0
    %345 = vmatpush1.xpose.msra.mxu0 0.0
    %346 = vmatprep.subr.mxu0 0.0
    %347 = vmatpush1.xpose.msra.mxu0 0.0
    %348 = vmatprep.subr.mxu0 0.0
    %349 = vmatpush1.xpose.msra.mxu0 0.0
    %350 = vmatprep.subr.mxu0 0.0
    %351 = vmatpush1.xpose.msra.mxu0 0.0
    %352 = vmatprep.subr.mxu0 0.0
    %353 = vmatpush1.xpose.msra.mxu0 0.0
    %354 = vmatprep.subr.mxu0 0.0
    %355 = vmatpush1.xpose.msra.mxu0 0.0
    %356 = vmatprep.subr.mxu0 0.0
    %357 = vmatpush1.xpose.msra.mxu0 0.0
    %358 = vmatprep.subr.mxu0 0.0
    %359 = vmatpush1.xpose.msra.mxu0 0.0
    %360 = vmatprep.subr.mxu0 0.0
    %361 = vmatpush1.xpose.msra.mxu0 0.0
    %362 = vmatprep.subr.mxu0 0.0
    %363 = vmatpush1.xpose.msra.mxu0 0.0
    %364 = vmatprep.subr.mxu0 0.0
    %365 = vmatpush1.xpose.msra.mxu0 0.0
    %366 = vmatprep.subr.mxu0 0.0
    %367 = vmatpush1.xpose.msra.mxu0 0.0
    %368 = vmatprep.subr.mxu0 0.0
    %369 = vmatpush1.xpose.msra.mxu0 0.0
    %370 = vmatprep.subr.mxu0 0.0
    %371 = vmatpush1.xpose.msra.mxu0 0.0
    %372 = vmatprep.subr.mxu0 0.0
    %373 = vmatpush1.xpose.msra.mxu0 0.0
    %374 = vmatprep.subr.mxu0 0.0
    %375 = vmatpush1.xpose.msra.mxu0 0.0
    %376 = vmatprep.subr.mxu0 0.0
    %377 = vmatpush1.xpose.msra.mxu0 0.0
    %378 = vmatprep.subr.mxu0 0.0
    %379 = vmatpush1.xpose.msra.mxu0 0.0
    %380 = vmatprep.subr.mxu0 0.0
    %381 = vmatpush1.xpose.msra.mxu0 0.0
    %382 = vmatprep.subr.mxu0 0.0
    %383 = vmatpush1.xpose.msra.mxu0 0.0
    %384 = vmatprep.subr.mxu0 0.0
    %385 = vmatpush1.xpose.msra.mxu0 0.0
    %386 = vmatprep.subr.mxu0 0.0
    %387 = vmatpush1.xpose.msra.mxu0 0.0
    %388 = vmatprep.subr.mxu0 0.0
    %389 = vmatpush1.xpose.msra.mxu0 0.0
    %390 = vmatprep.subr.mxu0 0.0
    %391 = vmatpush1.xpose.msra.mxu0 0.0
    %392 = vmatprep.subr.mxu0 0.0
    %393 = vmatpush1.xpose.msra.mxu0 0.0
    %394 = vmatprep.subr.mxu0 0.0
    %395 = vmatpush1.xpose.msra.mxu0 0.0
    %396 = vmatprep.mubr.f32.mxu0 0.0
    %397 = vmatmul.mubr.f32.gmra.mrb[0].mxu0 %v324
    %v398 = vpop.f32.mrb[0].mxu0
    %v399 = vadd.f32 %v175, %v398
    %v400 = vpop.f32.mrb[0].mxu0
    %401 = vmatprep.mubr.f32.mxu0 0.0
    %402 = vmatmul.mubr.f32.gmra.mrb[0].mxu0 %v326
    %v403 = vpop.f32.mrb[0].mxu0
    %v404 = vadd.f32 %v176, %v403
    %v405 = vpop.f32.mrb[0].mxu0
    %406 = vdwg.mxu0
    %vm407 = vcmask 130048
    %v408 = vsel %vm407, %v399, -inf
    %409 = vmax.xlane.f32.xlu0 %v408
    %v410 = vpop.xlane.xlu0 %409
    %v411 = vsel %vm407, %v404, -inf
    %412 = vmax.xlane.f32.xlu0 %v411
    %v413 = vpop.xlane.xlu0 %412
    %v414 = vsub.f32 %v399, %v410
    %v415 = vsub.f32 %v404, %v413
    %v416 = vmul.f32 %v414, 1.442695
    %v417 = vpow.pop %v416
    %v418 = vmul.f32 %v415, 1.442695
    %v419 = vpow.pop %v418
    %v420 = vsel %vm407, %v417, 0.0
    %421 = vadd.xlane.f32.xlu0 %v420
    %v422 = vpop.xlane.xlu0 %421
    %v423 = vsel %vm407, %v419, 0.0
    %424 = vadd.xlane.f32.xlu0 %v423
    %v425 = vpop.xlane.xlu0 %424
    %v426 = vrcp.pop %v422
    %v427 = vrcp.pop %v425
    %v428 = vmul.f32 %v417, %v426
    %v429 = vmul.f32 %v419, %v427
    %v431 = vsel %vm407, %v428, 0
    %v434 = vsel %vm407, %v429, 0
    %436 = vmatprep.subr.mxu0 0.0
    %437 = vmatpush1.msra.mxu0 %v287
    %438 = vmatprep.subr.mxu0 0.0
    %439 = vmatpush1.msra.mxu0 %v293
    %440 = vmatprep.subr.mxu0 0.0
    %441 = vmatpush1.msra.mxu0 0.0
    %442 = vmatprep.subr.mxu0 0.0
    %443 = vmatpush1.msra.mxu0 0.0
    %444 = vmatprep.subr.mxu0 0.0
    %445 = vmatpush1.msra.mxu0 0.0
    %446 = vmatprep.subr.mxu0 0.0
    %447 = vmatpush1.msra.mxu0 0.0
    %448 = vmatprep.subr.mxu0 0.0
    %449 = vmatpush1.msra.mxu0 0.0
    %450 = vmatprep.subr.mxu0 0.0
    %451 = vmatpush1.msra.mxu0 0.0
    %452 = vmatprep.subr.mxu0 0.0
    %453 = vmatpush1.msra.mxu0 0.0
    %454 = vmatprep.subr.mxu0 0.0
    %455 = vmatpush1.msra.mxu0 0.0
    %456 = vmatprep.subr.mxu0 0.0
    %457 = vmatpush1.msra.mxu0 0.0
    %458 = vmatprep.subr.mxu0 0.0
    %459 = vmatpush1.msra.mxu0 0.0
    %460 = vmatprep.subr.mxu0 0.0
    %461 = vmatpush1.msra.mxu0 0.0
    %462 = vmatprep.subr.mxu0 0.0
    %463 = vmatpush1.msra.mxu0 0.0
    %464 = vmatprep.subr.mxu0 0.0
    %465 = vmatpush1.msra.mxu0 0.0
    %466 = vmatprep.subr.mxu0 0.0
    %467 = vmatpush1.msra.mxu0 0.0
    %468 = vmatprep.subr.mxu0 0.0
    %469 = vmatpush1.msra.mxu0 0.0
    %470 = vmatprep.subr.mxu0 0.0
    %471 = vmatpush1.msra.mxu0 0.0
    %472 = vmatprep.subr.mxu0 0.0
    %473 = vmatpush1.msra.mxu0 0.0
    %474 = vmatprep.subr.mxu0 0.0
    %475 = vmatpush1.msra.mxu0 0.0
    %476 = vmatprep.subr.mxu0 0.0
    %477 = vmatpush1.msra.mxu0 0.0
    %478 = vmatprep.subr.mxu0 0.0
    %479 = vmatpush1.msra.mxu0 0.0
    %480 = vmatprep.subr.mxu0 0.0
    %481 = vmatpush1.msra.mxu0 0.0
    %482 = vmatprep.subr.mxu0 0.0
    %483 = vmatpush1.msra.mxu0 0.0
    %484 = vmatprep.subr.mxu0 0.0
    %485 = vmatpush1.msra.mxu0 0.0
    %486 = vmatprep.subr.mxu0 0.0
    %487 = vmatpush1.msra.mxu0 0.0
    %488 = vmatprep.subr.mxu0 0.0
    %489 = vmatpush1.msra.mxu0 0.0
    %490 = vmatprep.subr.mxu0 0.0
    %491 = vmatpush1.msra.mxu0 0.0
    %492 = vmatprep.subr.mxu0 0.0
    %493 = vmatpush1.msra.mxu0 0.0
    %494 = vmatprep.subr.mxu0 0.0
    %495 = vmatpush1.msra.mxu0 0.0
    %496 = vmatprep.subr.mxu0 0.0
    %497 = vmatpush1.msra.mxu0 0.0
    %498 = vmatprep.subr.mxu0 0.0
    %499 = vmatpush1.msra.mxu0 0.0
    %500 = vmatprep.mubr.f32.mxu0 0.0
    %501 = vmatmul.mubr.f32.gmra.mrb[0].mxu0 %v431
    %v502 = vpop.f32.mrb[0].mxu0
    %v503 = vadd.f32 0.0, %v502
    %v504 = vpop.f32.mrb[0].mxu0
    %505 = vmatprep.mubr.f32.mxu0 0.0
    %506 = vmatmul.mubr.f32.gmra.mrb[0].mxu0 %v434
    %v507 = vpop.f32.mrb[0].mxu0
    %v508 = vadd.f32 0.0, %v507
    %v509 = vpop.f32.mrb[0].mxu0
    %510 = vdwg.mxu0
    %511 = vst.msk [vmem:[#allocation2] sm:$0xff] %vm323, %v503
    %512 = vst.msk [vmem:[#allocation2 + $0x8] sm:$0xff] %vm323, %v508
    %513 = vrot.lane.b32.xlu0 %v315, 120
    %v514 = vpop.permute.xlu0 %513
    %515 = vrot.lane.b32.xlu0 %v316, 120
    %v516 = vpop.permute.xlu0 %515
    %517 = vrot.lane.b32.xlu0 %v315, 88
    %v518 = vpop.permute.xlu0 %517
    %519 = vrot.lane.b32.xlu0 %v316, 88
    %v520 = vpop.permute.xlu0 %519
    %v521 = vsel %vm323, %v514, 0
    %v523 = vsel %vm323, %v516, 0
    %v525 = vsel %vm323, %v518, 0
    %v527 = vsel %vm323, %v520, 0
    %529 = vmatprep.subr.mxu0 0.0
    %530 = vmatpush1.xpose.msra.mxu0 %v525
    %531 = vmatprep.subr.mxu0 0.0
    %532 = vmatpush1.xpose.msra.mxu0 %v527
    %533 = vmatprep.subr.mxu0 0.0
    %534 = vmatpush1.xpose.msra.mxu0 0.0
    %535 = vmatprep.subr.mxu0 0.0
    %536 = vmatpush1.xpose.msra.mxu0 0.0
    %537 = vmatprep.subr.mxu0 0.0
    %538 = vmatpush1.xpose.msra.mxu0 0.0
    %539 = vmatprep.subr.mxu0 0.0
    %540 = vmatpush1.xpose.msra.mxu0 0.0
    %541 = vmatprep.subr.mxu0 0.0
    %542 = vmatpush1.xpose.msra.mxu0 0.0
    %543 = vmatprep.subr.mxu0 0.0
    %544 = vmatpush1.xpose.msra.mxu0 0.0
    %545 = vmatprep.subr.mxu0 0.0
    %546 = vmatpush1.xpose.msra.mxu0 0.0
    %547 = vmatprep.subr.mxu0 0.0
    %548 = vmatpush1.xpose.msra.mxu0 0.0
    %549 = vmatprep.subr.mxu0 0.0
    %550 = vmatpush1.xpose.msra.mxu0 0.0
    %551 = vmatprep.subr.mxu0 0.0
    %552 = vmatpush1.xpose.msra.mxu0 0.0
    %553 = vmatprep.subr.mxu0 0.0
    %554 = vmatpush1.xpose.msra.mxu0 0.0
    %555 = vmatprep.subr.mxu0 0.0
    %556 = vmatpush1.xpose.msra.mxu0 0.0
    %557 = vmatprep.subr.mxu0 0.0
    %558 = vmatpush1.xpose.msra.mxu0 0.0
    %559 = vmatprep.subr.mxu0 0.0
    %560 = vmatpush1.xpose.msra.mxu0 0.0
    %561 = vmatprep.subr.mxu0 0.0
    %562 = vmatpush1.xpose.msra.mxu0 0.0
    %563 = vmatprep.subr.mxu0 0.0
    %564 = vmatpush1.xpose.msra.mxu0 0.0
    %565 = vmatprep.subr.mxu0 0.0
    %566 = vmatpush1.xpose.msra.mxu0 0.0
    %567 = vmatprep.subr.mxu0 0.0
    %568 = vmatpush1.xpose.msra.mxu0 0.0
    %569 = vmatprep.subr.mxu0 0.0
    %570 = vmatpush1.xpose.msra.mxu0 0.0
    %571 = vmatprep.subr.mxu0 0.0
    %572 = vmatpush1.xpose.msra.mxu0 0.0
    %573 = vmatprep.subr.mxu0 0.0
    %574 = vmatpush1.xpose.msra.mxu0 0.0
    %575 = vmatprep.subr.mxu0 0.0
    %576 = vmatpush1.xpose.msra.mxu0 0.0
    %577 = vmatprep.subr.mxu0 0.0
    %578 = vmatpush1.xpose.msra.mxu0 0.0
    %579 = vmatprep.subr.mxu0 0.0
    %580 = vmatpush1.xpose.msra.mxu0 0.0
    %581 = vmatprep.subr.mxu0 0.0
    %582 = vmatpush1.xpose.msra.mxu0 0.0
    %583 = vmatprep.subr.mxu0 0.0
    %584 = vmatpush1.xpose.msra.mxu0 0.0
    %585 = vmatprep.subr.mxu0 0.0
    %586 = vmatpush1.xpose.msra.mxu0 0.0
    %587 = vmatprep.subr.mxu0 0.0
    %588 = vmatpush1.xpose.msra.mxu0 0.0
    %589 = vmatprep.subr.mxu0 0.0
    %590 = vmatpush1.xpose.msra.mxu0 0.0
    %591 = vmatprep.subr.mxu0 0.0
    %592 = vmatpush1.xpose.msra.mxu0 0.0
    %593 = vmatprep.mubr.f32.mxu0 0.0
    %594 = vmatmul.mubr.f32.gmra.mrb[0].mxu0 %v521
    %v595 = vpop.f32.mrb[0].mxu0
    %v596 = vadd.f32 %v175, %v595
    %v597 = vpop.f32.mrb[0].mxu0
    %598 = vmatprep.mubr.f32.mxu0 0.0
    %599 = vmatmul.mubr.f32.gmra.mrb[0].mxu0 %v523
    %v600 = vpop.f32.mrb[0].mxu0
    %v601 = vadd.f32 %v176, %v600
    %v602 = vpop.f32.mrb[0].mxu0
    %603 = vdwg.mxu0
    %v604 = vsel %vm407, %v596, -inf
    %605 = vmax.xlane.f32.xlu0 %v604
    %v606 = vpop.xlane.xlu0 %605
    %v607 = vsel %vm407, %v601, -inf
    %608 = vmax.xlane.f32.xlu0 %v607
    %v609 = vpop.xlane.xlu0 %608
    %v610 = vsub.f32 %v596, %v606
    %v611 = vsub.f32 %v601, %v609
    %v612 = vmul.f32 %v610, 1.442695
    %v613 = vpow.pop %v612
    %v614 = vmul.f32 %v611, 1.442695
    %v615 = vpow.pop %v614
    %v616 = vsel %vm407, %v613, 0.0
    %617 = vadd.xlane.f32.xlu0 %v616
    %v618 = vpop.xlane.xlu0 %617
    %v619 = vsel %vm407, %v615, 0.0
    %620 = vadd.xlane.f32.xlu0 %v619
    %v621 = vpop.xlane.xlu0 %620
    %v622 = vrcp.pop %v618
    %v623 = vrcp.pop %v621
    %v624 = vmul.f32 %v613, %v622
    %v625 = vmul.f32 %v615, %v623
    %628 = vrot.lane.b32.xlu0 %v287, 120
    %v629 = vpop.permute.xlu0 %628
    %630 = vrot.lane.b32.xlu0 %v293, 120
    %v631 = vpop.permute.xlu0 %630
    %v635 = vsel %vm407, %v624, 0
    %v638 = vsel %vm407, %v625, 0
    %640 = vmatprep.subr.mxu0 0.0
    %641 = vmatpush1.msra.mxu0 %v629
    %642 = vmatprep.subr.mxu0 0.0
    %643 = vmatpush1.msra.mxu0 %v631
    %644 = vmatprep.subr.mxu0 0.0
    %645 = vmatpush1.msra.mxu0 0.0
    %646 = vmatprep.subr.mxu0 0.0
    %647 = vmatpush1.msra.mxu0 0.0
    %648 = vmatprep.subr.mxu0 0.0
    %649 = vmatpush1.msra.mxu0 0.0
    %650 = vmatprep.subr.mxu0 0.0
    %651 = vmatpush1.msra.mxu0 0.0
    %652 = vmatprep.subr.mxu0 0.0
    %653 = vmatpush1.msra.mxu0 0.0
    %654 = vmatprep.subr.mxu0 0.0
    %655 = vmatpush1.msra.mxu0 0.0
    %656 = vmatprep.subr.mxu0 0.0
    %657 = vmatpush1.msra.mxu0 0.0
    %658 = vmatprep.subr.mxu0 0.0
    %659 = vmatpush1.msra.mxu0 0.0
    %660 = vmatprep.subr.mxu0 0.0
    %661 = vmatpush1.msra.mxu0 0.0
    %662 = vmatprep.subr.mxu0 0.0
    %663 = vmatpush1.msra.mxu0 0.0
    %664 = vmatprep.subr.mxu0 0.0
    %665 = vmatpush1.msra.mxu0 0.0
    %666 = vmatprep.subr.mxu0 0.0
    %667 = vmatpush1.msra.mxu0 0.0
    %668 = vmatprep.subr.mxu0 0.0
    %669 = vmatpush1.msra.mxu0 0.0
    %670 = vmatprep.subr.mxu0 0.0
    %671 = vmatpush1.msra.mxu0 0.0
    %672 = vmatprep.subr.mxu0 0.0
    %673 = vmatpush1.msra.mxu0 0.0
    %674 = vmatprep.subr.mxu0 0.0
    %675 = vmatpush1.msra.mxu0 0.0
    %676 = vmatprep.subr.mxu0 0.0
    %677 = vmatpush1.msra.mxu0 0.0
    %678 = vmatprep.subr.mxu0 0.0
    %679 = vmatpush1.msra.mxu0 0.0
    %680 = vmatprep.subr.mxu0 0.0
    %681 = vmatpush1.msra.mxu0 0.0
    %682 = vmatprep.subr.mxu0 0.0
    %683 = vmatpush1.msra.mxu0 0.0
    %684 = vmatprep.subr.mxu0 0.0
    %685 = vmatpush1.msra.mxu0 0.0
    %686 = vmatprep.subr.mxu0 0.0
    %687 = vmatpush1.msra.mxu0 0.0
    %688 = vmatprep.subr.mxu0 0.0
    %689 = vmatpush1.msra.mxu0 0.0
    %690 = vmatprep.subr.mxu0 0.0
    %691 = vmatpush1.msra.mxu0 0.0
    %692 = vmatprep.subr.mxu0 0.0
    %693 = vmatpush1.msra.mxu0 0.0
    %694 = vmatprep.subr.mxu0 0.0
    %695 = vmatpush1.msra.mxu0 0.0
    %696 = vmatprep.subr.mxu0 0.0
    %697 = vmatpush1.msra.mxu0 0.0
    %698 = vmatprep.subr.mxu0 0.0
    %699 = vmatpush1.msra.mxu0 0.0
    %700 = vmatprep.subr.mxu0 0.0
    %701 = vmatpush1.msra.mxu0 0.0
    %702 = vmatprep.subr.mxu0 0.0
    %703 = vmatpush1.msra.mxu0 0.0
    %704 = vmatprep.mubr.f32.mxu0 0.0
    %705 = vmatmul.mubr.f32.gmra.mrb[0].mxu0 %v635
    %v706 = vpop.f32.mrb[0].mxu0
    %v707 = vadd.f32 0.0, %v706
    %v708 = vpop.f32.mrb[0].mxu0
    %709 = vmatprep.mubr.f32.mxu0 0.0
    %710 = vmatmul.mubr.f32.gmra.mrb[0].mxu0 %v638
    %v711 = vpop.f32.mrb[0].mxu0
    %v712 = vadd.f32 0.0, %v711
    %v713 = vpop.f32.mrb[0].mxu0
    %714 = vdwg.mxu0
    %717 = vrot.lane.b32.xlu0 %v707, 8
    %v718 = vpop.permute.xlu0 %717
    %719 = vrot.lane.b32.xlu0 %v712, 8
    %v720 = vpop.permute.xlu0 %719
    %vm723 = vcmask 130112
    %724 = vst.msk [vmem:[#allocation2] sm:$0xff] %vm723, %v718
    %725 = vst.msk [vmem:[#allocation2 + $0x8] sm:$0xff] %vm723, %v720
    %726 = vrot.lane.b32.xlu0 %v315, 112
    %v727 = vpop.permute.xlu0 %726
    %728 = vrot.lane.b32.xlu0 %v316, 112
    %v729 = vpop.permute.xlu0 %728
    %730 = vrot.lane.b32.xlu0 %v315, 80
    %v731 = vpop.permute.xlu0 %730
    %732 = vrot.lane.b32.xlu0 %v316, 80
    %v733 = vpop.permute.xlu0 %732
    %v734 = vsel %vm323, %v727, 0
    %v736 = vsel %vm323, %v729, 0
    %v738 = vsel %vm323, %v731, 0
    %v740 = vsel %vm323, %v733, 0
    %742 = vmatprep.subr.mxu0 0.0
    %743 = vmatpush1.xpose.msra.mxu0 %v738
    %744 = vmatprep.subr.mxu0 0.0
    %745 = vmatpush1.xpose.msra.mxu0 %v740
    %746 = vmatprep.subr.mxu0 0.0
    %747 = vmatpush1.xpose.msra.mxu0 0.0
    %748 = vmatprep.subr.mxu0 0.0
    %749 = vmatpush1.xpose.msra.mxu0 0.0
    %750 = vmatprep.subr.mxu0 0.0
    %751 = vmatpush1.xpose.msra.mxu0 0.0
    %752 = vmatprep.subr.mxu0 0.0
    %753 = vmatpush1.xpose.msra.mxu0 0.0
    %754 = vmatprep.subr.mxu0 0.0
    %755 = vmatpush1.xpose.msra.mxu0 0.0
    %756 = vmatprep.subr.mxu0 0.0
    %757 = vmatpush1.xpose.msra.mxu0 0.0
    %758 = vmatprep.subr.mxu0 0.0
    %759 = vmatpush1.xpose.msra.mxu0 0.0
    %760 = vmatprep.subr.mxu0 0.0
    %761 = vmatpush1.xpose.msra.mxu0 0.0
    %762 = vmatprep.subr.mxu0 0.0
    %763 = vmatpush1.xpose.msra.mxu0 0.0
    %764 = vmatprep.subr.mxu0 0.0
    %765 = vmatpush1.xpose.msra.mxu0 0.0
    %766 = vmatprep.subr.mxu0 0.0
    %767 = vmatpush1.xpose.msra.mxu0 0.0
    %768 = vmatprep.subr.mxu0 0.0
    %769 = vmatpush1.xpose.msra.mxu0 0.0
    %770 = vmatprep.subr.mxu0 0.0
    %771 = vmatpush1.xpose.msra.mxu0 0.0
    %772 = vmatprep.subr.mxu0 0.0
    %773 = vmatpush1.xpose.msra.mxu0 0.0
    %774 = vmatprep.subr.mxu0 0.0
    %775 = vmatpush1.xpose.msra.mxu0 0.0
    %776 = vmatprep.subr.mxu0 0.0
    %777 = vmatpush1.xpose.msra.mxu0 0.0
    %778 = vmatprep.subr.mxu0 0.0
    %779 = vmatpush1.xpose.msra.mxu0 0.0
    %780 = vmatprep.subr.mxu0 0.0
    %781 = vmatpush1.xpose.msra.mxu0 0.0
    %782 = vmatprep.subr.mxu0 0.0
    %783 = vmatpush1.xpose.msra.mxu0 0.0
    %784 = vmatprep.subr.mxu0 0.0
    %785 = vmatpush1.xpose.msra.mxu0 0.0
    %786 = vmatprep.subr.mxu0 0.0
    %787 = vmatpush1.xpose.msra.mxu0 0.0
    %788 = vmatprep.subr.mxu0 0.0
    %789 = vmatpush1.xpose.msra.mxu0 0.0
    %790 = vmatprep.subr.mxu0 0.0
    %791 = vmatpush1.xpose.msra.mxu0 0.0
    %792 = vmatprep.subr.mxu0 0.0
    %793 = vmatpush1.xpose.msra.mxu0 0.0
    %794 = vmatprep.subr.mxu0 0.0
    %795 = vmatpush1.xpose.msra.mxu0 0.0
    %796 = vmatprep.subr.mxu0 0.0
    %797 = vmatpush1.xpose.msra.mxu0 0.0
    %798 = vmatprep.subr.mxu0 0.0
    %799 = vmatpush1.xpose.msra.mxu0 0.0
    %800 = vmatprep.subr.mxu0 0.0
    %801 = vmatpush1.xpose.msra.mxu0 0.0
    %802 = vmatprep.subr.mxu0 0.0
    %803 = vmatpush1.xpose.msra.mxu0 0.0
    %804 = vmatprep.subr.mxu0 0.0
    %805 = vmatpush1.xpose.msra.mxu0 0.0
    %806 = vmatprep.mubr.f32.mxu0 0.0
    %807 = vmatmul.mubr.f32.gmra.mrb[0].mxu0 %v734
    %v808 = vpop.f32.mrb[0].mxu0
    %v809 = vadd.f32 %v175, %v808
    %v810 = vpop.f32.mrb[0].mxu0
    %811 = vmatprep.mubr.f32.mxu0 0.0
    %812 = vmatmul.mubr.f32.gmra.mrb[0].mxu0 %v736
    %v813 = vpop.f32.mrb[0].mxu0
    %v814 = vadd.f32 %v176, %v813
    %v815 = vpop.f32.mrb[0].mxu0
    %816 = vdwg.mxu0
    %v817 = vsel %vm407, %v809, -inf
    %818 = vmax.xlane.f32.xlu0 %v817
    %v819 = vpop.xlane.xlu0 %818
    %v820 = vsel %vm407, %v814, -inf
    %821 = vmax.xlane.f32.xlu0 %v820
    %v822 = vpop.xlane.xlu0 %821
    %v823 = vsub.f32 %v809, %v819
    %v824 = vsub.f32 %v814, %v822
    %v825 = vmul.f32 %v823, 1.442695
    %v826 = vpow.pop %v825
    %v827 = vmul.f32 %v824, 1.442695
    %v828 = vpow.pop %v827
    %v829 = vsel %vm407, %v826, 0.0
    %830 = vadd.xlane.f32.xlu0 %v829
    %v831 = vpop.xlane.xlu0 %830
    %v832 = vsel %vm407, %v828, 0.0
    %833 = vadd.xlane.f32.xlu0 %v832
    %v834 = vpop.xlane.xlu0 %833
    %v835 = vrcp.pop %v831
    %v836 = vrcp.pop %v834
    %v837 = vmul.f32 %v826, %v835
    %v838 = vmul.f32 %v828, %v836
    %839 = vrot.lane.b32.xlu0 %v287, 112
    %v840 = vpop.permute.xlu0 %839
    %841 = vrot.lane.b32.xlu0 %v293, 112
    %v842 = vpop.permute.xlu0 %841
    %v846 = vsel %vm407, %v837, 0
    %v849 = vsel %vm407, %v838, 0
    %851 = vmatprep.subr.mxu0 0.0
    %852 = vmatpush1.msra.mxu0 %v840
    %853 = vmatprep.subr.mxu0 0.0
    %854 = vmatpush1.msra.mxu0 %v842
    %855 = vmatprep.subr.mxu0 0.0
    %856 = vmatpush1.msra.mxu0 0.0
    %857 = vmatprep.subr.mxu0 0.0
    %858 = vmatpush1.msra.mxu0 0.0
    %859 = vmatprep.subr.mxu0 0.0
    %860 = vmatpush1.msra.mxu0 0.0
    %861 = vmatprep.subr.mxu0 0.0
    %862 = vmatpush1.msra.mxu0 0.0
    %863 = vmatprep.subr.mxu0 0.0
    %864 = vmatpush1.msra.mxu0 0.0
    %865 = vmatprep.subr.mxu0 0.0
    %866 = vmatpush1.msra.mxu0 0.0
    %867 = vmatprep.subr.mxu0 0.0
    %868 = vmatpush1.msra.mxu0 0.0
    %869 = vmatprep.subr.mxu0 0.0
    %870 = vmatpush1.msra.mxu0 0.0
    %871 = vmatprep.subr.mxu0 0.0
    %872 = vmatpush1.msra.mxu0 0.0
    %873 = vmatprep.subr.mxu0 0.0
    %874 = vmatpush1.msra.mxu0 0.0
    %875 = vmatprep.subr.mxu0 0.0
    %876 = vmatpush1.msra.mxu0 0.0
    %877 = vmatprep.subr.mxu0 0.0
    %878 = vmatpush1.msra.mxu0 0.0
    %879 = vmatprep.subr.mxu0 0.0
    %880 = vmatpush1.msra.mxu0 0.0
    %881 = vmatprep.subr.mxu0 0.0
    %882 = vmatpush1.msra.mxu0 0.0
    %883 = vmatprep.subr.mxu0 0.0
    %884 = vmatpush1.msra.mxu0 0.0
    %885 = vmatprep.subr.mxu0 0.0
    %886 = vmatpush1.msra.mxu0 0.0
    %887 = vmatprep.subr.mxu0 0.0
    %888 = vmatpush1.msra.mxu0 0.0
    %889 = vmatprep.subr.mxu0 0.0
    %890 = vmatpush1.msra.mxu0 0.0
    %891 = vmatprep.subr.mxu0 0.0
    %892 = vmatpush1.msra.mxu0 0.0
    %893 = vmatprep.subr.mxu0 0.0
    %894 = vmatpush1.msra.mxu0 0.0
    %895 = vmatprep.subr.mxu0 0.0
    %896 = vmatpush1.msra.mxu0 0.0
    %897 = vmatprep.subr.mxu0 0.0
    %898 = vmatpush1.msra.mxu0 0.0
    %899 = vmatprep.subr.mxu0 0.0
    %900 = vmatpush1.msra.mxu0 0.0
    %901 = vmatprep.subr.mxu0 0.0
    %902 = vmatpush1.msra.mxu0 0.0
    %903 = vmatprep.subr.mxu0 0.0
    %904 = vmatpush1.msra.mxu0 0.0
    %905 = vmatprep.subr.mxu0 0.0
    %906 = vmatpush1.msra.mxu0 0.0
    %907 = vmatprep.subr.mxu0 0.0
    %908 = vmatpush1.msra.mxu0 0.0
    %909 = vmatprep.subr.mxu0 0.0
    %910 = vmatpush1.msra.mxu0 0.0
    %911 = vmatprep.subr.mxu0 0.0
    %912 = vmatpush1.msra.mxu0 0.0
    %913 = vmatprep.subr.mxu0 0.0
    %914 = vmatpush1.msra.mxu0 0.0
    %915 = vmatprep.mubr.f32.mxu0 0.0
    %916 = vmatmul.mubr.f32.gmra.mrb[0].mxu0 %v846
    %v917 = vpop.f32.mrb[0].mxu0
    %v918 = vadd.f32 0.0, %v917
    %v919 = vpop.f32.mrb[0].mxu0
    %920 = vmatprep.mubr.f32.mxu0 0.0
    %921 = vmatmul.mubr.f32.gmra.mrb[0].mxu0 %v849
    %v922 = vpop.f32.mrb[0].mxu0
    %v923 = vadd.f32 0.0, %v922
    %v924 = vpop.f32.mrb[0].mxu0
    %925 = vdwg.mxu0
    %928 = vrot.lane.b32.xlu0 %v918, 16
    %v929 = vpop.permute.xlu0 %928
    %930 = vrot.lane.b32.xlu0 %v923, 16
    %v931 = vpop.permute.xlu0 %930
    %vm934 = vcmask 195712
    %935 = vst.msk [vmem:[#allocation2] sm:$0xff] %vm934, %v929
    %936 = vst.msk [vmem:[#allocation2 + $0x8] sm:$0xff] %vm934, %v931
    %937 = vrot.lane.b32.xlu0 %v315, 104
    %v938 = vpop.permute.xlu0 %937
    %939 = vrot.lane.b32.xlu0 %v316, 104
    %v940 = vpop.permute.xlu0 %939
    %941 = vrot.lane.b32.xlu0 %v315, 72
    %v942 = vpop.permute.xlu0 %941
    %943 = vrot.lane.b32.xlu0 %v316, 72
    %v944 = vpop.permute.xlu0 %943
    %v945 = vsel %vm323, %v938, 0
    %v947 = vsel %vm323, %v940, 0
    %v949 = vsel %vm323, %v942, 0
    %v951 = vsel %vm323, %v944, 0
    %953 = vmatprep.subr.mxu0 0.0
    %954 = vmatpush1.xpose.msra.mxu0 %v949
    %955 = vmatprep.subr.mxu0 0.0
    %956 = vmatpush1.xpose.msra.mxu0 %v951
    %957 = vmatprep.subr.mxu0 0.0
    %958 = vmatpush1.xpose.msra.mxu0 0.0
    %959 = vmatprep.subr.mxu0 0.0
    %960 = vmatpush1.xpose.msra.mxu0 0.0
    %961 = vmatprep.subr.mxu0 0.0
    %962 = vmatpush1.xpose.msra.mxu0 0.0
    %963 = vmatprep.subr.mxu0 0.0
    %964 = vmatpush1.xpose.msra.mxu0 0.0
    %965 = vmatprep.subr.mxu0 0.0
    %966 = vmatpush1.xpose.msra.mxu0 0.0
    %967 = vmatprep.subr.mxu0 0.0
    %968 = vmatpush1.xpose.msra.mxu0 0.0
    %969 = vmatprep.subr.mxu0 0.0
    %970 = vmatpush1.xpose.msra.mxu0 0.0
    %971 = vmatprep.subr.mxu0 0.0
    %972 = vmatpush1.xpose.msra.mxu0 0.0
    %973 = vmatprep.subr.mxu0 0.0
    %974 = vmatpush1.xpose.msra.mxu0 0.0
    %975 = vmatprep.subr.mxu0 0.0
    %976 = vmatpush1.xpose.msra.mxu0 0.0
    %977 = vmatprep.subr.mxu0 0.0
    %978 = vmatpush1.xpose.msra.mxu0 0.0
    %979 = vmatprep.subr.mxu0 0.0
    %980 = vmatpush1.xpose.msra.mxu0 0.0
    %981 = vmatprep.subr.mxu0 0.0
    %982 = vmatpush1.xpose.msra.mxu0 0.0
    %983 = vmatprep.subr.mxu0 0.0
    %984 = vmatpush1.xpose.msra.mxu0 0.0
    %985 = vmatprep.subr.mxu0 0.0
    %986 = vmatpush1.xpose.msra.mxu0 0.0
    %987 = vmatprep.subr.mxu0 0.0
    %988 = vmatpush1.xpose.msra.mxu0 0.0
    %989 = vmatprep.subr.mxu0 0.0
    %990 = vmatpush1.xpose.msra.mxu0 0.0
    %991 = vmatprep.subr.mxu0 0.0
    %992 = vmatpush1.xpose.msra.mxu0 0.0
    %993 = vmatprep.subr.mxu0 0.0
    %994 = vmatpush1.xpose.msra.mxu0 0.0
    %995 = vmatprep.subr.mxu0 0.0
    %996 = vmatpush1.xpose.msra.mxu0 0.0
    %997 = vmatprep.subr.mxu0 0.0
    %998 = vmatpush1.xpose.msra.mxu0 0.0
    %999 = vmatprep.subr.mxu0 0.0
    %1000 = vmatpush1.xpose.msra.mxu0 0.0
    %1001 = vmatprep.subr.mxu0 0.0
    %1002 = vmatpush1.xpose.msra.mxu0 0.0
    %1003 = vmatprep.subr.mxu0 0.0
    %1004 = vmatpush1.xpose.msra.mxu0 0.0
    %1005 = vmatprep.subr.mxu0 0.0
    %1006 = vmatpush1.xpose.msra.mxu0 0.0
    %1007 = vmatprep.subr.mxu0 0.0
    %1008 = vmatpush1.xpose.msra.mxu0 0.0
    %1009 = vmatprep.subr.mxu0 0.0
    %1010 = vmatpush1.xpose.msra.mxu0 0.0
    %1011 = vmatprep.subr.mxu0 0.0
    %1012 = vmatpush1.xpose.msra.mxu0 0.0
    %1013 = vmatprep.subr.mxu0 0.0
    %1014 = vmatpush1.xpose.msra.mxu0 0.0
    %1015 = vmatprep.subr.mxu0 0.0
    %1016 = vmatpush1.xpose.msra.mxu0 0.0
    %1017 = vmatprep.mubr.f32.mxu0 0.0
    %1018 = vmatmul.mubr.f32.gmra.mrb[0].mxu0 %v945
    %v1019 = vpop.f32.mrb[0].mxu0
    %v1020 = vadd.f32 %v175, %v1019
    %v1021 = vpop.f32.mrb[0].mxu0
    %1022 = vmatprep.mubr.f32.mxu0 0.0
    %1023 = vmatmul.mubr.f32.gmra.mrb[0].mxu0 %v947
    %v1024 = vpop.f32.mrb[0].mxu0
    %v1025 = vadd.f32 %v176, %v1024
    %v1026 = vpop.f32.mrb[0].mxu0
    %1027 = vdwg.mxu0
    %v1028 = vsel %vm407, %v1020, -inf
    %1029 = vmax.xlane.f32.xlu0 %v1028
    %v1030 = vpop.xlane.xlu0 %1029
    %v1031 = vsel %vm407, %v1025, -inf
    %1032 = vmax.xlane.f32.xlu0 %v1031
    %v1033 = vpop.xlane.xlu0 %1032
    %v1034 = vsub.f32 %v1020, %v1030
    %v1035 = vsub.f32 %v1025, %v1033
    %v1036 = vmul.f32 %v1034, 1.442695
    %v1037 = vpow.pop %v1036
    %v1038 = vmul.f32 %v1035, 1.442695
    %v1039 = vpow.pop %v1038
    %v1040 = vsel %vm407, %v1037, 0.0
    %1041 = vadd.xlane.f32.xlu0 %v1040
    %v1042 = vpop.xlane.xlu0 %1041
    %v1043 = vsel %vm407, %v1039, 0.0
    %1044 = vadd.xlane.f32.xlu0 %v1043
    %v1045 = vpop.xlane.xlu0 %1044
    %v1046 = vrcp.pop %v1042
    %v1047 = vrcp.pop %v1045
    %v1048 = vmul.f32 %v1037, %v1046
    %v1049 = vmul.f32 %v1039, %v1047
    %1050 = vrot.lane.b32.xlu0 %v287, 104
    %v1051 = vpop.permute.xlu0 %1050
    %1052 = vrot.lane.b32.xlu0 %v293, 104
    %v1053 = vpop.permute.xlu0 %1052
    %v1057 = vsel %vm407, %v1048, 0
    %v1060 = vsel %vm407, %v1049, 0
    %1062 = vmatprep.subr.mxu0 0.0
    %1063 = vmatpush1.msra.mxu0 %v1051
    %1064 = vmatprep.subr.mxu0 0.0
    %1065 = vmatpush1.msra.mxu0 %v1053
    %1066 = vmatprep.subr.mxu0 0.0
    %1067 = vmatpush1.msra.mxu0 0.0
    %1068 = vmatprep.subr.mxu0 0.0
    %1069 = vmatpush1.msra.mxu0 0.0
    %1070 = vmatprep.subr.mxu0 0.0
    %1071 = vmatpush1.msra.mxu0 0.0
    %1072 = vmatprep.subr.mxu0 0.0
    %1073 = vmatpush1.msra.mxu0 0.0
    %1074 = vmatprep.subr.mxu0 0.0
    %1075 = vmatpush1.msra.mxu0 0.0
    %1076 = vmatprep.subr.mxu0 0.0
    %1077 = vmatpush1.msra.mxu0 0.0
    %1078 = vmatprep.subr.mxu0 0.0
    %1079 = vmatpush1.msra.mxu0 0.0
    %1080 = vmatprep.subr.mxu0 0.0
    %1081 = vmatpush1.msra.mxu0 0.0
    %1082 = vmatprep.subr.mxu0 0.0
    %1083 = vmatpush1.msra.mxu0 0.0
    %1084 = vmatprep.subr.mxu0 0.0
    %1085 = vmatpush1.msra.mxu0 0.0
    %1086 = vmatprep.subr.mxu0 0.0
    %1087 = vmatpush1.msra.mxu0 0.0
    %1088 = vmatprep.subr.mxu0 0.0
    %1089 = vmatpush1.msra.mxu0 0.0
    %1090 = vmatprep.subr.mxu0 0.0
    %1091 = vmatpush1.msra.mxu0 0.0
    %1092 = vmatprep.subr.mxu0 0.0
    %1093 = vmatpush1.msra.mxu0 0.0
    %1094 = vmatprep.subr.mxu0 0.0
    %1095 = vmatpush1.msra.mxu0 0.0
    %1096 = vmatprep.subr.mxu0 0.0
    %1097 = vmatpush1.msra.mxu0 0.0
    %1098 = vmatprep.subr.mxu0 0.0
    %1099 = vmatpush1.msra.mxu0 0.0
    %1100 = vmatprep.subr.mxu0 0.0
    %1101 = vmatpush1.msra.mxu0 0.0
    %1102 = vmatprep.subr.mxu0 0.0
    %1103 = vmatpush1.msra.mxu0 0.0
    %1104 = vmatprep.subr.mxu0 0.0
    %1105 = vmatpush1.msra.mxu0 0.0
    %1106 = vmatprep.subr.mxu0 0.0
    %1107 = vmatpush1.msra.mxu0 0.0
    %1108 = vmatprep.subr.mxu0 0.0
    %1109 = vmatpush1.msra.mxu0 0.0
    %1110 = vmatprep.subr.mxu0 0.0
    %1111 = vmatpush1.msra.mxu0 0.0
    %1112 = vmatprep.subr.mxu0 0.0
    %1113 = vmatpush1.msra.mxu0 0.0
    %1114 = vmatprep.subr.mxu0 0.0
    %1115 = vmatpush1.msra.mxu0 0.0
    %1116 = vmatprep.subr.mxu0 0.0
    %1117 = vmatpush1.msra.mxu0 0.0
    %1118 = vmatprep.subr.mxu0 0.0
    %1119 = vmatpush1.msra.mxu0 0.0
    %1120 = vmatprep.subr.mxu0 0.0
    %1121 = vmatpush1.msra.mxu0 0.0
    %1122 = vmatprep.subr.mxu0 0.0
    %1123 = vmatpush1.msra.mxu0 0.0
    %1124 = vmatprep.subr.mxu0 0.0
    %1125 = vmatpush1.msra.mxu0 0.0
    %1126 = vmatprep.mubr.f32.mxu0 0.0
    %1127 = vmatmul.mubr.f32.gmra.mrb[0].mxu0 %v1057
    %v1128 = vpop.f32.mrb[0].mxu0
    %v1129 = vadd.f32 0.0, %v1128
    %v1130 = vpop.f32.mrb[0].mxu0
    %1131 = vmatprep.mubr.f32.mxu0 0.0
    %1132 = vmatmul.mubr.f32.gmra.mrb[0].mxu0 %v1060
    %v1133 = vpop.f32.mrb[0].mxu0
    %v1134 = vadd.f32 0.0, %v1133
    %v1135 = vpop.f32.mrb[0].mxu0
    %1136 = vdwg.mxu0
    %1139 = vrot.lane.b32.xlu0 %v1129, 24
    %v1140 = vpop.permute.xlu0 %1139
    %1141 = vrot.lane.b32.xlu0 %v1134, 24
    %v1142 = vpop.permute.xlu0 %1141
    %vm1145 = vcmask 261312
    %1146 = vst.msk [vmem:[#allocation2] sm:$0xff] %vm1145, %v1140
    %1147 = vst.msk [vmem:[#allocation2 + $0x8] sm:$0xff] %vm1145, %v1142
    %v1148 = vld [vmem:[#allocation2] sm:$0xff]
    %v1149 = vld [vmem:[#allocation2 + $0x8] sm:$0xff]
    %v1150 = vld [vmem:[%s7] sm:$0xff]
    %v1151 = vld [vmem:[%s7 + $0x8] sm:$0xff]
    %v1152 = vld [vmem:[%s7 + $0x10] sm:$0xff]
    %v1153 = vld [vmem:[%s7 + $0x18] sm:$0xff]
    %v1155 = vsel %vm180, %v1148, 0
    %v1158 = vsel %vm180, %v1149, 0
    %1160 = vmatprep.subr.mxu0 0.0
    %1161 = vmatpush1.msra.mxu0 %v1150
    %1162 = vmatprep.subr.mxu0 0.0
    %1163 = vmatpush1.msra.mxu0 %v1151
    %1164 = vmatprep.subr.mxu0 0.0
    %1165 = vmatpush1.msra.mxu0 %v1152
    %1166 = vmatprep.subr.mxu0 0.0
    %1167 = vmatpush1.msra.mxu0 %v1153
    %1168 = vmatprep.subr.mxu0 0.0
    %1169 = vmatpush1.msra.mxu0 0.0
    %1170 = vmatprep.subr.mxu0 0.0
    %1171 = vmatpush1.msra.mxu0 0.0
    %1172 = vmatprep.subr.mxu0 0.0
    %1173 = vmatpush1.msra.mxu0 0.0
    %1174 = vmatprep.subr.mxu0 0.0
    %1175 = vmatpush1.msra.mxu0 0.0
    %1176 = vmatprep.subr.mxu0 0.0
    %1177 = vmatpush1.msra.mxu0 0.0
    %1178 = vmatprep.subr.mxu0 0.0
    %1179 = vmatpush1.msra.mxu0 0.0
    %1180 = vmatprep.subr.mxu0 0.0
    %1181 = vmatpush1.msra.mxu0 0.0
    %1182 = vmatprep.subr.mxu0 0.0
    %1183 = vmatpush1.msra.mxu0 0.0
    %1184 = vmatprep.subr.mxu0 0.0
    %1185 = vmatpush1.msra.mxu0 0.0
    %1186 = vmatprep.subr.mxu0 0.0
    %1187 = vmatpush1.msra.mxu0 0.0
    %1188 = vmatprep.subr.mxu0 0.0
    %1189 = vmatpush1.msra.mxu0 0.0
    %1190 = vmatprep.subr.mxu0 0.0
    %1191 = vmatpush1.msra.mxu0 0.0
    %1192 = vmatprep.subr.mxu0 0.0
    %1193 = vmatpush1.msra.mxu0 0.0
    %1194 = vmatprep.subr.mxu0 0.0
    %1195 = vmatpush1.msra.mxu0 0.0
    %1196 = vmatprep.subr.mxu0 0.0
    %1197 = vmatpush1.msra.mxu0 0.0
    %1198 = vmatprep.subr.mxu0 0.0
    %1199 = vmatpush1.msra.mxu0 0.0
    %1200 = vmatprep.subr.mxu0 0.0
    %1201 = vmatpush1.msra.mxu0 0.0
    %1202 = vmatprep.subr.mxu0 0.0
    %1203 = vmatpush1.msra.mxu0 0.0
    %1204 = vmatprep.subr.mxu0 0.0
    %1205 = vmatpush1.msra.mxu0 0.0
    %1206 = vmatprep.subr.mxu0 0.0
    %1207 = vmatpush1.msra.mxu0 0.0
    %1208 = vmatprep.subr.mxu0 0.0
    %1209 = vmatpush1.msra.mxu0 0.0
    %1210 = vmatprep.subr.mxu0 0.0
    %1211 = vmatpush1.msra.mxu0 0.0
    %1212 = vmatprep.subr.mxu0 0.0
    %1213 = vmatpush1.msra.mxu0 0.0
    %1214 = vmatprep.subr.mxu0 0.0
    %1215 = vmatpush1.msra.mxu0 0.0
    %1216 = vmatprep.subr.mxu0 0.0
    %1217 = vmatpush1.msra.mxu0 0.0
    %1218 = vmatprep.subr.mxu0 0.0
    %1219 = vmatpush1.msra.mxu0 0.0
    %1220 = vmatprep.subr.mxu0 0.0
    %1221 = vmatpush1.msra.mxu0 0.0
    %1222 = vmatprep.subr.mxu0 0.0
    %1223 = vmatpush1.msra.mxu0 0.0
    %1224 = vmatprep.mubr.f32.mxu0 0.0
    %1225 = vmatmul.mubr.f32.gmra.mrb[0].mxu0 %v1155
    %v1226 = vpop.f32.mrb[0].mxu0
    %v1227 = vadd.f32 0.0, %v1226
    %v1228 = vpop.f32.mrb[0].mxu0
    %1229 = vmatprep.mubr.f32.mxu0 0.0
    %1230 = vmatmul.mubr.f32.gmra.mrb[0].mxu0 %v1158
    %v1231 = vpop.f32.mrb[0].mxu0
    %v1232 = vadd.f32 0.0, %v1231
    %v1233 = vpop.f32.mrb[0].mxu0
    %1234 = vdwg.mxu0
    %v1235 = vadd.f32 %v163, %v1227
    %v1236 = vadd.f32 %v168, %v1232
    %v1237 = vld [vmem:[%s8] sm:$0x1]
    %v1238 = vmul.f32 %v1235, %v1235
    %v1239 = vmul.f32 %v1236, %v1236
    %v1240 = vsel %vm180, %v1238, 0.0
    %1241 = vadd.xlane.f32.xlu0 %v1240
    %v1242 = vpop.xlane.xlu0 %1241
    %v1243 = vsel %vm180, %v1239, 0.0
    %1244 = vadd.xlane.f32.xlu0 %v1243
    %v1245 = vpop.xlane.xlu0 %1244
    %v1246 = vmul.f32 %v1242, %v187
    %v1247 = vmul.f32 %v1245, %v187
    %v1248 = vadd.f32 %v1246, 1e-06
    %v1249 = vadd.f32 %v1247, 1e-06
    %v1250 = vrsqrt.pop %v1248
    %v1251 = vrsqrt.pop %v1249
    %v1252 = vmul.f32 %v1235, %v1250
    %v1253 = vmul.f32 %v1236, %v1251
    %v1255 = vlaneseq
    %v1256 = vshrl.u32 %v1255, 7
    %v1257 = vsub.s32 0, %v1256
    %v1258 = vrot.slane %v1237, %v1257
    %v1260 = vmul.f32 %v1252, %v1258
    %v1261 = vmul.f32 %v1253, %v1258
    %v1262 = vld [vmem:[%s9] sm:$0xff]
    %v1263 = vld [vmem:[%s9 + $0x8] sm:$0xff]
    %v1264 = vld [vmem:[%s9 + $0x10] sm:$0xff]
    %v1265 = vld [vmem:[%s9 + $0x18] sm:$0xff]
    %v1267 = vsel %vm180, %v1260, 0
    %v1270 = vsel %vm180, %v1261, 0
    %1272 = vmatprep.subr.mxu0 0.0
    %1273 = vmatpush1.msra.mxu0 %v1262
    %1274 = vmatprep.subr.mxu0 0.0
    %1275 = vmatpush1.msra.mxu0 %v1263
    %1276 = vmatprep.subr.mxu0 0.0
    %1277 = vmatpush1.msra.mxu0 %v1264
    %1278 = vmatprep.subr.mxu0 0.0
    %1279 = vmatpush1.msra.mxu0 %v1265
    %1280 = vmatprep.subr.mxu0 0.0
    %1281 = vmatpush1.msra.mxu0 0.0
    %1282 = vmatprep.subr.mxu0 0.0
    %1283 = vmatpush1.msra.mxu0 0.0
    %1284 = vmatprep.subr.mxu0 0.0
    %1285 = vmatpush1.msra.mxu0 0.0
    %1286 = vmatprep.subr.mxu0 0.0
    %1287 = vmatpush1.msra.mxu0 0.0
    %1288 = vmatprep.subr.mxu0 0.0
    %1289 = vmatpush1.msra.mxu0 0.0
    %1290 = vmatprep.subr.mxu0 0.0
    %1291 = vmatpush1.msra.mxu0 0.0
    %1292 = vmatprep.subr.mxu0 0.0
    %1293 = vmatpush1.msra.mxu0 0.0
    %1294 = vmatprep.subr.mxu0 0.0
    %1295 = vmatpush1.msra.mxu0 0.0
    %1296 = vmatprep.subr.mxu0 0.0
    %1297 = vmatpush1.msra.mxu0 0.0
    %1298 = vmatprep.subr.mxu0 0.0
    %1299 = vmatpush1.msra.mxu0 0.0
    %1300 = vmatprep.subr.mxu0 0.0
    %1301 = vmatpush1.msra.mxu0 0.0
    %1302 = vmatprep.subr.mxu0 0.0
    %1303 = vmatpush1.msra.mxu0 0.0
    %1304 = vmatprep.subr.mxu0 0.0
    %1305 = vmatpush1.msra.mxu0 0.0
    %1306 = vmatprep.subr.mxu0 0.0
    %1307 = vmatpush1.msra.mxu0 0.0
    %1308 = vmatprep.subr.mxu0 0.0
    %1309 = vmatpush1.msra.mxu0 0.0
    %1310 = vmatprep.subr.mxu0 0.0
    %1311 = vmatpush1.msra.mxu0 0.0
    %1312 = vmatprep.subr.mxu0 0.0
    %1313 = vmatpush1.msra.mxu0 0.0
    %1314 = vmatprep.subr.mxu0 0.0
    %1315 = vmatpush1.msra.mxu0 0.0
    %1316 = vmatprep.subr.mxu0 0.0
    %1317 = vmatpush1.msra.mxu0 0.0
    %1318 = vmatprep.subr.mxu0 0.0
    %1319 = vmatpush1.msra.mxu0 0.0
    %1320 = vmatprep.subr.mxu0 0.0
    %1321 = vmatpush1.msra.mxu0 0.0
    %1322 = vmatprep.subr.mxu0 0.0
    %1323 = vmatpush1.msra.mxu0 0.0
    %1324 = vmatprep.subr.mxu0 0.0
    %1325 = vmatpush1.msra.mxu0 0.0
    %1326 = vmatprep.subr.mxu0 0.0
    %1327 = vmatpush1.msra.mxu0 0.0
    %1328 = vmatprep.subr.mxu0 0.0
    %1329 = vmatpush1.msra.mxu0 0.0
    %1330 = vmatprep.subr.mxu0 0.0
    %1331 = vmatpush1.msra.mxu0 0.0
    %1332 = vmatprep.subr.mxu0 0.0
    %1333 = vmatpush1.msra.mxu0 0.0
    %1334 = vmatprep.subr.mxu0 0.0
    %1335 = vmatpush1.msra.mxu0 0.0
    %1336 = vmatprep.mubr.f32.mxu0 0.0
    %1337 = vmatmul.mubr.f32.gmra.mrb[0].mxu0 %v1267
    %v1338 = vpop.f32.mrb[0].mxu0
    %v1339 = vadd.f32 0.0, %v1338
    %v1340 = vpop.f32.mrb[0].mxu0
    %1341 = vmatprep.mubr.f32.mxu0 0.0
    %1342 = vmatmul.mubr.f32.gmra.mrb[0].mxu0 %v1270
    %v1343 = vpop.f32.mrb[0].mxu0
    %v1344 = vadd.f32 0.0, %v1343
    %v1345 = vpop.f32.mrb[0].mxu0
    %1346 = vdwg.mxu0
    %v1347 = vxor.u32 %v1339, 2147483648
    %v1348 = vxor.u32 %v1344, 2147483648
    %v1349 = vmul.f32 %v1347, 1.442695
    %v1350 = vpow.pop %v1349
    %v1351 = vmul.f32 %v1348, 1.442695
    %v1352 = vpow.pop %v1351
    %v1353 = vadd.f32 %v1350, 1.0
    %v1354 = vadd.f32 %v1352, 1.0
    %v1355 = vrcp.pop %v1353
    %v1356 = vmul.f32 1.0, %v1355
    %v1357 = vrcp.pop %v1354
    %v1358 = vmul.f32 1.0, %v1357
    %v1359 = vmul.f32 %v1339, %v1356
    %v1360 = vmul.f32 %v1344, %v1358
    %1363 = vrot.lane.b32.xlu0 %v1339, 64
    %v1364 = vpop.permute.xlu0 %1363
    %1365 = vrot.lane.b32.xlu0 %v1344, 64
    %v1366 = vpop.permute.xlu0 %1365
    %v1369 = vmul.f32 %v1359, %v1364
    %v1370 = vmul.f32 %v1360, %v1366
    %v1371 = vld [vmem:[%s10] sm:$0xff]
    %v1372 = vld [vmem:[%s10 + $0x8] sm:$0xff]
    %v1373 = vld [vmem:[%s10 + $0x10] sm:$0xff]
    %v1374 = vld [vmem:[%s10 + $0x18] sm:$0xff]
    %v1375 = vld [vmem:[%s10 + $0x20] sm:$0xff]
    %v1376 = vld [vmem:[%s10 + $0x28] sm:$0xff]
    %v1377 = vld [vmem:[%s10 + $0x30] sm:$0xff]
    %v1378 = vld [vmem:[%s10 + $0x38] sm:$0xff]
    %vm1379 = vcmask 523264
    %v1381 = vsel %vm1379, %v1369, 0
    %v1384 = vsel %vm1379, %v1370, 0
    %1386 = vmatprep.subr.mxu0 0.0
    %1387 = vmatpush1.msra.mxu0 %v1371
    %1388 = vmatprep.subr.mxu0 0.0
    %1389 = vmatpush1.msra.mxu0 %v1372
    %1390 = vmatprep.subr.mxu0 0.0
    %1391 = vmatpush1.msra.mxu0 %v1373
    %1392 = vmatprep.subr.mxu0 0.0
    %1393 = vmatpush1.msra.mxu0 %v1374
    %1394 = vmatprep.subr.mxu0 0.0
    %1395 = vmatpush1.msra.mxu0 %v1375
    %1396 = vmatprep.subr.mxu0 0.0
    %1397 = vmatpush1.msra.mxu0 %v1376
    %1398 = vmatprep.subr.mxu0 0.0
    %1399 = vmatpush1.msra.mxu0 %v1377
    %1400 = vmatprep.subr.mxu0 0.0
    %1401 = vmatpush1.msra.mxu0 %v1378
    %1402 = vmatprep.subr.mxu0 0.0
    %1403 = vmatpush1.msra.mxu0 0.0
    %1404 = vmatprep.subr.mxu0 0.0
    %1405 = vmatpush1.msra.mxu0 0.0
    %1406 = vmatprep.subr.mxu0 0.0
    %1407 = vmatpush1.msra.mxu0 0.0
    %1408 = vmatprep.subr.mxu0 0.0
    %1409 = vmatpush1.msra.mxu0 0.0
    %1410 = vmatprep.subr.mxu0 0.0
    %1411 = vmatpush1.msra.mxu0 0.0
    %1412 = vmatprep.subr.mxu0 0.0
    %1413 = vmatpush1.msra.mxu0 0.0
    %1414 = vmatprep.subr.mxu0 0.0
    %1415 = vmatpush1.msra.mxu0 0.0
    %1416 = vmatprep.subr.mxu0 0.0
    %1417 = vmatpush1.msra.mxu0 0.0
    %1418 = vmatprep.subr.mxu0 0.0
    %1419 = vmatpush1.msra.mxu0 0.0
    %1420 = vmatprep.subr.mxu0 0.0
    %1421 = vmatpush1.msra.mxu0 0.0
    %1422 = vmatprep.subr.mxu0 0.0
    %1423 = vmatpush1.msra.mxu0 0.0
    %1424 = vmatprep.subr.mxu0 0.0
    %1425 = vmatpush1.msra.mxu0 0.0
    %1426 = vmatprep.subr.mxu0 0.0
    %1427 = vmatpush1.msra.mxu0 0.0
    %1428 = vmatprep.subr.mxu0 0.0
    %1429 = vmatpush1.msra.mxu0 0.0
    %1430 = vmatprep.subr.mxu0 0.0
    %1431 = vmatpush1.msra.mxu0 0.0
    %1432 = vmatprep.subr.mxu0 0.0
    %1433 = vmatpush1.msra.mxu0 0.0
    %1434 = vmatprep.subr.mxu0 0.0
    %1435 = vmatpush1.msra.mxu0 0.0
    %1436 = vmatprep.subr.mxu0 0.0
    %1437 = vmatpush1.msra.mxu0 0.0
    %1438 = vmatprep.subr.mxu0 0.0
    %1439 = vmatpush1.msra.mxu0 0.0
    %1440 = vmatprep.subr.mxu0 0.0
    %1441 = vmatpush1.msra.mxu0 0.0
    %1442 = vmatprep.subr.mxu0 0.0
    %1443 = vmatpush1.msra.mxu0 0.0
    %1444 = vmatprep.subr.mxu0 0.0
    %1445 = vmatpush1.msra.mxu0 0.0
    %1446 = vmatprep.subr.mxu0 0.0
    %1447 = vmatpush1.msra.mxu0 0.0
    %1448 = vmatprep.subr.mxu0 0.0
    %1449 = vmatpush1.msra.mxu0 0.0
    %1450 = vmatprep.mubr.f32.mxu0 0.0
    %1451 = vmatmul.mubr.f32.gmra.mrb[0].mxu0 %v1381
    %v1452 = vpop.f32.mrb[0].mxu0
    %v1453 = vadd.f32 0.0, %v1452
    %v1454 = vpop.f32.mrb[0].mxu0
    %1455 = vmatprep.mubr.f32.mxu0 0.0
    %1456 = vmatmul.mubr.f32.gmra.mrb[0].mxu0 %v1384
    %v1457 = vpop.f32.mrb[0].mxu0
    %v1458 = vadd.f32 0.0, %v1457
    %v1459 = vpop.f32.mrb[0].mxu0
    %1460 = vdwg.mxu0
    %v1461 = vadd.f32 %v1235, %v1453
    %v1462 = vadd.f32 %v1236, %v1458
    %s1463 = scalar_lea.vmem %s5, 1
    %v1464 = vld [vmem:[%s1463] sm:$0x1]
    %v1465 = vmul.f32 %v1461, %v1461
    %v1466 = vmul.f32 %v1462, %v1462
    %v1467 = vsel %vm180, %v1465, 0.0
    %1468 = vadd.xlane.f32.xlu0 %v1467
    %v1469 = vpop.xlane.xlu0 %1468
    %v1470 = vsel %vm180, %v1466, 0.0
    %1471 = vadd.xlane.f32.xlu0 %v1470
    %v1472 = vpop.xlane.xlu0 %1471
    %v1473 = vmul.f32 %v1469, %v187
    %v1474 = vmul.f32 %v1472, %v187
    %v1475 = vadd.f32 %v1473, 1e-06
    %v1476 = vadd.f32 %v1474, 1e-06
    %v1477 = vrsqrt.pop %v1475
    %v1478 = vrsqrt.pop %v1476
    %v1479 = vmul.f32 %v1461, %v1477
    %v1480 = vmul.f32 %v1462, %v1478
    %v1482 = vlaneseq
    %v1483 = vshrl.u32 %v1482, 7
    %v1484 = vsub.s32 0, %v1483
    %v1485 = vrot.slane %v1464, %v1484
    %v1487 = vmul.f32 %v1479, %v1485
    %v1488 = vmul.f32 %v1480, %v1485
    %s1489 = scalar_lea.vmem %s6, 64
    %v1490 = vld [vmem:[%s1489] sm:$0xff]
    %v1491 = vld [vmem:[%s1489 + $0x8] sm:$0xff]
    %v1492 = vld [vmem:[%s1489 + $0x10] sm:$0xff]
    %v1493 = vld [vmem:[%s1489 + $0x18] sm:$0xff]
    %v1494 = vld [vmem:[%s1489 + $0x20] sm:$0xff]
    %v1495 = vld [vmem:[%s1489 + $0x28] sm:$0xff]
    %v1496 = vld [vmem:[%s1489 + $0x30] sm:$0xff]
    %v1497 = vld [vmem:[%s1489 + $0x38] sm:$0xff]
    %v1499 = vsel %vm180, %v1487, 0
    %v1502 = vsel %vm180, %v1488, 0
    %1504 = vmatprep.subr.mxu0 %v1491
    %1505 = vmatpush1.msra.mxu0 %v1490
    %1506 = vmatprep.subr.mxu0 %v1493
    %1507 = vmatpush1.msra.mxu0 %v1492
    %1508 = vmatprep.subr.mxu0 %v1495
    %1509 = vmatpush1.msra.mxu0 %v1494
    %1510 = vmatprep.subr.mxu0 %v1497
    %1511 = vmatpush1.msra.mxu0 %v1496
    %1512 = vmatprep.subr.mxu0 0.0
    %1513 = vmatpush1.msra.mxu0 0.0
    %1514 = vmatprep.subr.mxu0 0.0
    %1515 = vmatpush1.msra.mxu0 0.0
    %1516 = vmatprep.subr.mxu0 0.0
    %1517 = vmatpush1.msra.mxu0 0.0
    %1518 = vmatprep.subr.mxu0 0.0
    %1519 = vmatpush1.msra.mxu0 0.0
    %1520 = vmatprep.subr.mxu0 0.0
    %1521 = vmatpush1.msra.mxu0 0.0
    %1522 = vmatprep.subr.mxu0 0.0
    %1523 = vmatpush1.msra.mxu0 0.0
    %1524 = vmatprep.subr.mxu0 0.0
    %1525 = vmatpush1.msra.mxu0 0.0
    %1526 = vmatprep.subr.mxu0 0.0
    %1527 = vmatpush1.msra.mxu0 0.0
    %1528 = vmatprep.subr.mxu0 0.0
    %1529 = vmatpush1.msra.mxu0 0.0
    %1530 = vmatprep.subr.mxu0 0.0
    %1531 = vmatpush1.msra.mxu0 0.0
    %1532 = vmatprep.subr.mxu0 0.0
    %1533 = vmatpush1.msra.mxu0 0.0
    %1534 = vmatprep.subr.mxu0 0.0
    %1535 = vmatpush1.msra.mxu0 0.0
    %1536 = vmatprep.subr.mxu0 0.0
    %1537 = vmatpush1.msra.mxu0 0.0
    %1538 = vmatprep.subr.mxu0 0.0
    %1539 = vmatpush1.msra.mxu0 0.0
    %1540 = vmatprep.subr.mxu0 0.0
    %1541 = vmatpush1.msra.mxu0 0.0
    %1542 = vmatprep.subr.mxu0 0.0
    %1543 = vmatpush1.msra.mxu0 0.0
    %1544 = vmatprep.subr.mxu0 0.0
    %1545 = vmatpush1.msra.mxu0 0.0
    %1546 = vmatprep.subr.mxu0 0.0
    %1547 = vmatpush1.msra.mxu0 0.0
    %1548 = vmatprep.subr.mxu0 0.0
    %1549 = vmatpush1.msra.mxu0 0.0
    %1550 = vmatprep.subr.mxu0 0.0
    %1551 = vmatpush1.msra.mxu0 0.0
    %1552 = vmatprep.subr.mxu0 0.0
    %1553 = vmatpush1.msra.mxu0 0.0
    %1554 = vmatprep.subr.mxu0 0.0
    %1555 = vmatpush1.msra.mxu0 0.0
    %1556 = vmatprep.subr.mxu0 0.0
    %1557 = vmatpush1.msra.mxu0 0.0
    %1558 = vmatprep.subr.mxu0 0.0
    %1559 = vmatpush1.msra.mxu0 0.0
    %1560 = vmatprep.subr.mxu0 0.0
    %1561 = vmatpush1.msra.mxu0 0.0
    %1562 = vmatprep.subr.mxu0 0.0
    %1563 = vmatpush1.msra.mxu0 0.0
    %1564 = vmatprep.subr.mxu0 0.0
    %1565 = vmatpush1.msra.mxu0 0.0
    %1566 = vmatprep.subr.mxu0 0.0
    %1567 = vmatpush1.msra.mxu0 0.0
    %1568 = vmatprep.mubr.f32.mxu0 0.0
    %1569 = vmatmul.mubr.f32.gmra.mrb[0].mxu0 %v1499
    %v1570 = vpop.f32.mrb[0].mxu0
    %v1571 = vadd.f32 0.0, %v1570
    %v1572 = vpop.f32.mrb[0].mxu0
    %v1573 = vadd.f32 0.0, %v1572
    %1574 = vmatprep.mubr.f32.mxu0 0.0
    %1575 = vmatmul.mubr.f32.gmra.mrb[0].mxu0 %v1502
    %v1576 = vpop.f32.mrb[0].mxu0
    %v1577 = vadd.f32 0.0, %v1576
    %v1578 = vpop.f32.mrb[0].mxu0
    %v1579 = vadd.f32 0.0, %v1578
    %1580 = vdwg.mxu0
    %v1581 = vmul.f32 %v1571, %v171
    %v1582 = vmul.f32 %v1577, %v172
    %v1583 = vmul.f32 %v1571, %v300
    %v1584 = vmul.f32 %v1577, %v302
    %1587 = vrot.lane.b32.xlu0 %v1583, 64
    %v1588 = vpop.permute.xlu0 %1587
    %1589 = vrot.lane.b32.xlu0 %v1584, 64
    %v1590 = vpop.permute.xlu0 %1589
    %v1593 = vadd.f32 %v1581, %v1588
    %v1594 = vadd.f32 %v1582, %v1590
    %1597 = vrot.lane.b32.xlu0 %v1593, 96
    %v1598 = vpop.permute.xlu0 %1597
    %1599 = vrot.lane.b32.xlu0 %v1594, 96
    %v1600 = vpop.permute.xlu0 %1599
    %v1601 = vsel %vm323, %v1593, 0
    %v1603 = vsel %vm323, %v1594, 0
    %v1605 = vsel %vm323, %v1598, 0
    %v1607 = vsel %vm323, %v1600, 0
    %1609 = vmatprep.subr.mxu0 0.0
    %1610 = vmatpush1.xpose.msra.mxu0 %v1605
    %1611 = vmatprep.subr.mxu0 0.0
    %1612 = vmatpush1.xpose.msra.mxu0 %v1607
    %1613 = vmatprep.subr.mxu0 0.0
    %1614 = vmatpush1.xpose.msra.mxu0 0.0
    %1615 = vmatprep.subr.mxu0 0.0
    %1616 = vmatpush1.xpose.msra.mxu0 0.0
    %1617 = vmatprep.subr.mxu0 0.0
    %1618 = vmatpush1.xpose.msra.mxu0 0.0
    %1619 = vmatprep.subr.mxu0 0.0
    %1620 = vmatpush1.xpose.msra.mxu0 0.0
    %1621 = vmatprep.subr.mxu0 0.0
    %1622 = vmatpush1.xpose.msra.mxu0 0.0
    %1623 = vmatprep.subr.mxu0 0.0
    %1624 = vmatpush1.xpose.msra.mxu0 0.0
    %1625 = vmatprep.subr.mxu0 0.0
    %1626 = vmatpush1.xpose.msra.mxu0 0.0
    %1627 = vmatprep.subr.mxu0 0.0
    %1628 = vmatpush1.xpose.msra.mxu0 0.0
    %1629 = vmatprep.subr.mxu0 0.0
    %1630 = vmatpush1.xpose.msra.mxu0 0.0
    %1631 = vmatprep.subr.mxu0 0.0
    %1632 = vmatpush1.xpose.msra.mxu0 0.0
    %1633 = vmatprep.subr.mxu0 0.0
    %1634 = vmatpush1.xpose.msra.mxu0 0.0
    %1635 = vmatprep.subr.mxu0 0.0
    %1636 = vmatpush1.xpose.msra.mxu0 0.0
    %1637 = vmatprep.subr.mxu0 0.0
    %1638 = vmatpush1.xpose.msra.mxu0 0.0
    %1639 = vmatprep.subr.mxu0 0.0
    %1640 = vmatpush1.xpose.msra.mxu0 0.0
    %1641 = vmatprep.subr.mxu0 0.0
    %1642 = vmatpush1.xpose.msra.mxu0 0.0
    %1643 = vmatprep.subr.mxu0 0.0
    %1644 = vmatpush1.xpose.msra.mxu0 0.0
    %1645 = vmatprep.subr.mxu0 0.0
    %1646 = vmatpush1.xpose.msra.mxu0 0.0
    %1647 = vmatprep.subr.mxu0 0.0
    %1648 = vmatpush1.xpose.msra.mxu0 0.0
    %1649 = vmatprep.subr.mxu0 0.0
    %1650 = vmatpush1.xpose.msra.mxu0 0.0
    %1651 = vmatprep.subr.mxu0 0.0
    %1652 = vmatpush1.xpose.msra.mxu0 0.0
    %1653 = vmatprep.subr.mxu0 0.0
    %1654 = vmatpush1.xpose.msra.mxu0 0.0
    %1655 = vmatprep.subr.mxu0 0.0
    %1656 = vmatpush1.xpose.msra.mxu0 0.0
    %1657 = vmatprep.subr.mxu0 0.0
    %1658 = vmatpush1.xpose.msra.mxu0 0.0
    %1659 = vmatprep.subr.mxu0 0.0
    %1660 = vmatpush1.xpose.msra.mxu0 0.0
    %1661 = vmatprep.subr.mxu0 0.0
    %1662 = vmatpush1.xpose.msra.mxu0 0.0
    %1663 = vmatprep.subr.mxu0 0.0
    %1664 = vmatpush1.xpose.msra.mxu0 0.0
    %1665 = vmatprep.subr.mxu0 0.0
    %1666 = vmatpush1.xpose.msra.mxu0 0.0
    %1667 = vmatprep.subr.mxu0 0.0
    %1668 = vmatpush1.xpose.msra.mxu0 0.0
    %1669 = vmatprep.subr.mxu0 0.0
    %1670 = vmatpush1.xpose.msra.mxu0 0.0
    %1671 = vmatprep.subr.mxu0 0.0
    %1672 = vmatpush1.xpose.msra.mxu0 0.0
    %1673 = vmatprep.mubr.f32.mxu0 0.0
    %1674 = vmatmul.mubr.f32.gmra.mrb[0].mxu0 %v1601
    %v1675 = vpop.f32.mrb[0].mxu0
    %v1676 = vadd.f32 %v175, %v1675
    %v1677 = vpop.f32.mrb[0].mxu0
    %1678 = vmatprep.mubr.f32.mxu0 0.0
    %1679 = vmatmul.mubr.f32.gmra.mrb[0].mxu0 %v1603
    %v1680 = vpop.f32.mrb[0].mxu0
    %v1681 = vadd.f32 %v176, %v1680
    %v1682 = vpop.f32.mrb[0].mxu0
    %1683 = vdwg.mxu0
    %v1684 = vsel %vm407, %v1676, -inf
    %1685 = vmax.xlane.f32.xlu0 %v1684
    %v1686 = vpop.xlane.xlu0 %1685
    %v1687 = vsel %vm407, %v1681, -inf
    %1688 = vmax.xlane.f32.xlu0 %v1687
    %v1689 = vpop.xlane.xlu0 %1688
    %v1690 = vsub.f32 %v1676, %v1686
    %v1691 = vsub.f32 %v1681, %v1689
    %v1692 = vmul.f32 %v1690, 1.442695
    %v1693 = vpow.pop %v1692
    %v1694 = vmul.f32 %v1691, 1.442695
    %v1695 = vpow.pop %v1694
    %v1696 = vsel %vm407, %v1693, 0.0
    %1697 = vadd.xlane.f32.xlu0 %v1696
    %v1698 = vpop.xlane.xlu0 %1697
    %v1699 = vsel %vm407, %v1695, 0.0
    %1700 = vadd.xlane.f32.xlu0 %v1699
    %v1701 = vpop.xlane.xlu0 %1700
    %v1702 = vrcp.pop %v1698
    %v1703 = vrcp.pop %v1701
    %v1704 = vmul.f32 %v1693, %v1702
    %v1705 = vmul.f32 %v1695, %v1703
    %v1707 = vsel %vm407, %v1704, 0
    %v1710 = vsel %vm407, %v1705, 0
    %1712 = vmatprep.subr.mxu0 0.0
    %1713 = vmatpush1.msra.mxu0 %v1573
    %1714 = vmatprep.subr.mxu0 0.0
    %1715 = vmatpush1.msra.mxu0 %v1579
    %1716 = vmatprep.subr.mxu0 0.0
    %1717 = vmatpush1.msra.mxu0 0.0
    %1718 = vmatprep.subr.mxu0 0.0
    %1719 = vmatpush1.msra.mxu0 0.0
    %1720 = vmatprep.subr.mxu0 0.0
    %1721 = vmatpush1.msra.mxu0 0.0
    %1722 = vmatprep.subr.mxu0 0.0
    %1723 = vmatpush1.msra.mxu0 0.0
    %1724 = vmatprep.subr.mxu0 0.0
    %1725 = vmatpush1.msra.mxu0 0.0
    %1726 = vmatprep.subr.mxu0 0.0
    %1727 = vmatpush1.msra.mxu0 0.0
    %1728 = vmatprep.subr.mxu0 0.0
    %1729 = vmatpush1.msra.mxu0 0.0
    %1730 = vmatprep.subr.mxu0 0.0
    %1731 = vmatpush1.msra.mxu0 0.0
    %1732 = vmatprep.subr.mxu0 0.0
    %1733 = vmatpush1.msra.mxu0 0.0
    %1734 = vmatprep.subr.mxu0 0.0
    %1735 = vmatpush1.msra.mxu0 0.0
    %1736 = vmatprep.subr.mxu0 0.0
    %1737 = vmatpush1.msra.mxu0 0.0
    %1738 = vmatprep.subr.mxu0 0.0
    %1739 = vmatpush1.msra.mxu0 0.0
    %1740 = vmatprep.subr.mxu0 0.0
    %1741 = vmatpush1.msra.mxu0 0.0
    %1742 = vmatprep.subr.mxu0 0.0
    %1743 = vmatpush1.msra.mxu0 0.0
    %1744 = vmatprep.subr.mxu0 0.0
    %1745 = vmatpush1.msra.mxu0 0.0
    %1746 = vmatprep.subr.mxu0 0.0
    %1747 = vmatpush1.msra.mxu0 0.0
    %1748 = vmatprep.subr.mxu0 0.0
    %1749 = vmatpush1.msra.mxu0 0.0
    %1750 = vmatprep.subr.mxu0 0.0
    %1751 = vmatpush1.msra.mxu0 0.0
    %1752 = vmatprep.subr.mxu0 0.0
    %1753 = vmatpush1.msra.mxu0 0.0
    %1754 = vmatprep.subr.mxu0 0.0
    %1755 = vmatpush1.msra.mxu0 0.0
    %1756 = vmatprep.subr.mxu0 0.0
    %1757 = vmatpush1.msra.mxu0 0.0
    %1758 = vmatprep.subr.mxu0 0.0
    %1759 = vmatpush1.msra.mxu0 0.0
    %1760 = vmatprep.subr.mxu0 0.0
    %1761 = vmatpush1.msra.mxu0 0.0
    %1762 = vmatprep.subr.mxu0 0.0
    %1763 = vmatpush1.msra.mxu0 0.0
    %1764 = vmatprep.subr.mxu0 0.0
    %1765 = vmatpush1.msra.mxu0 0.0
    %1766 = vmatprep.subr.mxu0 0.0
    %1767 = vmatpush1.msra.mxu0 0.0
    %1768 = vmatprep.subr.mxu0 0.0
    %1769 = vmatpush1.msra.mxu0 0.0
    %1770 = vmatprep.subr.mxu0 0.0
    %1771 = vmatpush1.msra.mxu0 0.0
    %1772 = vmatprep.subr.mxu0 0.0
    %1773 = vmatpush1.msra.mxu0 0.0
    %1774 = vmatprep.subr.mxu0 0.0
    %1775 = vmatpush1.msra.mxu0 0.0
    %1776 = vmatprep.mubr.f32.mxu0 0.0
    %1777 = vmatmul.mubr.f32.gmra.mrb[0].mxu0 %v1707
    %v1778 = vpop.f32.mrb[0].mxu0
    %v1779 = vadd.f32 0.0, %v1778
    %v1780 = vpop.f32.mrb[0].mxu0
    %1781 = vmatprep.mubr.f32.mxu0 0.0
    %1782 = vmatmul.mubr.f32.gmra.mrb[0].mxu0 %v1710
    %v1783 = vpop.f32.mrb[0].mxu0
    %v1784 = vadd.f32 0.0, %v1783
    %v1785 = vpop.f32.mrb[0].mxu0
    %1786 = vdwg.mxu0
    %1787 = vst.msk [vmem:[#allocation2] sm:$0xff] %vm323, %v1779
    %1788 = vst.msk [vmem:[#allocation2 + $0x8] sm:$0xff] %vm323, %v1784
    %1789 = vrot.lane.b32.xlu0 %v1593, 120
    %v1790 = vpop.permute.xlu0 %1789
    %1791 = vrot.lane.b32.xlu0 %v1594, 120
    %v1792 = vpop.permute.xlu0 %1791
    %1793 = vrot.lane.b32.xlu0 %v1593, 88
    %v1794 = vpop.permute.xlu0 %1793
    %1795 = vrot.lane.b32.xlu0 %v1594, 88
    %v1796 = vpop.permute.xlu0 %1795
    %v1797 = vsel %vm323, %v1790, 0
    %v1799 = vsel %vm323, %v1792, 0
    %v1801 = vsel %vm323, %v1794, 0
    %v1803 = vsel %vm323, %v1796, 0
    %1805 = vmatprep.subr.mxu0 0.0
    %1806 = vmatpush1.xpose.msra.mxu0 %v1801
    %1807 = vmatprep.subr.mxu0 0.0
    %1808 = vmatpush1.xpose.msra.mxu0 %v1803
    %1809 = vmatprep.subr.mxu0 0.0
    %1810 = vmatpush1.xpose.msra.mxu0 0.0
    %1811 = vmatprep.subr.mxu0 0.0
    %1812 = vmatpush1.xpose.msra.mxu0 0.0
    %1813 = vmatprep.subr.mxu0 0.0
    %1814 = vmatpush1.xpose.msra.mxu0 0.0
    %1815 = vmatprep.subr.mxu0 0.0
    %1816 = vmatpush1.xpose.msra.mxu0 0.0
    %1817 = vmatprep.subr.mxu0 0.0
    %1818 = vmatpush1.xpose.msra.mxu0 0.0
    %1819 = vmatprep.subr.mxu0 0.0
    %1820 = vmatpush1.xpose.msra.mxu0 0.0
    %1821 = vmatprep.subr.mxu0 0.0
    %1822 = vmatpush1.xpose.msra.mxu0 0.0
    %1823 = vmatprep.subr.mxu0 0.0
    %1824 = vmatpush1.xpose.msra.mxu0 0.0
    %1825 = vmatprep.subr.mxu0 0.0
    %1826 = vmatpush1.xpose.msra.mxu0 0.0
    %1827 = vmatprep.subr.mxu0 0.0
    %1828 = vmatpush1.xpose.msra.mxu0 0.0
    %1829 = vmatprep.subr.mxu0 0.0
    %1830 = vmatpush1.xpose.msra.mxu0 0.0
    %1831 = vmatprep.subr.mxu0 0.0
    %1832 = vmatpush1.xpose.msra.mxu0 0.0
    %1833 = vmatprep.subr.mxu0 0.0
    %1834 = vmatpush1.xpose.msra.mxu0 0.0
    %1835 = vmatprep.subr.mxu0 0.0
    %1836 = vmatpush1.xpose.msra.mxu0 0.0
    %1837 = vmatprep.subr.mxu0 0.0
    %1838 = vmatpush1.xpose.msra.mxu0 0.0
    %1839 = vmatprep.subr.mxu0 0.0
    %1840 = vmatpush1.xpose.msra.mxu0 0.0
    %1841 = vmatprep.subr.mxu0 0.0
    %1842 = vmatpush1.xpose.msra.mxu0 0.0
    %1843 = vmatprep.subr.mxu0 0.0
    %1844 = vmatpush1.xpose.msra.mxu0 0.0
    %1845 = vmatprep.subr.mxu0 0.0
    %1846 = vmatpush1.xpose.msra.mxu0 0.0
    %1847 = vmatprep.subr.mxu0 0.0
    %1848 = vmatpush1.xpose.msra.mxu0 0.0
    %1849 = vmatprep.subr.mxu0 0.0
    %1850 = vmatpush1.xpose.msra.mxu0 0.0
    %1851 = vmatprep.subr.mxu0 0.0
    %1852 = vmatpush1.xpose.msra.mxu0 0.0
    %1853 = vmatprep.subr.mxu0 0.0
    %1854 = vmatpush1.xpose.msra.mxu0 0.0
    %1855 = vmatprep.subr.mxu0 0.0
    %1856 = vmatpush1.xpose.msra.mxu0 0.0
    %1857 = vmatprep.subr.mxu0 0.0
    %1858 = vmatpush1.xpose.msra.mxu0 0.0
    %1859 = vmatprep.subr.mxu0 0.0
    %1860 = vmatpush1.xpose.msra.mxu0 0.0
    %1861 = vmatprep.subr.mxu0 0.0
    %1862 = vmatpush1.xpose.msra.mxu0 0.0
    %1863 = vmatprep.subr.mxu0 0.0
    %1864 = vmatpush1.xpose.msra.mxu0 0.0
    %1865 = vmatprep.subr.mxu0 0.0
    %1866 = vmatpush1.xpose.msra.mxu0 0.0
    %1867 = vmatprep.subr.mxu0 0.0
    %1868 = vmatpush1.xpose.msra.mxu0 0.0
    %1869 = vmatprep.mubr.f32.mxu0 0.0
    %1870 = vmatmul.mubr.f32.gmra.mrb[0].mxu0 %v1797
    %v1871 = vpop.f32.mrb[0].mxu0
    %v1872 = vadd.f32 %v175, %v1871
    %v1873 = vpop.f32.mrb[0].mxu0
    %1874 = vmatprep.mubr.f32.mxu0 0.0
    %1875 = vmatmul.mubr.f32.gmra.mrb[0].mxu0 %v1799
    %v1876 = vpop.f32.mrb[0].mxu0
    %v1877 = vadd.f32 %v176, %v1876
    %v1878 = vpop.f32.mrb[0].mxu0
    %1879 = vdwg.mxu0
    %v1880 = vsel %vm407, %v1872, -inf
    %1881 = vmax.xlane.f32.xlu0 %v1880
    %v1882 = vpop.xlane.xlu0 %1881
    %v1883 = vsel %vm407, %v1877, -inf
    %1884 = vmax.xlane.f32.xlu0 %v1883
    %v1885 = vpop.xlane.xlu0 %1884
    %v1886 = vsub.f32 %v1872, %v1882
    %v1887 = vsub.f32 %v1877, %v1885
    %v1888 = vmul.f32 %v1886, 1.442695
    %v1889 = vpow.pop %v1888
    %v1890 = vmul.f32 %v1887, 1.442695
    %v1891 = vpow.pop %v1890
    %v1892 = vsel %vm407, %v1889, 0.0
    %1893 = vadd.xlane.f32.xlu0 %v1892
    %v1894 = vpop.xlane.xlu0 %1893
    %v1895 = vsel %vm407, %v1891, 0.0
    %1896 = vadd.xlane.f32.xlu0 %v1895
    %v1897 = vpop.xlane.xlu0 %1896
    %v1898 = vrcp.pop %v1894
    %v1899 = vrcp.pop %v1897
    %v1900 = vmul.f32 %v1889, %v1898
    %v1901 = vmul.f32 %v1891, %v1899
    %1904 = vrot.lane.b32.xlu0 %v1573, 120
    %v1905 = vpop.permute.xlu0 %1904
    %1906 = vrot.lane.b32.xlu0 %v1579, 120
    %v1907 = vpop.permute.xlu0 %1906
    %v1911 = vsel %vm407, %v1900, 0
    %v1914 = vsel %vm407, %v1901, 0
    %1916 = vmatprep.subr.mxu0 0.0
    %1917 = vmatpush1.msra.mxu0 %v1905
    %1918 = vmatprep.subr.mxu0 0.0
    %1919 = vmatpush1.msra.mxu0 %v1907
    %1920 = vmatprep.subr.mxu0 0.0
    %1921 = vmatpush1.msra.mxu0 0.0
    %1922 = vmatprep.subr.mxu0 0.0
    %1923 = vmatpush1.msra.mxu0 0.0
    %1924 = vmatprep.subr.mxu0 0.0
    %1925 = vmatpush1.msra.mxu0 0.0
    %1926 = vmatprep.subr.mxu0 0.0
    %1927 = vmatpush1.msra.mxu0 0.0
    %1928 = vmatprep.subr.mxu0 0.0
    %1929 = vmatpush1.msra.mxu0 0.0
    %1930 = vmatprep.subr.mxu0 0.0
    %1931 = vmatpush1.msra.mxu0 0.0
    %1932 = vmatprep.subr.mxu0 0.0
    %1933 = vmatpush1.msra.mxu0 0.0
    %1934 = vmatprep.subr.mxu0 0.0
    %1935 = vmatpush1.msra.mxu0 0.0
    %1936 = vmatprep.subr.mxu0 0.0
    %1937 = vmatpush1.msra.mxu0 0.0
    %1938 = vmatprep.subr.mxu0 0.0
    %1939 = vmatpush1.msra.mxu0 0.0
    %1940 = vmatprep.subr.mxu0 0.0
    %1941 = vmatpush1.msra.mxu0 0.0
    %1942 = vmatprep.subr.mxu0 0.0
    %1943 = vmatpush1.msra.mxu0 0.0
    %1944 = vmatprep.subr.mxu0 0.0
    %1945 = vmatpush1.msra.mxu0 0.0
    %1946 = vmatprep.subr.mxu0 0.0
    %1947 = vmatpush1.msra.mxu0 0.0
    %1948 = vmatprep.subr.mxu0 0.0
    %1949 = vmatpush1.msra.mxu0 0.0
    %1950 = vmatprep.subr.mxu0 0.0
    %1951 = vmatpush1.msra.mxu0 0.0
    %1952 = vmatprep.subr.mxu0 0.0
    %1953 = vmatpush1.msra.mxu0 0.0
    %1954 = vmatprep.subr.mxu0 0.0
    %1955 = vmatpush1.msra.mxu0 0.0
    %1956 = vmatprep.subr.mxu0 0.0
    %1957 = vmatpush1.msra.mxu0 0.0
    %1958 = vmatprep.subr.mxu0 0.0
    %1959 = vmatpush1.msra.mxu0 0.0
    %1960 = vmatprep.subr.mxu0 0.0
    %1961 = vmatpush1.msra.mxu0 0.0
    %1962 = vmatprep.subr.mxu0 0.0
    %1963 = vmatpush1.msra.mxu0 0.0
    %1964 = vmatprep.subr.mxu0 0.0
    %1965 = vmatpush1.msra.mxu0 0.0
    %1966 = vmatprep.subr.mxu0 0.0
    %1967 = vmatpush1.msra.mxu0 0.0
    %1968 = vmatprep.subr.mxu0 0.0
    %1969 = vmatpush1.msra.mxu0 0.0
    %1970 = vmatprep.subr.mxu0 0.0
    %1971 = vmatpush1.msra.mxu0 0.0
    %1972 = vmatprep.subr.mxu0 0.0
    %1973 = vmatpush1.msra.mxu0 0.0
    %1974 = vmatprep.subr.mxu0 0.0
    %1975 = vmatpush1.msra.mxu0 0.0
    %1976 = vmatprep.subr.mxu0 0.0
    %1977 = vmatpush1.msra.mxu0 0.0
    %1978 = vmatprep.subr.mxu0 0.0
    %1979 = vmatpush1.msra.mxu0 0.0
    %1980 = vmatprep.mubr.f32.mxu0 0.0
    %1981 = vmatmul.mubr.f32.gmra.mrb[0].mxu0 %v1911
    %v1982 = vpop.f32.mrb[0].mxu0
    %v1983 = vadd.f32 0.0, %v1982
    %v1984 = vpop.f32.mrb[0].mxu0
    %1985 = vmatprep.mubr.f32.mxu0 0.0
    %1986 = vmatmul.mubr.f32.gmra.mrb[0].mxu0 %v1914
    %v1987 = vpop.f32.mrb[0].mxu0
    %v1988 = vadd.f32 0.0, %v1987
    %v1989 = vpop.f32.mrb[0].mxu0
    %1990 = vdwg.mxu0
    %1993 = vrot.lane.b32.xlu0 %v1983, 8
    %v1994 = vpop.permute.xlu0 %1993
    %1995 = vrot.lane.b32.xlu0 %v1988, 8
    %v1996 = vpop.permute.xlu0 %1995
    %1999 = vst.msk [vmem:[#allocation2] sm:$0xff] %vm723, %v1994
    %2000 = vst.msk [vmem:[#allocation2 + $0x8] sm:$0xff] %vm723, %v1996
    %2001 = vrot.lane.b32.xlu0 %v1593, 112
    %v2002 = vpop.permute.xlu0 %2001
    %2003 = vrot.lane.b32.xlu0 %v1594, 112
    %v2004 = vpop.permute.xlu0 %2003
    %2005 = vrot.lane.b32.xlu0 %v1593, 80
    %v2006 = vpop.permute.xlu0 %2005
    %2007 = vrot.lane.b32.xlu0 %v1594, 80
    %v2008 = vpop.permute.xlu0 %2007
    %v2009 = vsel %vm323, %v2002, 0
    %v2011 = vsel %vm323, %v2004, 0
    %v2013 = vsel %vm323, %v2006, 0
    %v2015 = vsel %vm323, %v2008, 0
    %2017 = vmatprep.subr.mxu0 0.0
    %2018 = vmatpush1.xpose.msra.mxu0 %v2013
    %2019 = vmatprep.subr.mxu0 0.0
    %2020 = vmatpush1.xpose.msra.mxu0 %v2015
    %2021 = vmatprep.subr.mxu0 0.0
    %2022 = vmatpush1.xpose.msra.mxu0 0.0
    %2023 = vmatprep.subr.mxu0 0.0
    %2024 = vmatpush1.xpose.msra.mxu0 0.0
    %2025 = vmatprep.subr.mxu0 0.0
    %2026 = vmatpush1.xpose.msra.mxu0 0.0
    %2027 = vmatprep.subr.mxu0 0.0
    %2028 = vmatpush1.xpose.msra.mxu0 0.0
    %2029 = vmatprep.subr.mxu0 0.0
    %2030 = vmatpush1.xpose.msra.mxu0 0.0
    %2031 = vmatprep.subr.mxu0 0.0
    %2032 = vmatpush1.xpose.msra.mxu0 0.0
    %2033 = vmatprep.subr.mxu0 0.0
    %2034 = vmatpush1.xpose.msra.mxu0 0.0
    %2035 = vmatprep.subr.mxu0 0.0
    %2036 = vmatpush1.xpose.msra.mxu0 0.0
    %2037 = vmatprep.subr.mxu0 0.0
    %2038 = vmatpush1.xpose.msra.mxu0 0.0
    %2039 = vmatprep.subr.mxu0 0.0
    %2040 = vmatpush1.xpose.msra.mxu0 0.0
    %2041 = vmatprep.subr.mxu0 0.0
    %2042 = vmatpush1.xpose.msra.mxu0 0.0
    %2043 = vmatprep.subr.mxu0 0.0
    %2044 = vmatpush1.xpose.msra.mxu0 0.0
    %2045 = vmatprep.subr.mxu0 0.0
    %2046 = vmatpush1.xpose.msra.mxu0 0.0
    %2047 = vmatprep.subr.mxu0 0.0
    %2048 = vmatpush1.xpose.msra.mxu0 0.0
    %2049 = vmatprep.subr.mxu0 0.0
    %2050 = vmatpush1.xpose.msra.mxu0 0.0
    %2051 = vmatprep.subr.mxu0 0.0
    %2052 = vmatpush1.xpose.msra.mxu0 0.0
    %2053 = vmatprep.subr.mxu0 0.0
    %2054 = vmatpush1.xpose.msra.mxu0 0.0
    %2055 = vmatprep.subr.mxu0 0.0
    %2056 = vmatpush1.xpose.msra.mxu0 0.0
    %2057 = vmatprep.subr.mxu0 0.0
    %2058 = vmatpush1.xpose.msra.mxu0 0.0
    %2059 = vmatprep.subr.mxu0 0.0
    %2060 = vmatpush1.xpose.msra.mxu0 0.0
    %2061 = vmatprep.subr.mxu0 0.0
    %2062 = vmatpush1.xpose.msra.mxu0 0.0
    %2063 = vmatprep.subr.mxu0 0.0
    %2064 = vmatpush1.xpose.msra.mxu0 0.0
    %2065 = vmatprep.subr.mxu0 0.0
    %2066 = vmatpush1.xpose.msra.mxu0 0.0
    %2067 = vmatprep.subr.mxu0 0.0
    %2068 = vmatpush1.xpose.msra.mxu0 0.0
    %2069 = vmatprep.subr.mxu0 0.0
    %2070 = vmatpush1.xpose.msra.mxu0 0.0
    %2071 = vmatprep.subr.mxu0 0.0
    %2072 = vmatpush1.xpose.msra.mxu0 0.0
    %2073 = vmatprep.subr.mxu0 0.0
    %2074 = vmatpush1.xpose.msra.mxu0 0.0
    %2075 = vmatprep.subr.mxu0 0.0
    %2076 = vmatpush1.xpose.msra.mxu0 0.0
    %2077 = vmatprep.subr.mxu0 0.0
    %2078 = vmatpush1.xpose.msra.mxu0 0.0
    %2079 = vmatprep.subr.mxu0 0.0
    %2080 = vmatpush1.xpose.msra.mxu0 0.0
    %2081 = vmatprep.mubr.f32.mxu0 0.0
    %2082 = vmatmul.mubr.f32.gmra.mrb[0].mxu0 %v2009
    %v2083 = vpop.f32.mrb[0].mxu0
    %v2084 = vadd.f32 %v175, %v2083
    %v2085 = vpop.f32.mrb[0].mxu0
    %2086 = vmatprep.mubr.f32.mxu0 0.0
    %2087 = vmatmul.mubr.f32.gmra.mrb[0].mxu0 %v2011
    %v2088 = vpop.f32.mrb[0].mxu0
    %v2089 = vadd.f32 %v176, %v2088
    %v2090 = vpop.f32.mrb[0].mxu0
    %2091 = vdwg.mxu0
    %v2092 = vsel %vm407, %v2084, -inf
    %2093 = vmax.xlane.f32.xlu0 %v2092
    %v2094 = vpop.xlane.xlu0 %2093
    %v2095 = vsel %vm407, %v2089, -inf
    %2096 = vmax.xlane.f32.xlu0 %v2095
    %v2097 = vpop.xlane.xlu0 %2096
    %v2098 = vsub.f32 %v2084, %v2094
    %v2099 = vsub.f32 %v2089, %v2097
    %v2100 = vmul.f32 %v2098, 1.442695
    %v2101 = vpow.pop %v2100
    %v2102 = vmul.f32 %v2099, 1.442695
    %v2103 = vpow.pop %v2102
    %v2104 = vsel %vm407, %v2101, 0.0
    %2105 = vadd.xlane.f32.xlu0 %v2104
    %v2106 = vpop.xlane.xlu0 %2105
    %v2107 = vsel %vm407, %v2103, 0.0
    %2108 = vadd.xlane.f32.xlu0 %v2107
    %v2109 = vpop.xlane.xlu0 %2108
    %v2110 = vrcp.pop %v2106
    %v2111 = vrcp.pop %v2109
    %v2112 = vmul.f32 %v2101, %v2110
    %v2113 = vmul.f32 %v2103, %v2111
    %2114 = vrot.lane.b32.xlu0 %v1573, 112
    %v2115 = vpop.permute.xlu0 %2114
    %2116 = vrot.lane.b32.xlu0 %v1579, 112
    %v2117 = vpop.permute.xlu0 %2116
    %v2121 = vsel %vm407, %v2112, 0
    %v2124 = vsel %vm407, %v2113, 0
    %2126 = vmatprep.subr.mxu0 0.0
    %2127 = vmatpush1.msra.mxu0 %v2115
    %2128 = vmatprep.subr.mxu0 0.0
    %2129 = vmatpush1.msra.mxu0 %v2117
    %2130 = vmatprep.subr.mxu0 0.0
    %2131 = vmatpush1.msra.mxu0 0.0
    %2132 = vmatprep.subr.mxu0 0.0
    %2133 = vmatpush1.msra.mxu0 0.0
    %2134 = vmatprep.subr.mxu0 0.0
    %2135 = vmatpush1.msra.mxu0 0.0
    %2136 = vmatprep.subr.mxu0 0.0
    %2137 = vmatpush1.msra.mxu0 0.0
    %2138 = vmatprep.subr.mxu0 0.0
    %2139 = vmatpush1.msra.mxu0 0.0
    %2140 = vmatprep.subr.mxu0 0.0
    %2141 = vmatpush1.msra.mxu0 0.0
    %2142 = vmatprep.subr.mxu0 0.0
    %2143 = vmatpush1.msra.mxu0 0.0
    %2144 = vmatprep.subr.mxu0 0.0
    %2145 = vmatpush1.msra.mxu0 0.0
    %2146 = vmatprep.subr.mxu0 0.0
    %2147 = vmatpush1.msra.mxu0 0.0
    %2148 = vmatprep.subr.mxu0 0.0
    %2149 = vmatpush1.msra.mxu0 0.0
    %2150 = vmatprep.subr.mxu0 0.0
    %2151 = vmatpush1.msra.mxu0 0.0
    %2152 = vmatprep.subr.mxu0 0.0
    %2153 = vmatpush1.msra.mxu0 0.0
    %2154 = vmatprep.subr.mxu0 0.0
    %2155 = vmatpush1.msra.mxu0 0.0
    %2156 = vmatprep.subr.mxu0 0.0
    %2157 = vmatpush1.msra.mxu0 0.0
    %2158 = vmatprep.subr.mxu0 0.0
    %2159 = vmatpush1.msra.mxu0 0.0
    %2160 = vmatprep.subr.mxu0 0.0
    %2161 = vmatpush1.msra.mxu0 0.0
    %2162 = vmatprep.subr.mxu0 0.0
    %2163 = vmatpush1.msra.mxu0 0.0
    %2164 = vmatprep.subr.mxu0 0.0
    %2165 = vmatpush1.msra.mxu0 0.0
    %2166 = vmatprep.subr.mxu0 0.0
    %2167 = vmatpush1.msra.mxu0 0.0
    %2168 = vmatprep.subr.mxu0 0.0
    %2169 = vmatpush1.msra.mxu0 0.0
    %2170 = vmatprep.subr.mxu0 0.0
    %2171 = vmatpush1.msra.mxu0 0.0
    %2172 = vmatprep.subr.mxu0 0.0
    %2173 = vmatpush1.msra.mxu0 0.0
    %2174 = vmatprep.subr.mxu0 0.0
    %2175 = vmatpush1.msra.mxu0 0.0
    %2176 = vmatprep.subr.mxu0 0.0
    %2177 = vmatpush1.msra.mxu0 0.0
    %2178 = vmatprep.subr.mxu0 0.0
    %2179 = vmatpush1.msra.mxu0 0.0
    %2180 = vmatprep.subr.mxu0 0.0
    %2181 = vmatpush1.msra.mxu0 0.0
    %2182 = vmatprep.subr.mxu0 0.0
    %2183 = vmatpush1.msra.mxu0 0.0
    %2184 = vmatprep.subr.mxu0 0.0
    %2185 = vmatpush1.msra.mxu0 0.0
    %2186 = vmatprep.subr.mxu0 0.0
    %2187 = vmatpush1.msra.mxu0 0.0
    %2188 = vmatprep.subr.mxu0 0.0
    %2189 = vmatpush1.msra.mxu0 0.0
    %2190 = vmatprep.mubr.f32.mxu0 0.0
    %2191 = vmatmul.mubr.f32.gmra.mrb[0].mxu0 %v2121
    %v2192 = vpop.f32.mrb[0].mxu0
    %v2193 = vadd.f32 0.0, %v2192
    %v2194 = vpop.f32.mrb[0].mxu0
    %2195 = vmatprep.mubr.f32.mxu0 0.0
    %2196 = vmatmul.mubr.f32.gmra.mrb[0].mxu0 %v2124
    %v2197 = vpop.f32.mrb[0].mxu0
    %v2198 = vadd.f32 0.0, %v2197
    %v2199 = vpop.f32.mrb[0].mxu0
    %2200 = vdwg.mxu0
    %2203 = vrot.lane.b32.xlu0 %v2193, 16
    %v2204 = vpop.permute.xlu0 %2203
    %2205 = vrot.lane.b32.xlu0 %v2198, 16
    %v2206 = vpop.permute.xlu0 %2205
    %2209 = vst.msk [vmem:[#allocation2] sm:$0xff] %vm934, %v2204
    %2210 = vst.msk [vmem:[#allocation2 + $0x8] sm:$0xff] %vm934, %v2206
    %2211 = vrot.lane.b32.xlu0 %v1593, 104
    %v2212 = vpop.permute.xlu0 %2211
    %2213 = vrot.lane.b32.xlu0 %v1594, 104
    %v2214 = vpop.permute.xlu0 %2213
    %2215 = vrot.lane.b32.xlu0 %v1593, 72
    %v2216 = vpop.permute.xlu0 %2215
    %2217 = vrot.lane.b32.xlu0 %v1594, 72
    %v2218 = vpop.permute.xlu0 %2217
    %v2219 = vsel %vm323, %v2212, 0
    %v2221 = vsel %vm323, %v2214, 0
    %v2223 = vsel %vm323, %v2216, 0
    %v2225 = vsel %vm323, %v2218, 0
    %2227 = vmatprep.subr.mxu0 0.0
    %2228 = vmatpush1.xpose.msra.mxu0 %v2223
    %2229 = vmatprep.subr.mxu0 0.0
    %2230 = vmatpush1.xpose.msra.mxu0 %v2225
    %2231 = vmatprep.subr.mxu0 0.0
    %2232 = vmatpush1.xpose.msra.mxu0 0.0
    %2233 = vmatprep.subr.mxu0 0.0
    %2234 = vmatpush1.xpose.msra.mxu0 0.0
    %2235 = vmatprep.subr.mxu0 0.0
    %2236 = vmatpush1.xpose.msra.mxu0 0.0
    %2237 = vmatprep.subr.mxu0 0.0
    %2238 = vmatpush1.xpose.msra.mxu0 0.0
    %2239 = vmatprep.subr.mxu0 0.0
    %2240 = vmatpush1.xpose.msra.mxu0 0.0
    %2241 = vmatprep.subr.mxu0 0.0
    %2242 = vmatpush1.xpose.msra.mxu0 0.0
    %2243 = vmatprep.subr.mxu0 0.0
    %2244 = vmatpush1.xpose.msra.mxu0 0.0
    %2245 = vmatprep.subr.mxu0 0.0
    %2246 = vmatpush1.xpose.msra.mxu0 0.0
    %2247 = vmatprep.subr.mxu0 0.0
    %2248 = vmatpush1.xpose.msra.mxu0 0.0
    %2249 = vmatprep.subr.mxu0 0.0
    %2250 = vmatpush1.xpose.msra.mxu0 0.0
    %2251 = vmatprep.subr.mxu0 0.0
    %2252 = vmatpush1.xpose.msra.mxu0 0.0
    %2253 = vmatprep.subr.mxu0 0.0
    %2254 = vmatpush1.xpose.msra.mxu0 0.0
    %2255 = vmatprep.subr.mxu0 0.0
    %2256 = vmatpush1.xpose.msra.mxu0 0.0
    %2257 = vmatprep.subr.mxu0 0.0
    %2258 = vmatpush1.xpose.msra.mxu0 0.0
    %2259 = vmatprep.subr.mxu0 0.0
    %2260 = vmatpush1.xpose.msra.mxu0 0.0
    %2261 = vmatprep.subr.mxu0 0.0
    %2262 = vmatpush1.xpose.msra.mxu0 0.0
    %2263 = vmatprep.subr.mxu0 0.0
    %2264 = vmatpush1.xpose.msra.mxu0 0.0
    %2265 = vmatprep.subr.mxu0 0.0
    %2266 = vmatpush1.xpose.msra.mxu0 0.0
    %2267 = vmatprep.subr.mxu0 0.0
    %2268 = vmatpush1.xpose.msra.mxu0 0.0
    %2269 = vmatprep.subr.mxu0 0.0
    %2270 = vmatpush1.xpose.msra.mxu0 0.0
    %2271 = vmatprep.subr.mxu0 0.0
    %2272 = vmatpush1.xpose.msra.mxu0 0.0
    %2273 = vmatprep.subr.mxu0 0.0
    %2274 = vmatpush1.xpose.msra.mxu0 0.0
    %2275 = vmatprep.subr.mxu0 0.0
    %2276 = vmatpush1.xpose.msra.mxu0 0.0
    %2277 = vmatprep.subr.mxu0 0.0
    %2278 = vmatpush1.xpose.msra.mxu0 0.0
    %2279 = vmatprep.subr.mxu0 0.0
    %2280 = vmatpush1.xpose.msra.mxu0 0.0
    %2281 = vmatprep.subr.mxu0 0.0
    %2282 = vmatpush1.xpose.msra.mxu0 0.0
    %2283 = vmatprep.subr.mxu0 0.0
    %2284 = vmatpush1.xpose.msra.mxu0 0.0
    %2285 = vmatprep.subr.mxu0 0.0
    %2286 = vmatpush1.xpose.msra.mxu0 0.0
    %2287 = vmatprep.subr.mxu0 0.0
    %2288 = vmatpush1.xpose.msra.mxu0 0.0
    %2289 = vmatprep.subr.mxu0 0.0
    %2290 = vmatpush1.xpose.msra.mxu0 0.0
    %2291 = vmatprep.mubr.f32.mxu0 0.0
    %2292 = vmatmul.mubr.f32.gmra.mrb[0].mxu0 %v2219
    %v2293 = vpop.f32.mrb[0].mxu0
    %v2294 = vadd.f32 %v175, %v2293
    %v2295 = vpop.f32.mrb[0].mxu0
    %2296 = vmatprep.mubr.f32.mxu0 0.0
    %2297 = vmatmul.mubr.f32.gmra.mrb[0].mxu0 %v2221
    %v2298 = vpop.f32.mrb[0].mxu0
    %v2299 = vadd.f32 %v176, %v2298
    %v2300 = vpop.f32.mrb[0].mxu0
    %2301 = vdwg.mxu0
    %v2302 = vsel %vm407, %v2294, -inf
    %2303 = vmax.xlane.f32.xlu0 %v2302
    %v2304 = vpop.xlane.xlu0 %2303
    %v2305 = vsel %vm407, %v2299, -inf
    %2306 = vmax.xlane.f32.xlu0 %v2305
    %v2307 = vpop.xlane.xlu0 %2306
    %v2308 = vsub.f32 %v2294, %v2304
    %v2309 = vsub.f32 %v2299, %v2307
    %v2310 = vmul.f32 %v2308, 1.442695
    %v2311 = vpow.pop %v2310
    %v2312 = vmul.f32 %v2309, 1.442695
    %v2313 = vpow.pop %v2312
    %v2314 = vsel %vm407, %v2311, 0.0
    %2315 = vadd.xlane.f32.xlu0 %v2314
    %v2316 = vpop.xlane.xlu0 %2315
    %v2317 = vsel %vm407, %v2313, 0.0
    %2318 = vadd.xlane.f32.xlu0 %v2317
    %v2319 = vpop.xlane.xlu0 %2318
    %v2320 = vrcp.pop %v2316
    %v2321 = vrcp.pop %v2319
    %v2322 = vmul.f32 %v2311, %v2320
    %v2323 = vmul.f32 %v2313, %v2321
    %2324 = vrot.lane.b32.xlu0 %v1573, 104
    %v2325 = vpop.permute.xlu0 %2324
    %2326 = vrot.lane.b32.xlu0 %v1579, 104
    %v2327 = vpop.permute.xlu0 %2326
    %v2331 = vsel %vm407, %v2322, 0
    %v2334 = vsel %vm407, %v2323, 0
    %2336 = vmatprep.subr.mxu0 0.0
    %2337 = vmatpush1.msra.mxu0 %v2325
    %2338 = vmatprep.subr.mxu0 0.0
    %2339 = vmatpush1.msra.mxu0 %v2327
    %2340 = vmatprep.subr.mxu0 0.0
    %2341 = vmatpush1.msra.mxu0 0.0
    %2342 = vmatprep.subr.mxu0 0.0
    %2343 = vmatpush1.msra.mxu0 0.0
    %2344 = vmatprep.subr.mxu0 0.0
    %2345 = vmatpush1.msra.mxu0 0.0
    %2346 = vmatprep.subr.mxu0 0.0
    %2347 = vmatpush1.msra.mxu0 0.0
    %2348 = vmatprep.subr.mxu0 0.0
    %2349 = vmatpush1.msra.mxu0 0.0
    %2350 = vmatprep.subr.mxu0 0.0
    %2351 = vmatpush1.msra.mxu0 0.0
    %2352 = vmatprep.subr.mxu0 0.0
    %2353 = vmatpush1.msra.mxu0 0.0
    %2354 = vmatprep.subr.mxu0 0.0
    %2355 = vmatpush1.msra.mxu0 0.0
    %2356 = vmatprep.subr.mxu0 0.0
    %2357 = vmatpush1.msra.mxu0 0.0
    %2358 = vmatprep.subr.mxu0 0.0
    %2359 = vmatpush1.msra.mxu0 0.0
    %2360 = vmatprep.subr.mxu0 0.0
    %2361 = vmatpush1.msra.mxu0 0.0
    %2362 = vmatprep.subr.mxu0 0.0
    %2363 = vmatpush1.msra.mxu0 0.0
    %2364 = vmatprep.subr.mxu0 0.0
    %2365 = vmatpush1.msra.mxu0 0.0
    %2366 = vmatprep.subr.mxu0 0.0
    %2367 = vmatpush1.msra.mxu0 0.0
    %2368 = vmatprep.subr.mxu0 0.0
    %2369 = vmatpush1.msra.mxu0 0.0
    %2370 = vmatprep.subr.mxu0 0.0
    %2371 = vmatpush1.msra.mxu0 0.0
    %2372 = vmatprep.subr.mxu0 0.0
    %2373 = vmatpush1.msra.mxu0 0.0
    %2374 = vmatprep.subr.mxu0 0.0
    %2375 = vmatpush1.msra.mxu0 0.0
    %2376 = vmatprep.subr.mxu0 0.0
    %2377 = vmatpush1.msra.mxu0 0.0
    %2378 = vmatprep.subr.mxu0 0.0
    %2379 = vmatpush1.msra.mxu0 0.0
    %2380 = vmatprep.subr.mxu0 0.0
    %2381 = vmatpush1.msra.mxu0 0.0
    %2382 = vmatprep.subr.mxu0 0.0
    %2383 = vmatpush1.msra.mxu0 0.0
    %2384 = vmatprep.subr.mxu0 0.0
    %2385 = vmatpush1.msra.mxu0 0.0
    %2386 = vmatprep.subr.mxu0 0.0
    %2387 = vmatpush1.msra.mxu0 0.0
    %2388 = vmatprep.subr.mxu0 0.0
    %2389 = vmatpush1.msra.mxu0 0.0
    %2390 = vmatprep.subr.mxu0 0.0
    %2391 = vmatpush1.msra.mxu0 0.0
    %2392 = vmatprep.subr.mxu0 0.0
    %2393 = vmatpush1.msra.mxu0 0.0
    %2394 = vmatprep.subr.mxu0 0.0
    %2395 = vmatpush1.msra.mxu0 0.0
    %2396 = vmatprep.subr.mxu0 0.0
    %2397 = vmatpush1.msra.mxu0 0.0
    %2398 = vmatprep.subr.mxu0 0.0
    %2399 = vmatpush1.msra.mxu0 0.0
    %2400 = vmatprep.mubr.f32.mxu0 0.0
    %2401 = vmatmul.mubr.f32.gmra.mrb[0].mxu0 %v2331
    %v2402 = vpop.f32.mrb[0].mxu0
    %v2403 = vadd.f32 0.0, %v2402
    %v2404 = vpop.f32.mrb[0].mxu0
    %2405 = vmatprep.mubr.f32.mxu0 0.0
    %2406 = vmatmul.mubr.f32.gmra.mrb[0].mxu0 %v2334
    %v2407 = vpop.f32.mrb[0].mxu0
    %v2408 = vadd.f32 0.0, %v2407
    %v2409 = vpop.f32.mrb[0].mxu0
    %2410 = vdwg.mxu0
    %2413 = vrot.lane.b32.xlu0 %v2403, 24
    %v2414 = vpop.permute.xlu0 %2413
    %2415 = vrot.lane.b32.xlu0 %v2408, 24
    %v2416 = vpop.permute.xlu0 %2415
    %2419 = vst.msk [vmem:[#allocation2] sm:$0xff] %vm1145, %v2414
    %2420 = vst.msk [vmem:[#allocation2 + $0x8] sm:$0xff] %vm1145, %v2416
    %v2421 = vld [vmem:[#allocation2] sm:$0xff]
    %v2422 = vld [vmem:[#allocation2 + $0x8] sm:$0xff]
    %s2423 = scalar_lea.vmem %s7, 32
    %v2424 = vld [vmem:[%s2423] sm:$0xff]
    %v2425 = vld [vmem:[%s2423 + $0x8] sm:$0xff]
    %v2426 = vld [vmem:[%s2423 + $0x10] sm:$0xff]
    %v2427 = vld [vmem:[%s2423 + $0x18] sm:$0xff]
    %v2429 = vsel %vm180, %v2421, 0
    %v2432 = vsel %vm180, %v2422, 0
    %2434 = vmatprep.subr.mxu0 0.0
    %2435 = vmatpush1.msra.mxu0 %v2424
    %2436 = vmatprep.subr.mxu0 0.0
    %2437 = vmatpush1.msra.mxu0 %v2425
    %2438 = vmatprep.subr.mxu0 0.0
    %2439 = vmatpush1.msra.mxu0 %v2426
    %2440 = vmatprep.subr.mxu0 0.0
    %2441 = vmatpush1.msra.mxu0 %v2427
    %2442 = vmatprep.subr.mxu0 0.0
    %2443 = vmatpush1.msra.mxu0 0.0
    %2444 = vmatprep.subr.mxu0 0.0
    %2445 = vmatpush1.msra.mxu0 0.0
    %2446 = vmatprep.subr.mxu0 0.0
    %2447 = vmatpush1.msra.mxu0 0.0
    %2448 = vmatprep.subr.mxu0 0.0
    %2449 = vmatpush1.msra.mxu0 0.0
    %2450 = vmatprep.subr.mxu0 0.0
    %2451 = vmatpush1.msra.mxu0 0.0
    %2452 = vmatprep.subr.mxu0 0.0
    %2453 = vmatpush1.msra.mxu0 0.0
    %2454 = vmatprep.subr.mxu0 0.0
    %2455 = vmatpush1.msra.mxu0 0.0
    %2456 = vmatprep.subr.mxu0 0.0
    %2457 = vmatpush1.msra.mxu0 0.0
    %2458 = vmatprep.subr.mxu0 0.0
    %2459 = vmatpush1.msra.mxu0 0.0
    %2460 = vmatprep.subr.mxu0 0.0
    %2461 = vmatpush1.msra.mxu0 0.0
    %2462 = vmatprep.subr.mxu0 0.0
    %2463 = vmatpush1.msra.mxu0 0.0
    %2464 = vmatprep.subr.mxu0 0.0
    %2465 = vmatpush1.msra.mxu0 0.0
    %2466 = vmatprep.subr.mxu0 0.0
    %2467 = vmatpush1.msra.mxu0 0.0
    %2468 = vmatprep.subr.mxu0 0.0
    %2469 = vmatpush1.msra.mxu0 0.0
    %2470 = vmatprep.subr.mxu0 0.0
    %2471 = vmatpush1.msra.mxu0 0.0
    %2472 = vmatprep.subr.mxu0 0.0
    %2473 = vmatpush1.msra.mxu0 0.0
    %2474 = vmatprep.subr.mxu0 0.0
    %2475 = vmatpush1.msra.mxu0 0.0
    %2476 = vmatprep.subr.mxu0 0.0
    %2477 = vmatpush1.msra.mxu0 0.0
    %2478 = vmatprep.subr.mxu0 0.0
    %2479 = vmatpush1.msra.mxu0 0.0
    %2480 = vmatprep.subr.mxu0 0.0
    %2481 = vmatpush1.msra.mxu0 0.0
    %2482 = vmatprep.subr.mxu0 0.0
    %2483 = vmatpush1.msra.mxu0 0.0
    %2484 = vmatprep.subr.mxu0 0.0
    %2485 = vmatpush1.msra.mxu0 0.0
    %2486 = vmatprep.subr.mxu0 0.0
    %2487 = vmatpush1.msra.mxu0 0.0
    %2488 = vmatprep.subr.mxu0 0.0
    %2489 = vmatpush1.msra.mxu0 0.0
    %2490 = vmatprep.subr.mxu0 0.0
    %2491 = vmatpush1.msra.mxu0 0.0
    %2492 = vmatprep.subr.mxu0 0.0
    %2493 = vmatpush1.msra.mxu0 0.0
    %2494 = vmatprep.subr.mxu0 0.0
    %2495 = vmatpush1.msra.mxu0 0.0
    %2496 = vmatprep.subr.mxu0 0.0
    %2497 = vmatpush1.msra.mxu0 0.0
    %2498 = vmatprep.mubr.f32.mxu0 0.0
    %2499 = vmatmul.mubr.f32.gmra.mrb[0].mxu0 %v2429
    %v2500 = vpop.f32.mrb[0].mxu0
    %v2501 = vadd.f32 0.0, %v2500
    %v2502 = vpop.f32.mrb[0].mxu0
    %2503 = vmatprep.mubr.f32.mxu0 0.0
    %2504 = vmatmul.mubr.f32.gmra.mrb[0].mxu0 %v2432
    %v2505 = vpop.f32.mrb[0].mxu0
    %v2506 = vadd.f32 0.0, %v2505
    %v2507 = vpop.f32.mrb[0].mxu0
    %2508 = vdwg.mxu0
    %v2509 = vadd.f32 %v1461, %v2501
    %v2510 = vadd.f32 %v1462, %v2506
    %s2511 = scalar_lea.vmem %s8, 1
    %v2512 = vld [vmem:[%s2511] sm:$0x1]
    %v2513 = vmul.f32 %v2509, %v2509
    %v2514 = vmul.f32 %v2510, %v2510
    %v2515 = vsel %vm180, %v2513, 0.0
    %2516 = vadd.xlane.f32.xlu0 %v2515
    %v2517 = vpop.xlane.xlu0 %2516
    %v2518 = vsel %vm180, %v2514, 0.0
    %2519 = vadd.xlane.f32.xlu0 %v2518
    %v2520 = vpop.xlane.xlu0 %2519
    %v2521 = vmul.f32 %v2517, %v187
    %v2522 = vmul.f32 %v2520, %v187
    %v2523 = vadd.f32 %v2521, 1e-06
    %v2524 = vadd.f32 %v2522, 1e-06
    %v2525 = vrsqrt.pop %v2523
    %v2526 = vrsqrt.pop %v2524
    %v2527 = vmul.f32 %v2509, %v2525
    %v2528 = vmul.f32 %v2510, %v2526
    %v2530 = vlaneseq
    %v2531 = vshrl.u32 %v2530, 7
    %v2532 = vsub.s32 0, %v2531
    %v2533 = vrot.slane %v2512, %v2532
    %v2535 = vmul.f32 %v2527, %v2533
    %v2536 = vmul.f32 %v2528, %v2533
    %s2537 = scalar_lea.vmem %s9, 32
    %v2538 = vld [vmem:[%s2537] sm:$0xff]
    %v2539 = vld [vmem:[%s2537 + $0x8] sm:$0xff]
    %v2540 = vld [vmem:[%s2537 + $0x10] sm:$0xff]
    %v2541 = vld [vmem:[%s2537 + $0x18] sm:$0xff]
    %v2543 = vsel %vm180, %v2535, 0
    %v2546 = vsel %vm180, %v2536, 0
    %2548 = vmatprep.subr.mxu0 0.0
    %2549 = vmatpush1.msra.mxu0 %v2538
    %2550 = vmatprep.subr.mxu0 0.0
    %2551 = vmatpush1.msra.mxu0 %v2539
    %2552 = vmatprep.subr.mxu0 0.0
    %2553 = vmatpush1.msra.mxu0 %v2540
    %2554 = vmatprep.subr.mxu0 0.0
    %2555 = vmatpush1.msra.mxu0 %v2541
    %2556 = vmatprep.subr.mxu0 0.0
    %2557 = vmatpush1.msra.mxu0 0.0
    %2558 = vmatprep.subr.mxu0 0.0
    %2559 = vmatpush1.msra.mxu0 0.0
    %2560 = vmatprep.subr.mxu0 0.0
    %2561 = vmatpush1.msra.mxu0 0.0
    %2562 = vmatprep.subr.mxu0 0.0
    %2563 = vmatpush1.msra.mxu0 0.0
    %2564 = vmatprep.subr.mxu0 0.0
    %2565 = vmatpush1.msra.mxu0 0.0
    %2566 = vmatprep.subr.mxu0 0.0
    %2567 = vmatpush1.msra.mxu0 0.0
    %2568 = vmatprep.subr.mxu0 0.0
    %2569 = vmatpush1.msra.mxu0 0.0
    %2570 = vmatprep.subr.mxu0 0.0
    %2571 = vmatpush1.msra.mxu0 0.0
    %2572 = vmatprep.subr.mxu0 0.0
    %2573 = vmatpush1.msra.mxu0 0.0
    %2574 = vmatprep.subr.mxu0 0.0
    %2575 = vmatpush1.msra.mxu0 0.0
    %2576 = vmatprep.subr.mxu0 0.0
    %2577 = vmatpush1.msra.mxu0 0.0
    %2578 = vmatprep.subr.mxu0 0.0
    %2579 = vmatpush1.msra.mxu0 0.0
    %2580 = vmatprep.subr.mxu0 0.0
    %2581 = vmatpush1.msra.mxu0 0.0
    %2582 = vmatprep.subr.mxu0 0.0
    %2583 = vmatpush1.msra.mxu0 0.0
    %2584 = vmatprep.subr.mxu0 0.0
    %2585 = vmatpush1.msra.mxu0 0.0
    %2586 = vmatprep.subr.mxu0 0.0
    %2587 = vmatpush1.msra.mxu0 0.0
    %2588 = vmatprep.subr.mxu0 0.0
    %2589 = vmatpush1.msra.mxu0 0.0
    %2590 = vmatprep.subr.mxu0 0.0
    %2591 = vmatpush1.msra.mxu0 0.0
    %2592 = vmatprep.subr.mxu0 0.0
    %2593 = vmatpush1.msra.mxu0 0.0
    %2594 = vmatprep.subr.mxu0 0.0
    %2595 = vmatpush1.msra.mxu0 0.0
    %2596 = vmatprep.subr.mxu0 0.0
    %2597 = vmatpush1.msra.mxu0 0.0
    %2598 = vmatprep.subr.mxu0 0.0
    %2599 = vmatpush1.msra.mxu0 0.0
    %2600 = vmatprep.subr.mxu0 0.0
    %2601 = vmatpush1.msra.mxu0 0.0
    %2602 = vmatprep.subr.mxu0 0.0
    %2603 = vmatpush1.msra.mxu0 0.0
    %2604 = vmatprep.subr.mxu0 0.0
    %2605 = vmatpush1.msra.mxu0 0.0
    %2606 = vmatprep.subr.mxu0 0.0
    %2607 = vmatpush1.msra.mxu0 0.0
    %2608 = vmatprep.subr.mxu0 0.0
    %2609 = vmatpush1.msra.mxu0 0.0
    %2610 = vmatprep.subr.mxu0 0.0
    %2611 = vmatpush1.msra.mxu0 0.0
    %2612 = vmatprep.mubr.f32.mxu0 0.0
    %2613 = vmatmul.mubr.f32.gmra.mrb[0].mxu0 %v2543
    %v2614 = vpop.f32.mrb[0].mxu0
    %v2615 = vadd.f32 0.0, %v2614
    %v2616 = vpop.f32.mrb[0].mxu0
    %2617 = vmatprep.mubr.f32.mxu0 0.0
    %2618 = vmatmul.mubr.f32.gmra.mrb[0].mxu0 %v2546
    %v2619 = vpop.f32.mrb[0].mxu0
    %v2620 = vadd.f32 0.0, %v2619
    %v2621 = vpop.f32.mrb[0].mxu0
    %2622 = vdwg.mxu0
    %v2623 = vxor.u32 %v2615, 2147483648
    %v2624 = vxor.u32 %v2620, 2147483648
    %v2625 = vmul.f32 %v2623, 1.442695
    %v2626 = vpow.pop %v2625
    %v2627 = vmul.f32 %v2624, 1.442695
    %v2628 = vpow.pop %v2627
    %v2629 = vadd.f32 %v2626, 1.0
    %v2630 = vadd.f32 %v2628, 1.0
    %v2631 = vrcp.pop %v2629
    %v2632 = vmul.f32 1.0, %v2631
    %v2633 = vrcp.pop %v2630
    %v2634 = vmul.f32 1.0, %v2633
    %v2635 = vmul.f32 %v2615, %v2632
    %v2636 = vmul.f32 %v2620, %v2634
    %2639 = vrot.lane.b32.xlu0 %v2615, 64
    %v2640 = vpop.permute.xlu0 %2639
    %2641 = vrot.lane.b32.xlu0 %v2620, 64
    %v2642 = vpop.permute.xlu0 %2641
    %v2645 = vmul.f32 %v2635, %v2640
    %v2646 = vmul.f32 %v2636, %v2642
    %s2647 = scalar_lea.vmem %s10, 64
    %v2648 = vld [vmem:[%s2647] sm:$0xff]
    %v2649 = vld [vmem:[%s2647 + $0x8] sm:$0xff]
    %v2650 = vld [vmem:[%s2647 + $0x10] sm:$0xff]
    %v2651 = vld [vmem:[%s2647 + $0x18] sm:$0xff]
    %v2652 = vld [vmem:[%s2647 + $0x20] sm:$0xff]
    %v2653 = vld [vmem:[%s2647 + $0x28] sm:$0xff]
    %v2654 = vld [vmem:[%s2647 + $0x30] sm:$0xff]
    %v2655 = vld [vmem:[%s2647 + $0x38] sm:$0xff]
    %v2657 = vsel %vm1379, %v2645, 0
    %v2660 = vsel %vm1379, %v2646, 0
    %2662 = vmatprep.subr.mxu0 0.0
    %2663 = vmatpush1.msra.mxu0 %v2648
    %2664 = vmatprep.subr.mxu0 0.0
    %2665 = vmatpush1.msra.mxu0 %v2649
    %2666 = vmatprep.subr.mxu0 0.0
    %2667 = vmatpush1.msra.mxu0 %v2650
    %2668 = vmatprep.subr.mxu0 0.0
    %2669 = vmatpush1.msra.mxu0 %v2651
    %2670 = vmatprep.subr.mxu0 0.0
    %2671 = vmatpush1.msra.mxu0 %v2652
    %2672 = vmatprep.subr.mxu0 0.0
    %2673 = vmatpush1.msra.mxu0 %v2653
    %2674 = vmatprep.subr.mxu0 0.0
    %2675 = vmatpush1.msra.mxu0 %v2654
    %2676 = vmatprep.subr.mxu0 0.0
    %2677 = vmatpush1.msra.mxu0 %v2655
    %2678 = vmatprep.subr.mxu0 0.0
    %2679 = vmatpush1.msra.mxu0 0.0
    %2680 = vmatprep.subr.mxu0 0.0
    %2681 = vmatpush1.msra.mxu0 0.0
    %2682 = vmatprep.subr.mxu0 0.0
    %2683 = vmatpush1.msra.mxu0 0.0
    %2684 = vmatprep.subr.mxu0 0.0
    %2685 = vmatpush1.msra.mxu0 0.0
    %2686 = vmatprep.subr.mxu0 0.0
    %2687 = vmatpush1.msra.mxu0 0.0
    %2688 = vmatprep.subr.mxu0 0.0
    %2689 = vmatpush1.msra.mxu0 0.0
    %2690 = vmatprep.subr.mxu0 0.0
    %2691 = vmatpush1.msra.mxu0 0.0
    %2692 = vmatprep.subr.mxu0 0.0
    %2693 = vmatpush1.msra.mxu0 0.0
    %2694 = vmatprep.subr.mxu0 0.0
    %2695 = vmatpush1.msra.mxu0 0.0
    %2696 = vmatprep.subr.mxu0 0.0
    %2697 = vmatpush1.msra.mxu0 0.0
    %2698 = vmatprep.subr.mxu0 0.0
    %2699 = vmatpush1.msra.mxu0 0.0
    %2700 = vmatprep.subr.mxu0 0.0
    %2701 = vmatpush1.msra.mxu0 0.0
    %2702 = vmatprep.subr.mxu0 0.0
    %2703 = vmatpush1.msra.mxu0 0.0
    %2704 = vmatprep.subr.mxu0 0.0
    %2705 = vmatpush1.msra.mxu0 0.0
    %2706 = vmatprep.subr.mxu0 0.0
    %2707 = vmatpush1.msra.mxu0 0.0
    %2708 = vmatprep.subr.mxu0 0.0
    %2709 = vmatpush1.msra.mxu0 0.0
    %2710 = vmatprep.subr.mxu0 0.0
    %2711 = vmatpush1.msra.mxu0 0.0
    %2712 = vmatprep.subr.mxu0 0.0
    %2713 = vmatpush1.msra.mxu0 0.0
    %2714 = vmatprep.subr.mxu0 0.0
    %2715 = vmatpush1.msra.mxu0 0.0
    %2716 = vmatprep.subr.mxu0 0.0
    %2717 = vmatpush1.msra.mxu0 0.0
    %2718 = vmatprep.subr.mxu0 0.0
    %2719 = vmatpush1.msra.mxu0 0.0
    %2720 = vmatprep.subr.mxu0 0.0
    %2721 = vmatpush1.msra.mxu0 0.0
    %2722 = vmatprep.subr.mxu0 0.0
    %2723 = vmatpush1.msra.mxu0 0.0
    %2724 = vmatprep.subr.mxu0 0.0
    %2725 = vmatpush1.msra.mxu0 0.0
    %2726 = vmatprep.mubr.f32.mxu0 0.0
    %2727 = vmatmul.mubr.f32.gmra.mrb[0].mxu0 %v2657
    %v2728 = vpop.f32.mrb[0].mxu0
    %v2729 = vadd.f32 0.0, %v2728
    %v2730 = vpop.f32.mrb[0].mxu0
    %2731 = vmatprep.mubr.f32.mxu0 0.0
    %2732 = vmatmul.mubr.f32.gmra.mrb[0].mxu0 %v2660
    %v2733 = vpop.f32.mrb[0].mxu0
    %v2734 = vadd.f32 0.0, %v2733
    %v2735 = vpop.f32.mrb[0].mxu0
    %2736 = vdwg.mxu0
    %v2737 = vadd.f32 %v2509, %v2729
    %v2738 = vadd.f32 %v2510, %v2734
    %v2739 = vld [vmem:[%s11] sm:$0x1]
    %v2740 = vmul.f32 %v2737, %v2737
    %v2741 = vmul.f32 %v2738, %v2738
    %v2742 = vsel %vm180, %v2740, 0.0
    %2743 = vadd.xlane.f32.xlu0 %v2742
    %v2744 = vpop.xlane.xlu0 %2743
    %v2745 = vsel %vm180, %v2741, 0.0
    %2746 = vadd.xlane.f32.xlu0 %v2745
    %v2747 = vpop.xlane.xlu0 %2746
    %v2748 = vmul.f32 %v2744, %v187
    %v2749 = vmul.f32 %v2747, %v187
    %v2750 = vadd.f32 %v2748, 1e-06
    %v2751 = vadd.f32 %v2749, 1e-06
    %v2752 = vrsqrt.pop %v2750
    %v2753 = vrsqrt.pop %v2751
    %v2754 = vmul.f32 %v2737, %v2752
    %v2755 = vmul.f32 %v2738, %v2753
    %v2757 = vlaneseq
    %v2758 = vshrl.u32 %v2757, 7
    %v2759 = vsub.s32 0, %v2758
    %v2760 = vrot.slane %v2739, %v2759
    %v2762 = vmul.f32 %v2754, %v2760
    %v2763 = vmul.f32 %v2755, %v2760
    %v2764 = vld [vmem:[%s12] sm:$0xff]
    %v2765 = vld [vmem:[%s12 + $0x8] sm:$0xff]
    %v2766 = vld [vmem:[%s12 + $0x10] sm:$0xff]
    %v2767 = vld [vmem:[%s12 + $0x18] sm:$0xff]
    %v2768 = vld [vmem:[%s12 + $0x20] sm:$0xff]
    %v2769 = vld [vmem:[%s12 + $0x28] sm:$0xff]
    %v2770 = vld [vmem:[%s12 + $0x30] sm:$0xff]
    %v2771 = vld [vmem:[%s12 + $0x38] sm:$0xff]
    %v2773 = vsel %vm180, %v2762, 0
    %v2776 = vsel %vm180, %v2763, 0
    %2778 = vmatprep.subr.mxu0 %v2765
    %2779 = vmatpush1.msra.mxu0 %v2764
    %2780 = vmatprep.subr.mxu0 %v2767
    %2781 = vmatpush1.msra.mxu0 %v2766
    %2782 = vmatprep.subr.mxu0 %v2769
    %2783 = vmatpush1.msra.mxu0 %v2768
    %2784 = vmatprep.subr.mxu0 %v2771
    %2785 = vmatpush1.msra.mxu0 %v2770
    %2786 = vmatprep.subr.mxu0 0.0
    %2787 = vmatpush1.msra.mxu0 0.0
    %2788 = vmatprep.subr.mxu0 0.0
    %2789 = vmatpush1.msra.mxu0 0.0
    %2790 = vmatprep.subr.mxu0 0.0
    %2791 = vmatpush1.msra.mxu0 0.0
    %2792 = vmatprep.subr.mxu0 0.0
    %2793 = vmatpush1.msra.mxu0 0.0
    %2794 = vmatprep.subr.mxu0 0.0
    %2795 = vmatpush1.msra.mxu0 0.0
    %2796 = vmatprep.subr.mxu0 0.0
    %2797 = vmatpush1.msra.mxu0 0.0
    %2798 = vmatprep.subr.mxu0 0.0
    %2799 = vmatpush1.msra.mxu0 0.0
    %2800 = vmatprep.subr.mxu0 0.0
    %2801 = vmatpush1.msra.mxu0 0.0
    %2802 = vmatprep.subr.mxu0 0.0
    %2803 = vmatpush1.msra.mxu0 0.0
    %2804 = vmatprep.subr.mxu0 0.0
    %2805 = vmatpush1.msra.mxu0 0.0
    %2806 = vmatprep.subr.mxu0 0.0
    %2807 = vmatpush1.msra.mxu0 0.0
    %2808 = vmatprep.subr.mxu0 0.0
    %2809 = vmatpush1.msra.mxu0 0.0
    %2810 = vmatprep.subr.mxu0 0.0
    %2811 = vmatpush1.msra.mxu0 0.0
    %2812 = vmatprep.subr.mxu0 0.0
    %2813 = vmatpush1.msra.mxu0 0.0
    %2814 = vmatprep.subr.mxu0 0.0
    %2815 = vmatpush1.msra.mxu0 0.0
    %2816 = vmatprep.subr.mxu0 0.0
    %2817 = vmatpush1.msra.mxu0 0.0
    %2818 = vmatprep.subr.mxu0 0.0
    %2819 = vmatpush1.msra.mxu0 0.0
    %2820 = vmatprep.subr.mxu0 0.0
    %2821 = vmatpush1.msra.mxu0 0.0
    %2822 = vmatprep.subr.mxu0 0.0
    %2823 = vmatpush1.msra.mxu0 0.0
    %2824 = vmatprep.subr.mxu0 0.0
    %2825 = vmatpush1.msra.mxu0 0.0
    %2826 = vmatprep.subr.mxu0 0.0
    %2827 = vmatpush1.msra.mxu0 0.0
    %2828 = vmatprep.subr.mxu0 0.0
    %2829 = vmatpush1.msra.mxu0 0.0
    %2830 = vmatprep.subr.mxu0 0.0
    %2831 = vmatpush1.msra.mxu0 0.0
    %2832 = vmatprep.subr.mxu0 0.0
    %2833 = vmatpush1.msra.mxu0 0.0
    %2834 = vmatprep.subr.mxu0 0.0
    %2835 = vmatpush1.msra.mxu0 0.0
    %2836 = vmatprep.subr.mxu0 0.0
    %2837 = vmatpush1.msra.mxu0 0.0
    %2838 = vmatprep.subr.mxu0 0.0
    %2839 = vmatpush1.msra.mxu0 0.0
    %2840 = vmatprep.subr.mxu0 0.0
    %2841 = vmatpush1.msra.mxu0 0.0
    %2842 = vmatprep.mubr.f32.mxu0 0.0
    %2843 = vmatmul.mubr.f32.gmra.mrb[0].mxu0 %v2773
    %v2844 = vpop.f32.mrb[0].mxu0
    %v2845 = vadd.f32 0.0, %v2844
    %v2846 = vpop.f32.mrb[0].mxu0
    %v2847 = vadd.f32 0.0, %v2846
    %2848 = vmatprep.mubr.f32.mxu0 0.0
    %2849 = vmatmul.mubr.f32.gmra.mrb[0].mxu0 %v2776
    %v2850 = vpop.f32.mrb[0].mxu0
    %v2851 = vadd.f32 0.0, %v2850
    %v2852 = vpop.f32.mrb[0].mxu0
    %v2853 = vadd.f32 0.0, %v2852
    %2854 = vdwg.mxu0
    %2855 = vst [vmem:[#allocation3] sm:$0xff] %v2845
    %2856 = vst [vmem:[#allocation3 + $0x8] sm:$0xff] %v2847
    %2857 = vst [vmem:[#allocation3 + $0x10] sm:$0xff] %v2851
    %2858 = vst [vmem:[#allocation3 + $0x18] sm:$0xff] %v2853
    // Predicated region
    $region54: #{ava_forward.1} parent=1 // pred_check
      _
    $region55: #{ava_forward.1} parent=1 // pred_check_branch
      %2860 = sbr.rel (0) target = $region57
    $region56: #{ava_forward.1} parent=1 // pred_region
      %s2862 = ssub.s32 512, 512
      %2863 = vsyncadd [#allocation4], %s2862
      %s2864 = sshll.u32 [#allocation3], 4
      %s2865 = int_to_ptr.vmem [resolvable:$true] %s2864
      %2870 = dma.vmem_to_hbm [thread:$0]  %s2865, 512, %s13, [#allocation4], 256, 256, 16
    $region57: #{ava_forward.1} parent=1 // pred_fallthru
      _
    // Predicated region
    $region58: #{ava_forward.1} parent=1 // pred_check
      _
    $region59: #{ava_forward.1} parent=1 // pred_check_branch
      %2872 = sbr.rel (0) target = $region61
    $region60: #{ava_forward.1} parent=1 // pred_region
      %2873 = dma.done [#allocation4], 512
    $region61: #{ava_forward.1} parent=1 // pred_fallthru
      _
    %2874 = vsyncpa [#allocation4], 1

</llo_original>
